<compile_context>
chip_gen: v7x
topology: tpu7x:2x2x1
jax: 0.10.0
libtpu: 0.0.40
codegen_flags: <defaults>
</compile_context>

<pallas_src>
import jax
import jax.numpy as jnp
from jax import lax
from jax.experimental import pallas as pl
from jax.experimental.pallas import tpu as pltpu

# ----------------------------- model config ---------------------------------
B = 2            # batch size
S = 16           # sequence length
H = 32           # hidden size
NH = 2           # attention heads
DH = H // NH     # head dim
L = 2            # encoder layers
FF = 64          # FFN intermediate size
V = 128          # vocab size (> 103 so masked_fill ids are valid, lane-dense)
C = 5            # candidate_num
M = 4            # idiom_mask_length
P = 6            # idiom_pattern_length
LN_EPS = 1e-12
ATTN_SCALE = 1.0 / (DH ** 0.5)


def _batch_per_block():
    """Fold the batch into sublanes on single-TC chips (v5e/v6e); keep a
    parallel per-batch grid on multi-TC chips (v4/v5p megacore, v7x)."""
    try:
        kind = jax.devices()[0].device_kind.lower()
    except Exception:
        return B
    multi_tc = any(tag in kind for tag in ("v4", "v5p", "v7", "7x"))
    return 1 if multi_tc else B


NB = _batch_per_block()          # batch elements processed per grid step
GRID = B // NB
OUT_2D = (NB * M) % 8 == 0       # folded path: single unmasked (8,128) store

WEIGHT_ORDER = [
    "emb_ln_g", "emb_ln_b",
    "wq", "wk", "wv", "bq", "bk", "bv",
    "wo", "bo", "ln1_g", "ln1_b",
    "w1", "b1", "w2", "b2", "ln2_g", "ln2_b",
    "mlm_t_w", "mlm_t_b", "mlm_ln_g", "mlm_ln_b",
    "dec_w", "dec_b",
]


# ----------------------------- fused Pallas kernel --------------------------
def _fused_bert_kernel(pos_ref,                       # scalar prefetch (SMEM)
                       x_ref, bias_ref,               # per-block inputs
                       eg_ref, eb_ref,
                       wq_ref, wk_ref, wv_ref, bq_ref, bk_ref, bv_ref,
                       wo_ref, bo_ref, ln1g_ref, ln1b_ref,
                       w1_ref, b1_ref, w2_ref, b2_ref,
                       ln2g_ref, ln2b_ref,
                       tw_ref, tb_ref, mlng_ref, mlnb_ref,
                       dw_ref, db_ref,
                       o_ref,
                       xs_ref, id_ref):               # VMEM scratch
    """One grid step = NB batch elements folded into the sublane axis."""
    bf16 = jnp.bfloat16

    def ln(v, g, b):
        mu = jnp.mean(v, axis=-1, keepdims=True)
        ms = jnp.mean(v * v, axis=-1, keepdims=True)
        var = jnp.maximum(ms - mu * mu, 0.0)          # two independent reductions
        return (v - mu) * lax.rsqrt(var + LN_EPS) * g + b

    k0 = jnp.float32(0.7978845608028654)              # sqrt(2/pi)
    k1 = jnp.float32(0.044715)

    def gelu(v):                                      # tanh-approx GELU (EUP)
        return 0.5 * v * (1.0 + jnp.tanh(k0 * (v + k1 * v * v * v)))

    # embedding LayerNorm over all NB*S rows
    x = ln(x_ref[...], eg_ref[...], eb_ref[...])      # (NB*S, H) f32

    # encoder layers, statically unrolled
    for l in range(L):
        xb = x.astype(bf16)
        attn_out = None
        for h in range(NH):
            # per-head projections from (H, DH) slabs -> operands start at lane 0
            q = jnp.dot(xb, wq_ref[l, h], preferred_element_type=jnp.float32) + bq_ref[l, h]
            k = jnp.dot(xb, wk_ref[l, h], preferred_element_type=jnp.float32) + bk_ref[l, h]
            v = jnp.dot(xb, wv_ref[l, h], preferred_element_type=jnp.float32) + bv_ref[l, h]
            qb = q.astype(bf16)
            kb = k.astype(bf16)
            vb = v.astype(bf16)

            ctx_parts = []
            for bi in range(NB):                      # attention stays per-sequence
                r0 = bi * S
                s_ = lax.dot_general(qb[r0:r0 + S], kb[r0:r0 + S],
                                     (((1,), (1,)), ((), ())),
                                     preferred_element_type=jnp.float32)
                s_ = s_ + bias_ref[bi]                # additive mask (1, S)
                s_ = s_ - jnp.max(s_, axis=-1, keepdims=True)
                p = jnp.exp(s_)
                p = p * pl.reciprocal(jnp.sum(p, axis=-1, keepdims=True), approx=True)
                ctx_parts.append(jnp.dot(p.astype(bf16), vb[r0:r0 + S],
                                         preferred_element_type=jnp.float32))
            ctx = ctx_parts[0] if NB == 1 else jnp.concatenate(ctx_parts, axis=0)

            # out-projection per head; accumulate (no lane-axis concat of heads)
            part = jnp.dot(ctx.astype(bf16), wo_ref[l, h],
                           preferred_element_type=jnp.float32)
            attn_out = part if attn_out is None else attn_out + part

        attn_out = attn_out + bo_ref[l]
        x = ln(x + attn_out, ln1g_ref[l], ln1b_ref[l])

        xb = x.astype(bf16)
        ffn = gelu(jnp.dot(xb, w1_ref[l], preferred_element_type=jnp.float32) + b1_ref[l])
        ffn = jnp.dot(ffn.astype(bf16), w2_ref[l],
                      preferred_element_type=jnp.float32) + b2_ref[l]
        x = ln(x + ffn, ln2g_ref[l], ln2b_ref[l])

    # masked-position select: scalar-prefetched positions + dynamic sublane reads
    xs_ref[...] = x
    bg0 = pl.program_id(0) * NB
    for bi in range(NB):
        for m in range(M):
            r = pos_ref[(bg0 + bi) * M + m]           # SMEM scalar read
            id_ref[pl.ds(bi * M + m, 1), :] = xs_ref[pl.ds(bi * S + r, 1), :]
    idiom = id_ref[...]                               # (NB*M, H)

    # MLM head: dense -> GELU -> LN -> tied decoder (+bias)
    hmid = gelu(jnp.dot(idiom.astype(bf16), tw_ref[...],
                        preferred_element_type=jnp.float32) + tb_ref[...])
    hmid = ln(hmid, mlng_ref[...], mlnb_ref[...])
    logits = jnp.dot(hmid.astype(bf16), dw_ref[...],
                     preferred_element_type=jnp.float32) + db_ref[...]   # (NB*M, V)

    if OUT_2D:
        o_ref[...] = logits.astype(o_ref.dtype)       # exact (8,128) unmasked store
    else:
        o_ref[...] = logits.reshape(NB, M, V).astype(o_ref.dtype)


def fused_bert_mlm(params, x_rows, mask_bias, pos_flat):
    """x_rows: (B*S, H) pre-LN embeddings; mask_bias: (B,1,S); pos_flat: (B*M,) i32.
    Returns MLM logits at the M masked positions per batch element: (B, M, V)."""
    in_specs = [
        pl.BlockSpec((NB * S, H), lambda i, p: (i, 0)),        # x rows (per-block)
        pl.BlockSpec((NB, 1, S), lambda i, p: (i, 0, 0)),      # additive attn mask
    ]
    weight_args = [params[k] for k in WEIGHT_ORDER]
    for w in weight_args:   # whole weight arrays, VMEM-resident across grid steps
        in_specs.append(pl.BlockSpec(w.shape, lambda i, p, _r=w.ndim: (0,) * _r))

    if OUT_2D:
        out_shape = jax.ShapeDtypeStruct((B * M, V), jnp.float32)
        out_spec = pl.BlockSpec((NB * M, V), lambda i, p: (i, 0))
    else:
        out_shape = jax.ShapeDtypeStruct((B, M, V), jnp.float32)
        out_spec = pl.BlockSpec((NB, M, V), lambda i, p: (i, 0, 0))

    out = pl.pallas_call(
        _fused_bert_kernel,
        out_shape=out_shape,
        grid_spec=pltpu.PrefetchScalarGridSpec(
            num_scalar_prefetch=1,
            grid=(GRID,),
            in_specs=in_specs,
            out_specs=out_spec,
            scratch_shapes=[pltpu.VMEM((NB * S, H), jnp.float32),   # hidden states
                            pltpu.VMEM((NB * M, H), jnp.float32)],  # selected rows
        ),
        compiler_params=pltpu.CompilerParams(
            dimension_semantics=("parallel",)),   # per-batch grid on multi-TC chips
    )(pos_flat, x_rows, mask_bias, *weight_args)
    return out.reshape(B, M, V)


# ----------------------------- parameters -----------------------------------
def init_params(key):
    keys = iter(jax.random.split(key, 32))
    bf16 = jnp.bfloat16

    def nrm(shape):
        return jax.random.normal(next(keys), shape, jnp.float32) * 0.02

    word_emb = nrm((V, H))

    return {
        "word_emb": word_emb,
        "pos_emb": nrm((S, H)),
        "type_emb": nrm((2, H)),
        "emb_ln_g": jnp.ones((1, H), jnp.float32),
        "emb_ln_b": jnp.zeros((1, H), jnp.float32),
        # per-layer, per-head Q/K/V slabs; attention scale folded into Q at init
        "wq": (nrm((L, NH, H, DH)) * ATTN_SCALE).astype(bf16),
        "wk": nrm((L, NH, H, DH)).astype(bf16),
        "wv": nrm((L, NH, H, DH)).astype(bf16),
        "bq": jnp.zeros((L, NH, 1, DH), jnp.float32),   # scale*0 == 0
        "bk": jnp.zeros((L, NH, 1, DH), jnp.float32),
        "bv": jnp.zeros((L, NH, 1, DH), jnp.float32),
        "wo": nrm((L, NH, DH, H)).astype(bf16),          # per-head rows of Wo
        "bo": jnp.zeros((L, 1, H), jnp.float32),
        "ln1_g": jnp.ones((L, 1, H), jnp.float32),
        "ln1_b": jnp.zeros((L, 1, H), jnp.float32),
        "w1": nrm((L, H, FF)).astype(bf16),
        "b1": jnp.zeros((L, 1, FF), jnp.float32),
        "w2": nrm((L, FF, H)).astype(bf16),
        "b2": jnp.zeros((L, 1, H), jnp.float32),
        "ln2_g": jnp.ones((L, 1, H), jnp.float32),
        "ln2_b": jnp.zeros((L, 1, H), jnp.float32),
        "mlm_t_w": nrm((H, H)).astype(bf16),
        "mlm_t_b": jnp.zeros((1, H), jnp.float32),
        "mlm_ln_g": jnp.ones((1, H), jnp.float32),
        "mlm_ln_b": jnp.zeros((1, H), jnp.float32),
        "dec_w": word_emb.T.astype(bf16),                # tied decoder (use_generation)
        "dec_b": jnp.zeros((1, V), jnp.float32),
    }


# ----------------------------- JAX glue --------------------------------------
def _prepare_inputs(params, input_ids, attention_mask, candidate_mask):
    b, s = input_ids.shape
    ids = jnp.where(input_ids == 100, 103, input_ids)          # masked_fill(100 -> 103)
    x_emb = (params["word_emb"][ids]
             + params["pos_emb"][None, :, :]
             + params["type_emb"][0][None, None, :])            # (B, S, H), pre-LN
    x_rows = x_emb.reshape(b * s, H)
    mask_bias = ((1.0 - attention_mask.astype(jnp.float32)) * -1e9)[:, None, :]  # (B,1,S)

    # torch.masked_select semantics: requires exactly M (=idiom_mask_length) ones
    # per row of candidate_mask; positions taken in index order.
    sort_key = (1 - candidate_mask.astype(jnp.int32)) * s + jnp.arange(s)[None, :]
    pos = jnp.argsort(sort_key, axis=-1)[:, :M].astype(jnp.int32)   # (B, M)
    return x_rows, mask_bias, pos.reshape(b * M)


def base_bert_forward(params, input_ids, attention_mask, candidate_mask,
                      candidate_pattern, candidate_pattern_mask=None, labels=None):
    b = input_ids.shape[0]
    candidate_index = candidate_pattern[:, :, 1:1 + M].astype(jnp.int32)   # (B, C, M)

    x_rows, mask_bias, pos_flat = _prepare_inputs(params, input_ids, attention_mask,
                                                  candidate_mask)
    mlm_logits = fused_bert_mlm(params, x_rows, mask_bias, pos_flat)       # (B, M, V)

    # TODO(synk): fuse the candidate gather + per-candidate log-softmax into the
    # kernel (scalar-prefetched candidate_index) to drop the remaining glue HLOs.
    cidx = jnp.transpose(candidate_index, (0, 2, 1))                       # (B, M, C)
    idiom_logits = jnp.take_along_axis(mlm_logits, cidx, axis=-1)          # (B, M, C)
    idiom_logits = jnp.transpose(idiom_logits, (0, 2, 1))                  # (B, C, M)

    if labels is not None:
        # F.cross_entropy(idiom_logits (B,C,M), labels.repeat over M)
        logp = jax.nn.log_softmax(idiom_logits, axis=1)
        tgt = jnp.broadcast_to(labels[:, None], (b, M))
        nll = -jnp.take_along_axis(logp, tgt[:, None, :], axis=1)[:, 0, :]
        return jnp.mean(nll)
    pt = jax.nn.log_softmax(idiom_logits, axis=-2).sum(-1)                 # (B, C)
    return jnp.argmax(pt, axis=-1)                                         # (B,)


@jax.jit
def predict_fn(params, input_ids, attention_mask, candidate_mask, candidate_pattern):
    return base_bert_forward(params, input_ids, attention_mask, candidate_mask,
                             candidate_pattern, labels=None)


@jax.jit
def loss_fn(params, input_ids, attention_mask, candidate_mask, candidate_pattern, labels):
    return base_bert_forward(params, input_ids, attention_mask, candidate_mask,
                             candidate_pattern, labels=labels)


# ----------------------------- main ------------------------------------------
if __name__ == "__main__":
    root = jax.random.PRNGKey(0)
    k_param, k_ids, k_pat, k_lab = jax.random.split(root, 4)

    params = init_params(k_param)

    input_ids = jax.random.randint(k_ids, (B, S), 0, V, dtype=jnp.int32)
    # exercise the masked_fill(input_ids == 100, 103) path
    input_ids = input_ids.at[0, 2].set(100).at[1, 5].set(100)

    attention_mask = jnp.ones((B, S), jnp.int32).at[1, -2:].set(0)

    # exactly idiom_mask_length (=4) ones per row
    candidate_mask = jnp.zeros((B, S), jnp.int32).at[:, 3:3 + M].set(1)

    candidate_pattern = jax.random.randint(k_pat, (B, C, P), 0, V, dtype=jnp.int32)
    labels = jax.random.randint(k_lab, (B,), 0, C, dtype=jnp.int32)

    preds = predict_fn(params, input_ids, attention_mask, candidate_mask,
                       candidate_pattern)
    loss = loss_fn(params, input_ids, attention_mask, candidate_mask,
                   candidate_pattern, labels)

    preds = jax.block_until_ready(preds)
    loss = jax.block_until_ready(loss)

    assert preds.shape == (B,)
    assert jnp.all((preds >= 0) & (preds < C))
    assert jnp.isfinite(loss)
    print("KERNEL_OK")
</pallas_src>

<mosaic_0001>
module attributes {stable_mosaic.version = 11 : i64} {
  func.func @_fused_bert_kernel(%arg0: i32, %arg1: memref<8xi32, #tpu.memory_space<smem>>, %arg2: memref<32x32xf32, #tpu.memory_space<vmem>>, %arg3: memref<2x1x16xf32, #tpu.memory_space<vmem>>, %arg4: memref<1x32xf32, #tpu.memory_space<vmem>>, %arg5: memref<1x32xf32, #tpu.memory_space<vmem>>, %arg6: memref<2x2x32x16xbf16, #tpu.memory_space<vmem>>, %arg7: memref<2x2x32x16xbf16, #tpu.memory_space<vmem>>, %arg8: memref<2x2x32x16xbf16, #tpu.memory_space<vmem>>, %arg9: memref<2x2x1x16xf32, #tpu.memory_space<vmem>>, %arg10: memref<2x2x1x16xf32, #tpu.memory_space<vmem>>, %arg11: memref<2x2x1x16xf32, #tpu.memory_space<vmem>>, %arg12: memref<2x2x16x32xbf16, #tpu.memory_space<vmem>>, %arg13: memref<2x1x32xf32, #tpu.memory_space<vmem>>, %arg14: memref<2x1x32xf32, #tpu.memory_space<vmem>>, %arg15: memref<2x1x32xf32, #tpu.memory_space<vmem>>, %arg16: memref<2x32x64xbf16, #tpu.memory_space<vmem>>, %arg17: memref<2x1x64xf32, #tpu.memory_space<vmem>>, %arg18: memref<2x64x32xbf16, #tpu.memory_space<vmem>>, %arg19: memref<2x1x32xf32, #tpu.memory_space<vmem>>, %arg20: memref<2x1x32xf32, #tpu.memory_space<vmem>>, %arg21: memref<2x1x32xf32, #tpu.memory_space<vmem>>, %arg22: memref<32x32xbf16, #tpu.memory_space<vmem>>, %arg23: memref<1x32xf32, #tpu.memory_space<vmem>>, %arg24: memref<1x32xf32, #tpu.memory_space<vmem>>, %arg25: memref<1x32xf32, #tpu.memory_space<vmem>>, %arg26: memref<32x128xbf16, #tpu.memory_space<vmem>>, %arg27: memref<1x128xf32, #tpu.memory_space<vmem>>, %arg28: memref<8x128xf32, #tpu.memory_space<vmem>>, %arg29: memref<32x32xf32, #tpu.memory_space<vmem>>, %arg30: memref<8x32xf32, #tpu.memory_space<vmem>>) attributes {dimension_semantics = [#tpu.dimension_semantics<parallel>], iteration_bounds = array<i64: 1>, scalar_prefetch = 1 : i64, scratch_operands = 2 : i64, tpu.core_type = #tpu.core_type<tc>, window_params = [{transform_indices = @transform_0, window_bounds = array<i64: 32, 32>}, {transform_indices = @transform_1, window_bounds = array<i64: 2, 1, 16>}, {pipeline_mode = #tpu.pipeline_mode<synchronous>, transform_indices = @transform_2, window_bounds = array<i64: 1, 32>}, {pipeline_mode = #tpu.pipeline_mode<synchronous>, transform_indices = @transform_3, window_bounds = array<i64: 1, 32>}, {pipeline_mode = #tpu.pipeline_mode<synchronous>, transform_indices = @transform_4, window_bounds = array<i64: 2, 2, 32, 16>}, {pipeline_mode = #tpu.pipeline_mode<synchronous>, transform_indices = @transform_5, window_bounds = array<i64: 2, 2, 32, 16>}, {pipeline_mode = #tpu.pipeline_mode<synchronous>, transform_indices = @transform_6, window_bounds = array<i64: 2, 2, 32, 16>}, {pipeline_mode = #tpu.pipeline_mode<synchronous>, transform_indices = @transform_7, window_bounds = array<i64: 2, 2, 1, 16>}, {pipeline_mode = #tpu.pipeline_mode<synchronous>, transform_indices = @transform_8, window_bounds = array<i64: 2, 2, 1, 16>}, {pipeline_mode = #tpu.pipeline_mode<synchronous>, transform_indices = @transform_9, window_bounds = array<i64: 2, 2, 1, 16>}, {pipeline_mode = #tpu.pipeline_mode<synchronous>, transform_indices = @transform_10, window_bounds = array<i64: 2, 2, 16, 32>}, {pipeline_mode = #tpu.pipeline_mode<synchronous>, transform_indices = @transform_11, window_bounds = array<i64: 2, 1, 32>}, {pipeline_mode = #tpu.pipeline_mode<synchronous>, transform_indices = @transform_12, window_bounds = array<i64: 2, 1, 32>}, {pipeline_mode = #tpu.pipeline_mode<synchronous>, transform_indices = @transform_13, window_bounds = array<i64: 2, 1, 32>}, {pipeline_mode = #tpu.pipeline_mode<synchronous>, transform_indices = @transform_14, window_bounds = array<i64: 2, 32, 64>}, {pipeline_mode = #tpu.pipeline_mode<synchronous>, transform_indices = @transform_15, window_bounds = array<i64: 2, 1, 64>}, {pipeline_mode = #tpu.pipeline_mode<synchronous>, transform_indices = @transform_16, window_bounds = array<i64: 2, 64, 32>}, {pipeline_mode = #tpu.pipeline_mode<synchronous>, transform_indices = @transform_17, window_bounds = array<i64: 2, 1, 32>}, {pipeline_mode = #tpu.pipeline_mode<synchronous>, transform_indices = @transform_18, window_bounds = array<i64: 2, 1, 32>}, {pipeline_mode = #tpu.pipeline_mode<synchronous>, transform_indices = @transform_19, window_bounds = array<i64: 2, 1, 32>}, {pipeline_mode = #tpu.pipeline_mode<synchronous>, transform_indices = @transform_20, window_bounds = array<i64: 32, 32>}, {pipeline_mode = #tpu.pipeline_mode<synchronous>, transform_indices = @transform_21, window_bounds = array<i64: 1, 32>}, {pipeline_mode = #tpu.pipeline_mode<synchronous>, transform_indices = @transform_22, window_bounds = array<i64: 1, 32>}, {pipeline_mode = #tpu.pipeline_mode<synchronous>, transform_indices = @transform_23, window_bounds = array<i64: 1, 32>}, {pipeline_mode = #tpu.pipeline_mode<synchronous>, transform_indices = @transform_24, window_bounds = array<i64: 32, 128>}, {pipeline_mode = #tpu.pipeline_mode<synchronous>, transform_indices = @transform_25, window_bounds = array<i64: 1, 128>}, {transform_indices = @transform_26, window_bounds = array<i64: 8, 128>}]} {
    %c0 = arith.constant 0 : index
    %c0_0 = arith.constant 0 : index
    %0 = vector.load %arg2[%c0, %c0_0] : memref<32x32xf32, #tpu.memory_space<vmem>>, vector<32x32xf32>
    %c0_1 = arith.constant 0 : index
    %c0_2 = arith.constant 0 : index
    %1 = vector.load %arg4[%c0_1, %c0_2] : memref<1x32xf32, #tpu.memory_space<vmem>>, vector<1x32xf32>
    %c0_3 = arith.constant 0 : index
    %c0_4 = arith.constant 0 : index
    %2 = vector.load %arg5[%c0_3, %c0_4] : memref<1x32xf32, #tpu.memory_space<vmem>>, vector<1x32xf32>
    %cst = arith.constant dense<0.000000e+00> : vector<32xf32>
    %3 = vector.multi_reduction <add>, %0, %cst [1] : vector<32x32xf32> to vector<32xf32>
    %4 = vector.shape_cast %3 : vector<32xf32> to vector<32x1xf32>
    %cst_5 = arith.constant 3.200000e+01 : f32
    %5 = vector.broadcast %cst_5 : f32 to vector<32x1xf32>
    %6 = arith.divf %4, %5 : vector<32x1xf32>
    %7 = arith.mulf %0, %0 : vector<32x32xf32>
    %cst_6 = arith.constant dense<0.000000e+00> : vector<32xf32>
    %8 = vector.multi_reduction <add>, %7, %cst_6 [1] : vector<32x32xf32> to vector<32xf32>
    %9 = vector.shape_cast %8 : vector<32xf32> to vector<32x1xf32>
    %cst_7 = arith.constant 3.200000e+01 : f32
    %10 = vector.broadcast %cst_7 : f32 to vector<32x1xf32>
    %11 = arith.divf %9, %10 : vector<32x1xf32>
    %12 = arith.mulf %6, %6 : vector<32x1xf32>
    %13 = arith.subf %11, %12 : vector<32x1xf32>
    %cst_8 = arith.constant 0.000000e+00 : f32
    %14 = vector.broadcast %cst_8 : f32 to vector<32x1xf32>
    %15 = arith.maximumf %13, %14 : vector<32x1xf32>
    %16 = vector.broadcast %6 : vector<32x1xf32> to vector<32x32xf32>
    %17 = arith.subf %0, %16 : vector<32x32xf32>
    %cst_9 = arith.constant 9.99999996E-13 : f32
    %18 = vector.broadcast %cst_9 : f32 to vector<32x1xf32>
    %19 = arith.addf %15, %18 : vector<32x1xf32>
    %20 = math.rsqrt %19 : vector<32x1xf32>
    %21 = vector.broadcast %20 : vector<32x1xf32> to vector<32x32xf32>
    %22 = arith.mulf %17, %21 : vector<32x32xf32>
    %23 = vector.broadcast %1 : vector<1x32xf32> to vector<32x32xf32>
    %24 = arith.mulf %22, %23 : vector<32x32xf32>
    %25 = vector.broadcast %2 : vector<1x32xf32> to vector<32x32xf32>
    %26 = arith.addf %24, %25 : vector<32x32xf32>
    %27 = arith.truncf %26 : vector<32x32xf32> to vector<32x32xbf16>
    %c0_10 = arith.constant 0 : index
    %c0_11 = arith.constant 0 : index
    %c0_12 = arith.constant 0 : index
    %c0_13 = arith.constant 0 : index
    %28 = vector.load %arg6[%c0_10, %c0_11, %c0_12, %c0_13] : memref<2x2x32x16xbf16, #tpu.memory_space<vmem>>, vector<1x1x32x16xbf16>
    %29 = vector.shape_cast %28 : vector<1x1x32x16xbf16> to vector<32x16xbf16>
    %cst_14 = arith.constant dense<0.000000e+00> : vector<32x16xf32>
    %30 = tpu.matmul %27, %29, %cst_14 {dimension_numbers = #tpu.dot_dimension_numbers<[1], [0], [0], [1], [0, 0, 1, 1], [], []>} : vector<32x32xbf16>, vector<32x16xbf16>, vector<32x16xf32> -> vector<32x16xf32>
    %c0_15 = arith.constant 0 : index
    %c0_16 = arith.constant 0 : index
    %c0_17 = arith.constant 0 : index
    %c0_18 = arith.constant 0 : index
    %31 = vector.load %arg9[%c0_15, %c0_16, %c0_17, %c0_18] : memref<2x2x1x16xf32, #tpu.memory_space<vmem>>, vector<1x1x1x16xf32>
    %32 = vector.shape_cast %31 : vector<1x1x1x16xf32> to vector<1x16xf32>
    %33 = vector.broadcast %32 : vector<1x16xf32> to vector<32x16xf32>
    %34 = arith.addf %30, %33 : vector<32x16xf32>
    %c0_19 = arith.constant 0 : index
    %c0_20 = arith.constant 0 : index
    %c0_21 = arith.constant 0 : index
    %c0_22 = arith.constant 0 : index
    %35 = vector.load %arg7[%c0_19, %c0_20, %c0_21, %c0_22] : memref<2x2x32x16xbf16, #tpu.memory_space<vmem>>, vector<1x1x32x16xbf16>
    %36 = vector.shape_cast %35 : vector<1x1x32x16xbf16> to vector<32x16xbf16>
    %cst_23 = arith.constant dense<0.000000e+00> : vector<32x16xf32>
    %37 = tpu.matmul %27, %36, %cst_23 {dimension_numbers = #tpu.dot_dimension_numbers<[1], [0], [0], [1], [0, 0, 1, 1], [], []>} : vector<32x32xbf16>, vector<32x16xbf16>, vector<32x16xf32> -> vector<32x16xf32>
    %c0_24 = arith.constant 0 : index
    %c0_25 = arith.constant 0 : index
    %c0_26 = arith.constant 0 : index
    %c0_27 = arith.constant 0 : index
    %38 = vector.load %arg10[%c0_24, %c0_25, %c0_26, %c0_27] : memref<2x2x1x16xf32, #tpu.memory_space<vmem>>, vector<1x1x1x16xf32>
    %39 = vector.shape_cast %38 : vector<1x1x1x16xf32> to vector<1x16xf32>
    %40 = vector.broadcast %39 : vector<1x16xf32> to vector<32x16xf32>
    %41 = arith.addf %37, %40 : vector<32x16xf32>
    %c0_28 = arith.constant 0 : index
    %c0_29 = arith.constant 0 : index
    %c0_30 = arith.constant 0 : index
    %c0_31 = arith.constant 0 : index
    %42 = vector.load %arg8[%c0_28, %c0_29, %c0_30, %c0_31] : memref<2x2x32x16xbf16, #tpu.memory_space<vmem>>, vector<1x1x32x16xbf16>
    %43 = vector.shape_cast %42 : vector<1x1x32x16xbf16> to vector<32x16xbf16>
    %cst_32 = arith.constant dense<0.000000e+00> : vector<32x16xf32>
    %44 = tpu.matmul %27, %43, %cst_32 {dimension_numbers = #tpu.dot_dimension_numbers<[1], [0], [0], [1], [0, 0, 1, 1], [], []>} : vector<32x32xbf16>, vector<32x16xbf16>, vector<32x16xf32> -> vector<32x16xf32>
    %c0_33 = arith.constant 0 : index
    %c0_34 = arith.constant 0 : index
    %c0_35 = arith.constant 0 : index
    %c0_36 = arith.constant 0 : index
    %45 = vector.load %arg11[%c0_33, %c0_34, %c0_35, %c0_36] : memref<2x2x1x16xf32, #tpu.memory_space<vmem>>, vector<1x1x1x16xf32>
    %46 = vector.shape_cast %45 : vector<1x1x1x16xf32> to vector<1x16xf32>
    %47 = vector.broadcast %46 : vector<1x16xf32> to vector<32x16xf32>
    %48 = arith.addf %44, %47 : vector<32x16xf32>
    %49 = arith.truncf %34 : vector<32x16xf32> to vector<32x16xbf16>
    %50 = arith.truncf %41 : vector<32x16xf32> to vector<32x16xbf16>
    %51 = arith.truncf %48 : vector<32x16xf32> to vector<32x16xbf16>
    %52 = vector.extract_strided_slice %49 {offsets = [0, 0], sizes = [16, 16], strides = [1, 1]} : vector<32x16xbf16> to vector<16x16xbf16>
    %53 = vector.extract_strided_slice %50 {offsets = [0, 0], sizes = [16, 16], strides = [1, 1]} : vector<32x16xbf16> to vector<16x16xbf16>
    %cst_37 = arith.constant dense<0.000000e+00> : vector<16x16xf32>
    %54 = tpu.matmul %52, %53, %cst_37 {dimension_numbers = #tpu.dot_dimension_numbers<[1], [1], [0], [0], [0, 0, 1, 0], [], []>} : vector<16x16xbf16>, vector<16x16xbf16>, vector<16x16xf32> -> vector<16x16xf32>
    %c0_38 = arith.constant 0 : index
    %c0_39 = arith.constant 0 : index
    %c0_40 = arith.constant 0 : index
    %55 = vector.load %arg3[%c0_38, %c0_39, %c0_40] : memref<2x1x16xf32, #tpu.memory_space<vmem>>, vector<1x1x16xf32>
    %56 = vector.shape_cast %55 : vector<1x1x16xf32> to vector<1x16xf32>
    %57 = vector.broadcast %56 : vector<1x16xf32> to vector<16x16xf32>
    %58 = arith.addf %54, %57 : vector<16x16xf32>
    %cst_41 = arith.constant dense<0xFF800000> : vector<16xf32>
    %59 = vector.multi_reduction <maximumf>, %58, %cst_41 [1] : vector<16x16xf32> to vector<16xf32>
    %60 = vector.shape_cast %59 : vector<16xf32> to vector<16x1xf32>
    %61 = vector.broadcast %60 : vector<16x1xf32> to vector<16x16xf32>
    %62 = arith.subf %58, %61 : vector<16x16xf32>
    %63 = math.exp %62 : vector<16x16xf32>
    %cst_42 = arith.constant dense<0.000000e+00> : vector<16xf32>
    %64 = vector.multi_reduction <add>, %63, %cst_42 [1] : vector<16x16xf32> to vector<16xf32>
    %65 = vector.shape_cast %64 : vector<16xf32> to vector<16x1xf32>
    %66 = tpu.reciprocal %65 {approx = true} : vector<16x1xf32> -> vector<16x1xf32>
    %67 = vector.broadcast %66 : vector<16x1xf32> to vector<16x16xf32>
    %68 = arith.mulf %63, %67 : vector<16x16xf32>
    %69 = arith.truncf %68 : vector<16x16xf32> to vector<16x16xbf16>
    %70 = vector.extract_strided_slice %51 {offsets = [0, 0], sizes = [16, 16], strides = [1, 1]} : vector<32x16xbf16> to vector<16x16xbf16>
    %cst_43 = arith.constant dense<0.000000e+00> : vector<16x16xf32>
    %71 = tpu.matmul %69, %70, %cst_43 {dimension_numbers = #tpu.dot_dimension_numbers<[1], [0], [0], [1], [0, 0, 1, 1], [], []>} : vector<16x16xbf16>, vector<16x16xbf16>, vector<16x16xf32> -> vector<16x16xf32>
    %72 = vector.extract_strided_slice %49 {offsets = [16, 0], sizes = [16, 16], strides = [1, 1]} : vector<32x16xbf16> to vector<16x16xbf16>
    %73 = vector.extract_strided_slice %50 {offsets = [16, 0], sizes = [16, 16], strides = [1, 1]} : vector<32x16xbf16> to vector<16x16xbf16>
    %cst_44 = arith.constant dense<0.000000e+00> : vector<16x16xf32>
    %74 = tpu.matmul %72, %73, %cst_44 {dimension_numbers = #tpu.dot_dimension_numbers<[1], [1], [0], [0], [0, 0, 1, 0], [], []>} : vector<16x16xbf16>, vector<16x16xbf16>, vector<16x16xf32> -> vector<16x16xf32>
    %c1 = arith.constant 1 : index
    %c0_45 = arith.constant 0 : index
    %c0_46 = arith.constant 0 : index
    %75 = vector.load %arg3[%c1, %c0_45, %c0_46] : memref<2x1x16xf32, #tpu.memory_space<vmem>>, vector<1x1x16xf32>
    %76 = vector.shape_cast %75 : vector<1x1x16xf32> to vector<1x16xf32>
    %77 = vector.broadcast %76 : vector<1x16xf32> to vector<16x16xf32>
    %78 = arith.addf %74, %77 : vector<16x16xf32>
    %cst_47 = arith.constant dense<0xFF800000> : vector<16xf32>
    %79 = vector.multi_reduction <maximumf>, %78, %cst_47 [1] : vector<16x16xf32> to vector<16xf32>
    %80 = vector.shape_cast %79 : vector<16xf32> to vector<16x1xf32>
    %81 = vector.broadcast %80 : vector<16x1xf32> to vector<16x16xf32>
    %82 = arith.subf %78, %81 : vector<16x16xf32>
    %83 = math.exp %82 : vector<16x16xf32>
    %cst_48 = arith.constant dense<0.000000e+00> : vector<16xf32>
    %84 = vector.multi_reduction <add>, %83, %cst_48 [1] : vector<16x16xf32> to vector<16xf32>
    %85 = vector.shape_cast %84 : vector<16xf32> to vector<16x1xf32>
    %86 = tpu.reciprocal %85 {approx = true} : vector<16x1xf32> -> vector<16x1xf32>
    %87 = vector.broadcast %86 : vector<16x1xf32> to vector<16x16xf32>
    %88 = arith.mulf %83, %87 : vector<16x16xf32>
    %89 = arith.truncf %88 : vector<16x16xf32> to vector<16x16xbf16>
    %90 = vector.extract_strided_slice %51 {offsets = [16, 0], sizes = [16, 16], strides = [1, 1]} : vector<32x16xbf16> to vector<16x16xbf16>
    %cst_49 = arith.constant dense<0.000000e+00> : vector<16x16xf32>
    %91 = tpu.matmul %89, %90, %cst_49 {dimension_numbers = #tpu.dot_dimension_numbers<[1], [0], [0], [1], [0, 0, 1, 1], [], []>} : vector<16x16xbf16>, vector<16x16xbf16>, vector<16x16xf32> -> vector<16x16xf32>
    %92 = tpu.concatenate %71, %91 in 0 : vector<16x16xf32>, vector<16x16xf32> -> vector<32x16xf32>
    %93 = arith.truncf %92 : vector<32x16xf32> to vector<32x16xbf16>
    %c0_50 = arith.constant 0 : index
    %c0_51 = arith.constant 0 : index
    %c0_52 = arith.constant 0 : index
    %c0_53 = arith.constant 0 : index
    %94 = vector.load %arg12[%c0_50, %c0_51, %c0_52, %c0_53] : memref<2x2x16x32xbf16, #tpu.memory_space<vmem>>, vector<1x1x16x32xbf16>
    %95 = vector.shape_cast %94 : vector<1x1x16x32xbf16> to vector<16x32xbf16>
    %cst_54 = arith.constant dense<0.000000e+00> : vector<32x32xf32>
    %96 = tpu.matmul %93, %95, %cst_54 {dimension_numbers = #tpu.dot_dimension_numbers<[1], [0], [0], [1], [0, 0, 1, 1], [], []>} : vector<32x16xbf16>, vector<16x32xbf16>, vector<32x32xf32> -> vector<32x32xf32>
    %c0_55 = arith.constant 0 : index
    %c1_56 = arith.constant 1 : index
    %c0_57 = arith.constant 0 : index
    %c0_58 = arith.constant 0 : index
    %97 = vector.load %arg6[%c0_55, %c1_56, %c0_57, %c0_58] : memref<2x2x32x16xbf16, #tpu.memory_space<vmem>>, vector<1x1x32x16xbf16>
    %98 = vector.shape_cast %97 : vector<1x1x32x16xbf16> to vector<32x16xbf16>
    %cst_59 = arith.constant dense<0.000000e+00> : vector<32x16xf32>
    %99 = tpu.matmul %27, %98, %cst_59 {dimension_numbers = #tpu.dot_dimension_numbers<[1], [0], [0], [1], [0, 0, 1, 1], [], []>} : vector<32x32xbf16>, vector<32x16xbf16>, vector<32x16xf32> -> vector<32x16xf32>
    %c0_60 = arith.constant 0 : index
    %c1_61 = arith.constant 1 : index
    %c0_62 = arith.constant 0 : index
    %c0_63 = arith.constant 0 : index
    %100 = vector.load %arg9[%c0_60, %c1_61, %c0_62, %c0_63] : memref<2x2x1x16xf32, #tpu.memory_space<vmem>>, vector<1x1x1x16xf32>
    %101 = vector.shape_cast %100 : vector<1x1x1x16xf32> to vector<1x16xf32>
    %102 = vector.broadcast %101 : vector<1x16xf32> to vector<32x16xf32>
    %103 = arith.addf %99, %102 : vector<32x16xf32>
    %c0_64 = arith.constant 0 : index
    %c1_65 = arith.constant 1 : index
    %c0_66 = arith.constant 0 : index
    %c0_67 = arith.constant 0 : index
    %104 = vector.load %arg7[%c0_64, %c1_65, %c0_66, %c0_67] : memref<2x2x32x16xbf16, #tpu.memory_space<vmem>>, vector<1x1x32x16xbf16>
    %105 = vector.shape_cast %104 : vector<1x1x32x16xbf16> to vector<32x16xbf16>
    %cst_68 = arith.constant dense<0.000000e+00> : vector<32x16xf32>
    %106 = tpu.matmul %27, %105, %cst_68 {dimension_numbers = #tpu.dot_dimension_numbers<[1], [0], [0], [1], [0, 0, 1, 1], [], []>} : vector<32x32xbf16>, vector<32x16xbf16>, vector<32x16xf32> -> vector<32x16xf32>
    %c0_69 = arith.constant 0 : index
    %c1_70 = arith.constant 1 : index
    %c0_71 = arith.constant 0 : index
    %c0_72 = arith.constant 0 : index
    %107 = vector.load %arg10[%c0_69, %c1_70, %c0_71, %c0_72] : memref<2x2x1x16xf32, #tpu.memory_space<vmem>>, vector<1x1x1x16xf32>
    %108 = vector.shape_cast %107 : vector<1x1x1x16xf32> to vector<1x16xf32>
    %109 = vector.broadcast %108 : vector<1x16xf32> to vector<32x16xf32>
    %110 = arith.addf %106, %109 : vector<32x16xf32>
    %c0_73 = arith.constant 0 : index
    %c1_74 = arith.constant 1 : index
    %c0_75 = arith.constant 0 : index
    %c0_76 = arith.constant 0 : index
    %111 = vector.load %arg8[%c0_73, %c1_74, %c0_75, %c0_76] : memref<2x2x32x16xbf16, #tpu.memory_space<vmem>>, vector<1x1x32x16xbf16>
    %112 = vector.shape_cast %111 : vector<1x1x32x16xbf16> to vector<32x16xbf16>
    %cst_77 = arith.constant dense<0.000000e+00> : vector<32x16xf32>
    %113 = tpu.matmul %27, %112, %cst_77 {dimension_numbers = #tpu.dot_dimension_numbers<[1], [0], [0], [1], [0, 0, 1, 1], [], []>} : vector<32x32xbf16>, vector<32x16xbf16>, vector<32x16xf32> -> vector<32x16xf32>
    %c0_78 = arith.constant 0 : index
    %c1_79 = arith.constant 1 : index
    %c0_80 = arith.constant 0 : index
    %c0_81 = arith.constant 0 : index
    %114 = vector.load %arg11[%c0_78, %c1_79, %c0_80, %c0_81] : memref<2x2x1x16xf32, #tpu.memory_space<vmem>>, vector<1x1x1x16xf32>
    %115 = vector.shape_cast %114 : vector<1x1x1x16xf32> to vector<1x16xf32>
    %116 = vector.broadcast %115 : vector<1x16xf32> to vector<32x16xf32>
    %117 = arith.addf %113, %116 : vector<32x16xf32>
    %118 = arith.truncf %103 : vector<32x16xf32> to vector<32x16xbf16>
    %119 = arith.truncf %110 : vector<32x16xf32> to vector<32x16xbf16>
    %120 = arith.truncf %117 : vector<32x16xf32> to vector<32x16xbf16>
    %121 = vector.extract_strided_slice %118 {offsets = [0, 0], sizes = [16, 16], strides = [1, 1]} : vector<32x16xbf16> to vector<16x16xbf16>
    %122 = vector.extract_strided_slice %119 {offsets = [0, 0], sizes = [16, 16], strides = [1, 1]} : vector<32x16xbf16> to vector<16x16xbf16>
    %cst_82 = arith.constant dense<0.000000e+00> : vector<16x16xf32>
    %123 = tpu.matmul %121, %122, %cst_82 {dimension_numbers = #tpu.dot_dimension_numbers<[1], [1], [0], [0], [0, 0, 1, 0], [], []>} : vector<16x16xbf16>, vector<16x16xbf16>, vector<16x16xf32> -> vector<16x16xf32>
    %c0_83 = arith.constant 0 : index
    %c0_84 = arith.constant 0 : index
    %c0_85 = arith.constant 0 : index
    %124 = vector.load %arg3[%c0_83, %c0_84, %c0_85] : memref<2x1x16xf32, #tpu.memory_space<vmem>>, vector<1x1x16xf32>
    %125 = vector.shape_cast %124 : vector<1x1x16xf32> to vector<1x16xf32>
    %126 = vector.broadcast %125 : vector<1x16xf32> to vector<16x16xf32>
    %127 = arith.addf %123, %126 : vector<16x16xf32>
    %cst_86 = arith.constant dense<0xFF800000> : vector<16xf32>
    %128 = vector.multi_reduction <maximumf>, %127, %cst_86 [1] : vector<16x16xf32> to vector<16xf32>
    %129 = vector.shape_cast %128 : vector<16xf32> to vector<16x1xf32>
    %130 = vector.broadcast %129 : vector<16x1xf32> to vector<16x16xf32>
    %131 = arith.subf %127, %130 : vector<16x16xf32>
    %132 = math.exp %131 : vector<16x16xf32>
    %cst_87 = arith.constant dense<0.000000e+00> : vector<16xf32>
    %133 = vector.multi_reduction <add>, %132, %cst_87 [1] : vector<16x16xf32> to vector<16xf32>
    %134 = vector.shape_cast %133 : vector<16xf32> to vector<16x1xf32>
    %135 = tpu.reciprocal %134 {approx = true} : vector<16x1xf32> -> vector<16x1xf32>
    %136 = vector.broadcast %135 : vector<16x1xf32> to vector<16x16xf32>
    %137 = arith.mulf %132, %136 : vector<16x16xf32>
    %138 = arith.truncf %137 : vector<16x16xf32> to vector<16x16xbf16>
    %139 = vector.extract_strided_slice %120 {offsets = [0, 0], sizes = [16, 16], strides = [1, 1]} : vector<32x16xbf16> to vector<16x16xbf16>
    %cst_88 = arith.constant dense<0.000000e+00> : vector<16x16xf32>
    %140 = tpu.matmul %138, %139, %cst_88 {dimension_numbers = #tpu.dot_dimension_numbers<[1], [0], [0], [1], [0, 0, 1, 1], [], []>} : vector<16x16xbf16>, vector<16x16xbf16>, vector<16x16xf32> -> vector<16x16xf32>
    %141 = vector.extract_strided_slice %118 {offsets = [16, 0], sizes = [16, 16], strides = [1, 1]} : vector<32x16xbf16> to vector<16x16xbf16>
    %142 = vector.extract_strided_slice %119 {offsets = [16, 0], sizes = [16, 16], strides = [1, 1]} : vector<32x16xbf16> to vector<16x16xbf16>
    %cst_89 = arith.constant dense<0.000000e+00> : vector<16x16xf32>
    %143 = tpu.matmul %141, %142, %cst_89 {dimension_numbers = #tpu.dot_dimension_numbers<[1], [1], [0], [0], [0, 0, 1, 0], [], []>} : vector<16x16xbf16>, vector<16x16xbf16>, vector<16x16xf32> -> vector<16x16xf32>
    %c1_90 = arith.constant 1 : index
    %c0_91 = arith.constant 0 : index
    %c0_92 = arith.constant 0 : index
    %144 = vector.load %arg3[%c1_90, %c0_91, %c0_92] : memref<2x1x16xf32, #tpu.memory_space<vmem>>, vector<1x1x16xf32>
    %145 = vector.shape_cast %144 : vector<1x1x16xf32> to vector<1x16xf32>
    %146 = vector.broadcast %145 : vector<1x16xf32> to vector<16x16xf32>
    %147 = arith.addf %143, %146 : vector<16x16xf32>
    %cst_93 = arith.constant dense<0xFF800000> : vector<16xf32>
    %148 = vector.multi_reduction <maximumf>, %147, %cst_93 [1] : vector<16x16xf32> to vector<16xf32>
    %149 = vector.shape_cast %148 : vector<16xf32> to vector<16x1xf32>
    %150 = vector.broadcast %149 : vector<16x1xf32> to vector<16x16xf32>
    %151 = arith.subf %147, %150 : vector<16x16xf32>
    %152 = math.exp %151 : vector<16x16xf32>
    %cst_94 = arith.constant dense<0.000000e+00> : vector<16xf32>
    %153 = vector.multi_reduction <add>, %152, %cst_94 [1] : vector<16x16xf32> to vector<16xf32>
    %154 = vector.shape_cast %153 : vector<16xf32> to vector<16x1xf32>
    %155 = tpu.reciprocal %154 {approx = true} : vector<16x1xf32> -> vector<16x1xf32>
    %156 = vector.broadcast %155 : vector<16x1xf32> to vector<16x16xf32>
    %157 = arith.mulf %152, %156 : vector<16x16xf32>
    %158 = arith.truncf %157 : vector<16x16xf32> to vector<16x16xbf16>
    %159 = vector.extract_strided_slice %120 {offsets = [16, 0], sizes = [16, 16], strides = [1, 1]} : vector<32x16xbf16> to vector<16x16xbf16>
    %cst_95 = arith.constant dense<0.000000e+00> : vector<16x16xf32>
    %160 = tpu.matmul %158, %159, %cst_95 {dimension_numbers = #tpu.dot_dimension_numbers<[1], [0], [0], [1], [0, 0, 1, 1], [], []>} : vector<16x16xbf16>, vector<16x16xbf16>, vector<16x16xf32> -> vector<16x16xf32>
    %161 = tpu.concatenate %140, %160 in 0 : vector<16x16xf32>, vector<16x16xf32> -> vector<32x16xf32>
    %162 = arith.truncf %161 : vector<32x16xf32> to vector<32x16xbf16>
    %c0_96 = arith.constant 0 : index
    %c1_97 = arith.constant 1 : index
    %c0_98 = arith.constant 0 : index
    %c0_99 = arith.constant 0 : index
    %163 = vector.load %arg12[%c0_96, %c1_97, %c0_98, %c0_99] : memref<2x2x16x32xbf16, #tpu.memory_space<vmem>>, vector<1x1x16x32xbf16>
    %164 = vector.shape_cast %163 : vector<1x1x16x32xbf16> to vector<16x32xbf16>
    %cst_100 = arith.constant dense<0.000000e+00> : vector<32x32xf32>
    %165 = tpu.matmul %162, %164, %cst_100 {dimension_numbers = #tpu.dot_dimension_numbers<[1], [0], [0], [1], [0, 0, 1, 1], [], []>} : vector<32x16xbf16>, vector<16x32xbf16>, vector<32x32xf32> -> vector<32x32xf32>
    %166 = arith.addf %96, %165 : vector<32x32xf32>
    %c0_101 = arith.constant 0 : index
    %c0_102 = arith.constant 0 : index
    %c0_103 = arith.constant 0 : index
    %167 = vector.load %arg13[%c0_101, %c0_102, %c0_103] : memref<2x1x32xf32, #tpu.memory_space<vmem>>, vector<1x1x32xf32>
    %168 = vector.shape_cast %167 : vector<1x1x32xf32> to vector<1x32xf32>
    %169 = vector.broadcast %168 : vector<1x32xf32> to vector<32x32xf32>
    %170 = arith.addf %166, %169 : vector<32x32xf32>
    %171 = arith.addf %26, %170 : vector<32x32xf32>
    %c0_104 = arith.constant 0 : index
    %c0_105 = arith.constant 0 : index
    %c0_106 = arith.constant 0 : index
    %172 = vector.load %arg14[%c0_104, %c0_105, %c0_106] : memref<2x1x32xf32, #tpu.memory_space<vmem>>, vector<1x1x32xf32>
    %173 = vector.shape_cast %172 : vector<1x1x32xf32> to vector<1x32xf32>
    %c0_107 = arith.constant 0 : index
    %c0_108 = arith.constant 0 : index
    %c0_109 = arith.constant 0 : index
    %174 = vector.load %arg15[%c0_107, %c0_108, %c0_109] : memref<2x1x32xf32, #tpu.memory_space<vmem>>, vector<1x1x32xf32>
    %175 = vector.shape_cast %174 : vector<1x1x32xf32> to vector<1x32xf32>
    %cst_110 = arith.constant dense<0.000000e+00> : vector<32xf32>
    %176 = vector.multi_reduction <add>, %171, %cst_110 [1] : vector<32x32xf32> to vector<32xf32>
    %177 = vector.shape_cast %176 : vector<32xf32> to vector<32x1xf32>
    %cst_111 = arith.constant 3.200000e+01 : f32
    %178 = vector.broadcast %cst_111 : f32 to vector<32x1xf32>
    %179 = arith.divf %177, %178 : vector<32x1xf32>
    %180 = arith.mulf %171, %171 : vector<32x32xf32>
    %cst_112 = arith.constant dense<0.000000e+00> : vector<32xf32>
    %181 = vector.multi_reduction <add>, %180, %cst_112 [1] : vector<32x32xf32> to vector<32xf32>
    %182 = vector.shape_cast %181 : vector<32xf32> to vector<32x1xf32>
    %cst_113 = arith.constant 3.200000e+01 : f32
    %183 = vector.broadcast %cst_113 : f32 to vector<32x1xf32>
    %184 = arith.divf %182, %183 : vector<32x1xf32>
    %185 = arith.mulf %179, %179 : vector<32x1xf32>
    %186 = arith.subf %184, %185 : vector<32x1xf32>
    %cst_114 = arith.constant 0.000000e+00 : f32
    %187 = vector.broadcast %cst_114 : f32 to vector<32x1xf32>
    %188 = arith.maximumf %186, %187 : vector<32x1xf32>
    %189 = vector.broadcast %179 : vector<32x1xf32> to vector<32x32xf32>
    %190 = arith.subf %171, %189 : vector<32x32xf32>
    %cst_115 = arith.constant 9.99999996E-13 : f32
    %191 = vector.broadcast %cst_115 : f32 to vector<32x1xf32>
    %192 = arith.addf %188, %191 : vector<32x1xf32>
    %193 = math.rsqrt %192 : vector<32x1xf32>
    %194 = vector.broadcast %193 : vector<32x1xf32> to vector<32x32xf32>
    %195 = arith.mulf %190, %194 : vector<32x32xf32>
    %196 = vector.broadcast %173 : vector<1x32xf32> to vector<32x32xf32>
    %197 = arith.mulf %195, %196 : vector<32x32xf32>
    %198 = vector.broadcast %175 : vector<1x32xf32> to vector<32x32xf32>
    %199 = arith.addf %197, %198 : vector<32x32xf32>
    %200 = arith.truncf %199 : vector<32x32xf32> to vector<32x32xbf16>
    %c0_116 = arith.constant 0 : index
    %c0_117 = arith.constant 0 : index
    %c0_118 = arith.constant 0 : index
    %201 = vector.load %arg16[%c0_116, %c0_117, %c0_118] : memref<2x32x64xbf16, #tpu.memory_space<vmem>>, vector<1x32x64xbf16>
    %202 = vector.shape_cast %201 : vector<1x32x64xbf16> to vector<32x64xbf16>
    %cst_119 = arith.constant dense<0.000000e+00> : vector<32x64xf32>
    %203 = tpu.matmul %200, %202, %cst_119 {dimension_numbers = #tpu.dot_dimension_numbers<[1], [0], [0], [1], [0, 0, 1, 1], [], []>} : vector<32x32xbf16>, vector<32x64xbf16>, vector<32x64xf32> -> vector<32x64xf32>
    %c0_120 = arith.constant 0 : index
    %c0_121 = arith.constant 0 : index
    %c0_122 = arith.constant 0 : index
    %204 = vector.load %arg17[%c0_120, %c0_121, %c0_122] : memref<2x1x64xf32, #tpu.memory_space<vmem>>, vector<1x1x64xf32>
    %205 = vector.shape_cast %204 : vector<1x1x64xf32> to vector<1x64xf32>
    %206 = vector.broadcast %205 : vector<1x64xf32> to vector<32x64xf32>
    %207 = arith.addf %203, %206 : vector<32x64xf32>
    %cst_123 = arith.constant 5.000000e-01 : f32
    %208 = vector.broadcast %cst_123 : f32 to vector<32x64xf32>
    %209 = arith.mulf %208, %207 : vector<32x64xf32>
    %cst_124 = arith.constant 4.471500e-02 : f32
    %210 = vector.broadcast %cst_124 : f32 to vector<32x64xf32>
    %211 = arith.mulf %210, %207 : vector<32x64xf32>
    %212 = arith.mulf %211, %207 : vector<32x64xf32>
    %213 = arith.mulf %212, %207 : vector<32x64xf32>
    %214 = arith.addf %207, %213 : vector<32x64xf32>
    %cst_125 = arith.constant 0.797884583 : f32
    %215 = vector.broadcast %cst_125 : f32 to vector<32x64xf32>
    %216 = arith.mulf %215, %214 : vector<32x64xf32>
    %217 = math.tanh %216 : vector<32x64xf32>
    %cst_126 = arith.constant 1.000000e+00 : f32
    %218 = vector.broadcast %cst_126 : f32 to vector<32x64xf32>
    %219 = arith.addf %218, %217 : vector<32x64xf32>
    %220 = arith.mulf %209, %219 : vector<32x64xf32>
    %221 = arith.truncf %220 : vector<32x64xf32> to vector<32x64xbf16>
    %c0_127 = arith.constant 0 : index
    %c0_128 = arith.constant 0 : index
    %c0_129 = arith.constant 0 : index
    %222 = vector.load %arg18[%c0_127, %c0_128, %c0_129] : memref<2x64x32xbf16, #tpu.memory_space<vmem>>, vector<1x64x32xbf16>
    %223 = vector.shape_cast %222 : vector<1x64x32xbf16> to vector<64x32xbf16>
    %cst_130 = arith.constant dense<0.000000e+00> : vector<32x32xf32>
    %224 = tpu.matmul %221, %223, %cst_130 {dimension_numbers = #tpu.dot_dimension_numbers<[1], [0], [0], [1], [0, 0, 1, 1], [], []>} : vector<32x64xbf16>, vector<64x32xbf16>, vector<32x32xf32> -> vector<32x32xf32>
    %c0_131 = arith.constant 0 : index
    %c0_132 = arith.constant 0 : index
    %c0_133 = arith.constant 0 : index
    %225 = vector.load %arg19[%c0_131, %c0_132, %c0_133] : memref<2x1x32xf32, #tpu.memory_space<vmem>>, vector<1x1x32xf32>
    %226 = vector.shape_cast %225 : vector<1x1x32xf32> to vector<1x32xf32>
    %227 = vector.broadcast %226 : vector<1x32xf32> to vector<32x32xf32>
    %228 = arith.addf %224, %227 : vector<32x32xf32>
    %229 = arith.addf %199, %228 : vector<32x32xf32>
    %c0_134 = arith.constant 0 : index
    %c0_135 = arith.constant 0 : index
    %c0_136 = arith.constant 0 : index
    %230 = vector.load %arg20[%c0_134, %c0_135, %c0_136] : memref<2x1x32xf32, #tpu.memory_space<vmem>>, vector<1x1x32xf32>
    %231 = vector.shape_cast %230 : vector<1x1x32xf32> to vector<1x32xf32>
    %c0_137 = arith.constant 0 : index
    %c0_138 = arith.constant 0 : index
    %c0_139 = arith.constant 0 : index
    %232 = vector.load %arg21[%c0_137, %c0_138, %c0_139] : memref<2x1x32xf32, #tpu.memory_space<vmem>>, vector<1x1x32xf32>
    %233 = vector.shape_cast %232 : vector<1x1x32xf32> to vector<1x32xf32>
    %cst_140 = arith.constant dense<0.000000e+00> : vector<32xf32>
    %234 = vector.multi_reduction <add>, %229, %cst_140 [1] : vector<32x32xf32> to vector<32xf32>
    %235 = vector.shape_cast %234 : vector<32xf32> to vector<32x1xf32>
    %cst_141 = arith.constant 3.200000e+01 : f32
    %236 = vector.broadcast %cst_141 : f32 to vector<32x1xf32>
    %237 = arith.divf %235, %236 : vector<32x1xf32>
    %238 = arith.mulf %229, %229 : vector<32x32xf32>
    %cst_142 = arith.constant dense<0.000000e+00> : vector<32xf32>
    %239 = vector.multi_reduction <add>, %238, %cst_142 [1] : vector<32x32xf32> to vector<32xf32>
    %240 = vector.shape_cast %239 : vector<32xf32> to vector<32x1xf32>
    %cst_143 = arith.constant 3.200000e+01 : f32
    %241 = vector.broadcast %cst_143 : f32 to vector<32x1xf32>
    %242 = arith.divf %240, %241 : vector<32x1xf32>
    %243 = arith.mulf %237, %237 : vector<32x1xf32>
    %244 = arith.subf %242, %243 : vector<32x1xf32>
    %cst_144 = arith.constant 0.000000e+00 : f32
    %245 = vector.broadcast %cst_144 : f32 to vector<32x1xf32>
    %246 = arith.maximumf %244, %245 : vector<32x1xf32>
    %247 = vector.broadcast %237 : vector<32x1xf32> to vector<32x32xf32>
    %248 = arith.subf %229, %247 : vector<32x32xf32>
    %cst_145 = arith.constant 9.99999996E-13 : f32
    %249 = vector.broadcast %cst_145 : f32 to vector<32x1xf32>
    %250 = arith.addf %246, %249 : vector<32x1xf32>
    %251 = math.rsqrt %250 : vector<32x1xf32>
    %252 = vector.broadcast %251 : vector<32x1xf32> to vector<32x32xf32>
    %253 = arith.mulf %248, %252 : vector<32x32xf32>
    %254 = vector.broadcast %231 : vector<1x32xf32> to vector<32x32xf32>
    %255 = arith.mulf %253, %254 : vector<32x32xf32>
    %256 = vector.broadcast %233 : vector<1x32xf32> to vector<32x32xf32>
    %257 = arith.addf %255, %256 : vector<32x32xf32>
    %258 = arith.truncf %257 : vector<32x32xf32> to vector<32x32xbf16>
    %c1_146 = arith.constant 1 : index
    %c0_147 = arith.constant 0 : index
    %c0_148 = arith.constant 0 : index
    %c0_149 = arith.constant 0 : index
    %259 = vector.load %arg6[%c1_146, %c0_147, %c0_148, %c0_149] : memref<2x2x32x16xbf16, #tpu.memory_space<vmem>>, vector<1x1x32x16xbf16>
    %260 = vector.shape_cast %259 : vector<1x1x32x16xbf16> to vector<32x16xbf16>
    %cst_150 = arith.constant dense<0.000000e+00> : vector<32x16xf32>
    %261 = tpu.matmul %258, %260, %cst_150 {dimension_numbers = #tpu.dot_dimension_numbers<[1], [0], [0], [1], [0, 0, 1, 1], [], []>} : vector<32x32xbf16>, vector<32x16xbf16>, vector<32x16xf32> -> vector<32x16xf32>
    %c1_151 = arith.constant 1 : index
    %c0_152 = arith.constant 0 : index
    %c0_153 = arith.constant 0 : index
    %c0_154 = arith.constant 0 : index
    %262 = vector.load %arg9[%c1_151, %c0_152, %c0_153, %c0_154] : memref<2x2x1x16xf32, #tpu.memory_space<vmem>>, vector<1x1x1x16xf32>
    %263 = vector.shape_cast %262 : vector<1x1x1x16xf32> to vector<1x16xf32>
    %264 = vector.broadcast %263 : vector<1x16xf32> to vector<32x16xf32>
    %265 = arith.addf %261, %264 : vector<32x16xf32>
    %c1_155 = arith.constant 1 : index
    %c0_156 = arith.constant 0 : index
    %c0_157 = arith.constant 0 : index
    %c0_158 = arith.constant 0 : index
    %266 = vector.load %arg7[%c1_155, %c0_156, %c0_157, %c0_158] : memref<2x2x32x16xbf16, #tpu.memory_space<vmem>>, vector<1x1x32x16xbf16>
    %267 = vector.shape_cast %266 : vector<1x1x32x16xbf16> to vector<32x16xbf16>
    %cst_159 = arith.constant dense<0.000000e+00> : vector<32x16xf32>
    %268 = tpu.matmul %258, %267, %cst_159 {dimension_numbers = #tpu.dot_dimension_numbers<[1], [0], [0], [1], [0, 0, 1, 1], [], []>} : vector<32x32xbf16>, vector<32x16xbf16>, vector<32x16xf32> -> vector<32x16xf32>
    %c1_160 = arith.constant 1 : index
    %c0_161 = arith.constant 0 : index
    %c0_162 = arith.constant 0 : index
    %c0_163 = arith.constant 0 : index
    %269 = vector.load %arg10[%c1_160, %c0_161, %c0_162, %c0_163] : memref<2x2x1x16xf32, #tpu.memory_space<vmem>>, vector<1x1x1x16xf32>
    %270 = vector.shape_cast %269 : vector<1x1x1x16xf32> to vector<1x16xf32>
    %271 = vector.broadcast %270 : vector<1x16xf32> to vector<32x16xf32>
    %272 = arith.addf %268, %271 : vector<32x16xf32>
    %c1_164 = arith.constant 1 : index
    %c0_165 = arith.constant 0 : index
    %c0_166 = arith.constant 0 : index
    %c0_167 = arith.constant 0 : index
    %273 = vector.load %arg8[%c1_164, %c0_165, %c0_166, %c0_167] : memref<2x2x32x16xbf16, #tpu.memory_space<vmem>>, vector<1x1x32x16xbf16>
    %274 = vector.shape_cast %273 : vector<1x1x32x16xbf16> to vector<32x16xbf16>
    %cst_168 = arith.constant dense<0.000000e+00> : vector<32x16xf32>
    %275 = tpu.matmul %258, %274, %cst_168 {dimension_numbers = #tpu.dot_dimension_numbers<[1], [0], [0], [1], [0, 0, 1, 1], [], []>} : vector<32x32xbf16>, vector<32x16xbf16>, vector<32x16xf32> -> vector<32x16xf32>
    %c1_169 = arith.constant 1 : index
    %c0_170 = arith.constant 0 : index
    %c0_171 = arith.constant 0 : index
    %c0_172 = arith.constant 0 : index
    %276 = vector.load %arg11[%c1_169, %c0_170, %c0_171, %c0_172] : memref<2x2x1x16xf32, #tpu.memory_space<vmem>>, vector<1x1x1x16xf32>
    %277 = vector.shape_cast %276 : vector<1x1x1x16xf32> to vector<1x16xf32>
    %278 = vector.broadcast %277 : vector<1x16xf32> to vector<32x16xf32>
    %279 = arith.addf %275, %278 : vector<32x16xf32>
    %280 = arith.truncf %265 : vector<32x16xf32> to vector<32x16xbf16>
    %281 = arith.truncf %272 : vector<32x16xf32> to vector<32x16xbf16>
    %282 = arith.truncf %279 : vector<32x16xf32> to vector<32x16xbf16>
    %283 = vector.extract_strided_slice %280 {offsets = [0, 0], sizes = [16, 16], strides = [1, 1]} : vector<32x16xbf16> to vector<16x16xbf16>
    %284 = vector.extract_strided_slice %281 {offsets = [0, 0], sizes = [16, 16], strides = [1, 1]} : vector<32x16xbf16> to vector<16x16xbf16>
    %cst_173 = arith.constant dense<0.000000e+00> : vector<16x16xf32>
    %285 = tpu.matmul %283, %284, %cst_173 {dimension_numbers = #tpu.dot_dimension_numbers<[1], [1], [0], [0], [0, 0, 1, 0], [], []>} : vector<16x16xbf16>, vector<16x16xbf16>, vector<16x16xf32> -> vector<16x16xf32>
    %c0_174 = arith.constant 0 : index
    %c0_175 = arith.constant 0 : index
    %c0_176 = arith.constant 0 : index
    %286 = vector.load %arg3[%c0_174, %c0_175, %c0_176] : memref<2x1x16xf32, #tpu.memory_space<vmem>>, vector<1x1x16xf32>
    %287 = vector.shape_cast %286 : vector<1x1x16xf32> to vector<1x16xf32>
    %288 = vector.broadcast %287 : vector<1x16xf32> to vector<16x16xf32>
    %289 = arith.addf %285, %288 : vector<16x16xf32>
    %cst_177 = arith.constant dense<0xFF800000> : vector<16xf32>
    %290 = vector.multi_reduction <maximumf>, %289, %cst_177 [1] : vector<16x16xf32> to vector<16xf32>
    %291 = vector.shape_cast %290 : vector<16xf32> to vector<16x1xf32>
    %292 = vector.broadcast %291 : vector<16x1xf32> to vector<16x16xf32>
    %293 = arith.subf %289, %292 : vector<16x16xf32>
    %294 = math.exp %293 : vector<16x16xf32>
    %cst_178 = arith.constant dense<0.000000e+00> : vector<16xf32>
    %295 = vector.multi_reduction <add>, %294, %cst_178 [1] : vector<16x16xf32> to vector<16xf32>
    %296 = vector.shape_cast %295 : vector<16xf32> to vector<16x1xf32>
    %297 = tpu.reciprocal %296 {approx = true} : vector<16x1xf32> -> vector<16x1xf32>
    %298 = vector.broadcast %297 : vector<16x1xf32> to vector<16x16xf32>
    %299 = arith.mulf %294, %298 : vector<16x16xf32>
    %300 = arith.truncf %299 : vector<16x16xf32> to vector<16x16xbf16>
    %301 = vector.extract_strided_slice %282 {offsets = [0, 0], sizes = [16, 16], strides = [1, 1]} : vector<32x16xbf16> to vector<16x16xbf16>
    %cst_179 = arith.constant dense<0.000000e+00> : vector<16x16xf32>
    %302 = tpu.matmul %300, %301, %cst_179 {dimension_numbers = #tpu.dot_dimension_numbers<[1], [0], [0], [1], [0, 0, 1, 1], [], []>} : vector<16x16xbf16>, vector<16x16xbf16>, vector<16x16xf32> -> vector<16x16xf32>
    %303 = vector.extract_strided_slice %280 {offsets = [16, 0], sizes = [16, 16], strides = [1, 1]} : vector<32x16xbf16> to vector<16x16xbf16>
    %304 = vector.extract_strided_slice %281 {offsets = [16, 0], sizes = [16, 16], strides = [1, 1]} : vector<32x16xbf16> to vector<16x16xbf16>
    %cst_180 = arith.constant dense<0.000000e+00> : vector<16x16xf32>
    %305 = tpu.matmul %303, %304, %cst_180 {dimension_numbers = #tpu.dot_dimension_numbers<[1], [1], [0], [0], [0, 0, 1, 0], [], []>} : vector<16x16xbf16>, vector<16x16xbf16>, vector<16x16xf32> -> vector<16x16xf32>
    %c1_181 = arith.constant 1 : index
    %c0_182 = arith.constant 0 : index
    %c0_183 = arith.constant 0 : index
    %306 = vector.load %arg3[%c1_181, %c0_182, %c0_183] : memref<2x1x16xf32, #tpu.memory_space<vmem>>, vector<1x1x16xf32>
    %307 = vector.shape_cast %306 : vector<1x1x16xf32> to vector<1x16xf32>
    %308 = vector.broadcast %307 : vector<1x16xf32> to vector<16x16xf32>
    %309 = arith.addf %305, %308 : vector<16x16xf32>
    %cst_184 = arith.constant dense<0xFF800000> : vector<16xf32>
    %310 = vector.multi_reduction <maximumf>, %309, %cst_184 [1] : vector<16x16xf32> to vector<16xf32>
    %311 = vector.shape_cast %310 : vector<16xf32> to vector<16x1xf32>
    %312 = vector.broadcast %311 : vector<16x1xf32> to vector<16x16xf32>
    %313 = arith.subf %309, %312 : vector<16x16xf32>
    %314 = math.exp %313 : vector<16x16xf32>
    %cst_185 = arith.constant dense<0.000000e+00> : vector<16xf32>
    %315 = vector.multi_reduction <add>, %314, %cst_185 [1] : vector<16x16xf32> to vector<16xf32>
    %316 = vector.shape_cast %315 : vector<16xf32> to vector<16x1xf32>
    %317 = tpu.reciprocal %316 {approx = true} : vector<16x1xf32> -> vector<16x1xf32>
    %318 = vector.broadcast %317 : vector<16x1xf32> to vector<16x16xf32>
    %319 = arith.mulf %314, %318 : vector<16x16xf32>
    %320 = arith.truncf %319 : vector<16x16xf32> to vector<16x16xbf16>
    %321 = vector.extract_strided_slice %282 {offsets = [16, 0], sizes = [16, 16], strides = [1, 1]} : vector<32x16xbf16> to vector<16x16xbf16>
    %cst_186 = arith.constant dense<0.000000e+00> : vector<16x16xf32>
    %322 = tpu.matmul %320, %321, %cst_186 {dimension_numbers = #tpu.dot_dimension_numbers<[1], [0], [0], [1], [0, 0, 1, 1], [], []>} : vector<16x16xbf16>, vector<16x16xbf16>, vector<16x16xf32> -> vector<16x16xf32>
    %323 = tpu.concatenate %302, %322 in 0 : vector<16x16xf32>, vector<16x16xf32> -> vector<32x16xf32>
    %324 = arith.truncf %323 : vector<32x16xf32> to vector<32x16xbf16>
    %c1_187 = arith.constant 1 : index
    %c0_188 = arith.constant 0 : index
    %c0_189 = arith.constant 0 : index
    %c0_190 = arith.constant 0 : index
    %325 = vector.load %arg12[%c1_187, %c0_188, %c0_189, %c0_190] : memref<2x2x16x32xbf16, #tpu.memory_space<vmem>>, vector<1x1x16x32xbf16>
    %326 = vector.shape_cast %325 : vector<1x1x16x32xbf16> to vector<16x32xbf16>
    %cst_191 = arith.constant dense<0.000000e+00> : vector<32x32xf32>
    %327 = tpu.matmul %324, %326, %cst_191 {dimension_numbers = #tpu.dot_dimension_numbers<[1], [0], [0], [1], [0, 0, 1, 1], [], []>} : vector<32x16xbf16>, vector<16x32xbf16>, vector<32x32xf32> -> vector<32x32xf32>
    %c1_192 = arith.constant 1 : index
    %c1_193 = arith.constant 1 : index
    %c0_194 = arith.constant 0 : index
    %c0_195 = arith.constant 0 : index
    %328 = vector.load %arg6[%c1_192, %c1_193, %c0_194, %c0_195] : memref<2x2x32x16xbf16, #tpu.memory_space<vmem>>, vector<1x1x32x16xbf16>
    %329 = vector.shape_cast %328 : vector<1x1x32x16xbf16> to vector<32x16xbf16>
    %cst_196 = arith.constant dense<0.000000e+00> : vector<32x16xf32>
    %330 = tpu.matmul %258, %329, %cst_196 {dimension_numbers = #tpu.dot_dimension_numbers<[1], [0], [0], [1], [0, 0, 1, 1], [], []>} : vector<32x32xbf16>, vector<32x16xbf16>, vector<32x16xf32> -> vector<32x16xf32>
    %c1_197 = arith.constant 1 : index
    %c1_198 = arith.constant 1 : index
    %c0_199 = arith.constant 0 : index
    %c0_200 = arith.constant 0 : index
    %331 = vector.load %arg9[%c1_197, %c1_198, %c0_199, %c0_200] : memref<2x2x1x16xf32, #tpu.memory_space<vmem>>, vector<1x1x1x16xf32>
    %332 = vector.shape_cast %331 : vector<1x1x1x16xf32> to vector<1x16xf32>
    %333 = vector.broadcast %332 : vector<1x16xf32> to vector<32x16xf32>
    %334 = arith.addf %330, %333 : vector<32x16xf32>
    %c1_201 = arith.constant 1 : index
    %c1_202 = arith.constant 1 : index
    %c0_203 = arith.constant 0 : index
    %c0_204 = arith.constant 0 : index
    %335 = vector.load %arg7[%c1_201, %c1_202, %c0_203, %c0_204] : memref<2x2x32x16xbf16, #tpu.memory_space<vmem>>, vector<1x1x32x16xbf16>
    %336 = vector.shape_cast %335 : vector<1x1x32x16xbf16> to vector<32x16xbf16>
    %cst_205 = arith.constant dense<0.000000e+00> : vector<32x16xf32>
    %337 = tpu.matmul %258, %336, %cst_205 {dimension_numbers = #tpu.dot_dimension_numbers<[1], [0], [0], [1], [0, 0, 1, 1], [], []>} : vector<32x32xbf16>, vector<32x16xbf16>, vector<32x16xf32> -> vector<32x16xf32>
    %c1_206 = arith.constant 1 : index
    %c1_207 = arith.constant 1 : index
    %c0_208 = arith.constant 0 : index
    %c0_209 = arith.constant 0 : index
    %338 = vector.load %arg10[%c1_206, %c1_207, %c0_208, %c0_209] : memref<2x2x1x16xf32, #tpu.memory_space<vmem>>, vector<1x1x1x16xf32>
    %339 = vector.shape_cast %338 : vector<1x1x1x16xf32> to vector<1x16xf32>
    %340 = vector.broadcast %339 : vector<1x16xf32> to vector<32x16xf32>
    %341 = arith.addf %337, %340 : vector<32x16xf32>
    %c1_210 = arith.constant 1 : index
    %c1_211 = arith.constant 1 : index
    %c0_212 = arith.constant 0 : index
    %c0_213 = arith.constant 0 : index
    %342 = vector.load %arg8[%c1_210, %c1_211, %c0_212, %c0_213] : memref<2x2x32x16xbf16, #tpu.memory_space<vmem>>, vector<1x1x32x16xbf16>
    %343 = vector.shape_cast %342 : vector<1x1x32x16xbf16> to vector<32x16xbf16>
    %cst_214 = arith.constant dense<0.000000e+00> : vector<32x16xf32>
    %344 = tpu.matmul %258, %343, %cst_214 {dimension_numbers = #tpu.dot_dimension_numbers<[1], [0], [0], [1], [0, 0, 1, 1], [], []>} : vector<32x32xbf16>, vector<32x16xbf16>, vector<32x16xf32> -> vector<32x16xf32>
    %c1_215 = arith.constant 1 : index
    %c1_216 = arith.constant 1 : index
    %c0_217 = arith.constant 0 : index
    %c0_218 = arith.constant 0 : index
    %345 = vector.load %arg11[%c1_215, %c1_216, %c0_217, %c0_218] : memref<2x2x1x16xf32, #tpu.memory_space<vmem>>, vector<1x1x1x16xf32>
    %346 = vector.shape_cast %345 : vector<1x1x1x16xf32> to vector<1x16xf32>
    %347 = vector.broadcast %346 : vector<1x16xf32> to vector<32x16xf32>
    %348 = arith.addf %344, %347 : vector<32x16xf32>
    %349 = arith.truncf %334 : vector<32x16xf32> to vector<32x16xbf16>
    %350 = arith.truncf %341 : vector<32x16xf32> to vector<32x16xbf16>
    %351 = arith.truncf %348 : vector<32x16xf32> to vector<32x16xbf16>
    %352 = vector.extract_strided_slice %349 {offsets = [0, 0], sizes = [16, 16], strides = [1, 1]} : vector<32x16xbf16> to vector<16x16xbf16>
    %353 = vector.extract_strided_slice %350 {offsets = [0, 0], sizes = [16, 16], strides = [1, 1]} : vector<32x16xbf16> to vector<16x16xbf16>
    %cst_219 = arith.constant dense<0.000000e+00> : vector<16x16xf32>
    %354 = tpu.matmul %352, %353, %cst_219 {dimension_numbers = #tpu.dot_dimension_numbers<[1], [1], [0], [0], [0, 0, 1, 0], [], []>} : vector<16x16xbf16>, vector<16x16xbf16>, vector<16x16xf32> -> vector<16x16xf32>
    %c0_220 = arith.constant 0 : index
    %c0_221 = arith.constant 0 : index
    %c0_222 = arith.constant 0 : index
    %355 = vector.load %arg3[%c0_220, %c0_221, %c0_222] : memref<2x1x16xf32, #tpu.memory_space<vmem>>, vector<1x1x16xf32>
    %356 = vector.shape_cast %355 : vector<1x1x16xf32> to vector<1x16xf32>
    %357 = vector.broadcast %356 : vector<1x16xf32> to vector<16x16xf32>
    %358 = arith.addf %354, %357 : vector<16x16xf32>
    %cst_223 = arith.constant dense<0xFF800000> : vector<16xf32>
    %359 = vector.multi_reduction <maximumf>, %358, %cst_223 [1] : vector<16x16xf32> to vector<16xf32>
    %360 = vector.shape_cast %359 : vector<16xf32> to vector<16x1xf32>
    %361 = vector.broadcast %360 : vector<16x1xf32> to vector<16x16xf32>
    %362 = arith.subf %358, %361 : vector<16x16xf32>
    %363 = math.exp %362 : vector<16x16xf32>
    %cst_224 = arith.constant dense<0.000000e+00> : vector<16xf32>
    %364 = vector.multi_reduction <add>, %363, %cst_224 [1] : vector<16x16xf32> to vector<16xf32>
    %365 = vector.shape_cast %364 : vector<16xf32> to vector<16x1xf32>
    %366 = tpu.reciprocal %365 {approx = true} : vector<16x1xf32> -> vector<16x1xf32>
    %367 = vector.broadcast %366 : vector<16x1xf32> to vector<16x16xf32>
    %368 = arith.mulf %363, %367 : vector<16x16xf32>
    %369 = arith.truncf %368 : vector<16x16xf32> to vector<16x16xbf16>
    %370 = vector.extract_strided_slice %351 {offsets = [0, 0], sizes = [16, 16], strides = [1, 1]} : vector<32x16xbf16> to vector<16x16xbf16>
    %cst_225 = arith.constant dense<0.000000e+00> : vector<16x16xf32>
    %371 = tpu.matmul %369, %370, %cst_225 {dimension_numbers = #tpu.dot_dimension_numbers<[1], [0], [0], [1], [0, 0, 1, 1], [], []>} : vector<16x16xbf16>, vector<16x16xbf16>, vector<16x16xf32> -> vector<16x16xf32>
    %372 = vector.extract_strided_slice %349 {offsets = [16, 0], sizes = [16, 16], strides = [1, 1]} : vector<32x16xbf16> to vector<16x16xbf16>
    %373 = vector.extract_strided_slice %350 {offsets = [16, 0], sizes = [16, 16], strides = [1, 1]} : vector<32x16xbf16> to vector<16x16xbf16>
    %cst_226 = arith.constant dense<0.000000e+00> : vector<16x16xf32>
    %374 = tpu.matmul %372, %373, %cst_226 {dimension_numbers = #tpu.dot_dimension_numbers<[1], [1], [0], [0], [0, 0, 1, 0], [], []>} : vector<16x16xbf16>, vector<16x16xbf16>, vector<16x16xf32> -> vector<16x16xf32>
    %c1_227 = arith.constant 1 : index
    %c0_228 = arith.constant 0 : index
    %c0_229 = arith.constant 0 : index
    %375 = vector.load %arg3[%c1_227, %c0_228, %c0_229] : memref<2x1x16xf32, #tpu.memory_space<vmem>>, vector<1x1x16xf32>
    %376 = vector.shape_cast %375 : vector<1x1x16xf32> to vector<1x16xf32>
    %377 = vector.broadcast %376 : vector<1x16xf32> to vector<16x16xf32>
    %378 = arith.addf %374, %377 : vector<16x16xf32>
    %cst_230 = arith.constant dense<0xFF800000> : vector<16xf32>
    %379 = vector.multi_reduction <maximumf>, %378, %cst_230 [1] : vector<16x16xf32> to vector<16xf32>
    %380 = vector.shape_cast %379 : vector<16xf32> to vector<16x1xf32>
    %381 = vector.broadcast %380 : vector<16x1xf32> to vector<16x16xf32>
    %382 = arith.subf %378, %381 : vector<16x16xf32>
    %383 = math.exp %382 : vector<16x16xf32>
    %cst_231 = arith.constant dense<0.000000e+00> : vector<16xf32>
    %384 = vector.multi_reduction <add>, %383, %cst_231 [1] : vector<16x16xf32> to vector<16xf32>
    %385 = vector.shape_cast %384 : vector<16xf32> to vector<16x1xf32>
    %386 = tpu.reciprocal %385 {approx = true} : vector<16x1xf32> -> vector<16x1xf32>
    %387 = vector.broadcast %386 : vector<16x1xf32> to vector<16x16xf32>
    %388 = arith.mulf %383, %387 : vector<16x16xf32>
    %389 = arith.truncf %388 : vector<16x16xf32> to vector<16x16xbf16>
    %390 = vector.extract_strided_slice %351 {offsets = [16, 0], sizes = [16, 16], strides = [1, 1]} : vector<32x16xbf16> to vector<16x16xbf16>
    %cst_232 = arith.constant dense<0.000000e+00> : vector<16x16xf32>
    %391 = tpu.matmul %389, %390, %cst_232 {dimension_numbers = #tpu.dot_dimension_numbers<[1], [0], [0], [1], [0, 0, 1, 1], [], []>} : vector<16x16xbf16>, vector<16x16xbf16>, vector<16x16xf32> -> vector<16x16xf32>
    %392 = tpu.concatenate %371, %391 in 0 : vector<16x16xf32>, vector<16x16xf32> -> vector<32x16xf32>
    %393 = arith.truncf %392 : vector<32x16xf32> to vector<32x16xbf16>
    %c1_233 = arith.constant 1 : index
    %c1_234 = arith.constant 1 : index
    %c0_235 = arith.constant 0 : index
    %c0_236 = arith.constant 0 : index
    %394 = vector.load %arg12[%c1_233, %c1_234, %c0_235, %c0_236] : memref<2x2x16x32xbf16, #tpu.memory_space<vmem>>, vector<1x1x16x32xbf16>
    %395 = vector.shape_cast %394 : vector<1x1x16x32xbf16> to vector<16x32xbf16>
    %cst_237 = arith.constant dense<0.000000e+00> : vector<32x32xf32>
    %396 = tpu.matmul %393, %395, %cst_237 {dimension_numbers = #tpu.dot_dimension_numbers<[1], [0], [0], [1], [0, 0, 1, 1], [], []>} : vector<32x16xbf16>, vector<16x32xbf16>, vector<32x32xf32> -> vector<32x32xf32>
    %397 = arith.addf %327, %396 : vector<32x32xf32>
    %c1_238 = arith.constant 1 : index
    %c0_239 = arith.constant 0 : index
    %c0_240 = arith.constant 0 : index
    %398 = vector.load %arg13[%c1_238, %c0_239, %c0_240] : memref<2x1x32xf32, #tpu.memory_space<vmem>>, vector<1x1x32xf32>
    %399 = vector.shape_cast %398 : vector<1x1x32xf32> to vector<1x32xf32>
    %400 = vector.broadcast %399 : vector<1x32xf32> to vector<32x32xf32>
    %401 = arith.addf %397, %400 : vector<32x32xf32>
    %402 = arith.addf %257, %401 : vector<32x32xf32>
    %c1_241 = arith.constant 1 : index
    %c0_242 = arith.constant 0 : index
    %c0_243 = arith.constant 0 : index
    %403 = vector.load %arg14[%c1_241, %c0_242, %c0_243] : memref<2x1x32xf32, #tpu.memory_space<vmem>>, vector<1x1x32xf32>
    %404 = vector.shape_cast %403 : vector<1x1x32xf32> to vector<1x32xf32>
    %c1_244 = arith.constant 1 : index
    %c0_245 = arith.constant 0 : index
    %c0_246 = arith.constant 0 : index
    %405 = vector.load %arg15[%c1_244, %c0_245, %c0_246] : memref<2x1x32xf32, #tpu.memory_space<vmem>>, vector<1x1x32xf32>
    %406 = vector.shape_cast %405 : vector<1x1x32xf32> to vector<1x32xf32>
    %cst_247 = arith.constant dense<0.000000e+00> : vector<32xf32>
    %407 = vector.multi_reduction <add>, %402, %cst_247 [1] : vector<32x32xf32> to vector<32xf32>
    %408 = vector.shape_cast %407 : vector<32xf32> to vector<32x1xf32>
    %cst_248 = arith.constant 3.200000e+01 : f32
    %409 = vector.broadcast %cst_248 : f32 to vector<32x1xf32>
    %410 = arith.divf %408, %409 : vector<32x1xf32>
    %411 = arith.mulf %402, %402 : vector<32x32xf32>
    %cst_249 = arith.constant dense<0.000000e+00> : vector<32xf32>
    %412 = vector.multi_reduction <add>, %411, %cst_249 [1] : vector<32x32xf32> to vector<32xf32>
    %413 = vector.shape_cast %412 : vector<32xf32> to vector<32x1xf32>
    %cst_250 = arith.constant 3.200000e+01 : f32
    %414 = vector.broadcast %cst_250 : f32 to vector<32x1xf32>
    %415 = arith.divf %413, %414 : vector<32x1xf32>
    %416 = arith.mulf %410, %410 : vector<32x1xf32>
    %417 = arith.subf %415, %416 : vector<32x1xf32>
    %cst_251 = arith.constant 0.000000e+00 : f32
    %418 = vector.broadcast %cst_251 : f32 to vector<32x1xf32>
    %419 = arith.maximumf %417, %418 : vector<32x1xf32>
    %420 = vector.broadcast %410 : vector<32x1xf32> to vector<32x32xf32>
    %421 = arith.subf %402, %420 : vector<32x32xf32>
    %cst_252 = arith.constant 9.99999996E-13 : f32
    %422 = vector.broadcast %cst_252 : f32 to vector<32x1xf32>
    %423 = arith.addf %419, %422 : vector<32x1xf32>
    %424 = math.rsqrt %423 : vector<32x1xf32>
    %425 = vector.broadcast %424 : vector<32x1xf32> to vector<32x32xf32>
    %426 = arith.mulf %421, %425 : vector<32x32xf32>
    %427 = vector.broadcast %404 : vector<1x32xf32> to vector<32x32xf32>
    %428 = arith.mulf %426, %427 : vector<32x32xf32>
    %429 = vector.broadcast %406 : vector<1x32xf32> to vector<32x32xf32>
    %430 = arith.addf %428, %429 : vector<32x32xf32>
    %431 = arith.truncf %430 : vector<32x32xf32> to vector<32x32xbf16>
    %c1_253 = arith.constant 1 : index
    %c0_254 = arith.constant 0 : index
    %c0_255 = arith.constant 0 : index
    %432 = vector.load %arg16[%c1_253, %c0_254, %c0_255] : memref<2x32x64xbf16, #tpu.memory_space<vmem>>, vector<1x32x64xbf16>
    %433 = vector.shape_cast %432 : vector<1x32x64xbf16> to vector<32x64xbf16>
    %cst_256 = arith.constant dense<0.000000e+00> : vector<32x64xf32>
    %434 = tpu.matmul %431, %433, %cst_256 {dimension_numbers = #tpu.dot_dimension_numbers<[1], [0], [0], [1], [0, 0, 1, 1], [], []>} : vector<32x32xbf16>, vector<32x64xbf16>, vector<32x64xf32> -> vector<32x64xf32>
    %c1_257 = arith.constant 1 : index
    %c0_258 = arith.constant 0 : index
    %c0_259 = arith.constant 0 : index
    %435 = vector.load %arg17[%c1_257, %c0_258, %c0_259] : memref<2x1x64xf32, #tpu.memory_space<vmem>>, vector<1x1x64xf32>
    %436 = vector.shape_cast %435 : vector<1x1x64xf32> to vector<1x64xf32>
    %437 = vector.broadcast %436 : vector<1x64xf32> to vector<32x64xf32>
    %438 = arith.addf %434, %437 : vector<32x64xf32>
    %cst_260 = arith.constant 5.000000e-01 : f32
    %439 = vector.broadcast %cst_260 : f32 to vector<32x64xf32>
    %440 = arith.mulf %439, %438 : vector<32x64xf32>
    %cst_261 = arith.constant 4.471500e-02 : f32
    %441 = vector.broadcast %cst_261 : f32 to vector<32x64xf32>
    %442 = arith.mulf %441, %438 : vector<32x64xf32>
    %443 = arith.mulf %442, %438 : vector<32x64xf32>
    %444 = arith.mulf %443, %438 : vector<32x64xf32>
    %445 = arith.addf %438, %444 : vector<32x64xf32>
    %cst_262 = arith.constant 0.797884583 : f32
    %446 = vector.broadcast %cst_262 : f32 to vector<32x64xf32>
    %447 = arith.mulf %446, %445 : vector<32x64xf32>
    %448 = math.tanh %447 : vector<32x64xf32>
    %cst_263 = arith.constant 1.000000e+00 : f32
    %449 = vector.broadcast %cst_263 : f32 to vector<32x64xf32>
    %450 = arith.addf %449, %448 : vector<32x64xf32>
    %451 = arith.mulf %440, %450 : vector<32x64xf32>
    %452 = arith.truncf %451 : vector<32x64xf32> to vector<32x64xbf16>
    %c1_264 = arith.constant 1 : index
    %c0_265 = arith.constant 0 : index
    %c0_266 = arith.constant 0 : index
    %453 = vector.load %arg18[%c1_264, %c0_265, %c0_266] : memref<2x64x32xbf16, #tpu.memory_space<vmem>>, vector<1x64x32xbf16>
    %454 = vector.shape_cast %453 : vector<1x64x32xbf16> to vector<64x32xbf16>
    %cst_267 = arith.constant dense<0.000000e+00> : vector<32x32xf32>
    %455 = tpu.matmul %452, %454, %cst_267 {dimension_numbers = #tpu.dot_dimension_numbers<[1], [0], [0], [1], [0, 0, 1, 1], [], []>} : vector<32x64xbf16>, vector<64x32xbf16>, vector<32x32xf32> -> vector<32x32xf32>
    %c1_268 = arith.constant 1 : index
    %c0_269 = arith.constant 0 : index
    %c0_270 = arith.constant 0 : index
    %456 = vector.load %arg19[%c1_268, %c0_269, %c0_270] : memref<2x1x32xf32, #tpu.memory_space<vmem>>, vector<1x1x32xf32>
    %457 = vector.shape_cast %456 : vector<1x1x32xf32> to vector<1x32xf32>
    %458 = vector.broadcast %457 : vector<1x32xf32> to vector<32x32xf32>
    %459 = arith.addf %455, %458 : vector<32x32xf32>
    %460 = arith.addf %430, %459 : vector<32x32xf32>
    %c1_271 = arith.constant 1 : index
    %c0_272 = arith.constant 0 : index
    %c0_273 = arith.constant 0 : index
    %461 = vector.load %arg20[%c1_271, %c0_272, %c0_273] : memref<2x1x32xf32, #tpu.memory_space<vmem>>, vector<1x1x32xf32>
    %462 = vector.shape_cast %461 : vector<1x1x32xf32> to vector<1x32xf32>
    %c1_274 = arith.constant 1 : index
    %c0_275 = arith.constant 0 : index
    %c0_276 = arith.constant 0 : index
    %463 = vector.load %arg21[%c1_274, %c0_275, %c0_276] : memref<2x1x32xf32, #tpu.memory_space<vmem>>, vector<1x1x32xf32>
    %464 = vector.shape_cast %463 : vector<1x1x32xf32> to vector<1x32xf32>
    %cst_277 = arith.constant dense<0.000000e+00> : vector<32xf32>
    %465 = vector.multi_reduction <add>, %460, %cst_277 [1] : vector<32x32xf32> to vector<32xf32>
    %466 = vector.shape_cast %465 : vector<32xf32> to vector<32x1xf32>
    %cst_278 = arith.constant 3.200000e+01 : f32
    %467 = vector.broadcast %cst_278 : f32 to vector<32x1xf32>
    %468 = arith.divf %466, %467 : vector<32x1xf32>
    %469 = arith.mulf %460, %460 : vector<32x32xf32>
    %cst_279 = arith.constant dense<0.000000e+00> : vector<32xf32>
    %470 = vector.multi_reduction <add>, %469, %cst_279 [1] : vector<32x32xf32> to vector<32xf32>
    %471 = vector.shape_cast %470 : vector<32xf32> to vector<32x1xf32>
    %cst_280 = arith.constant 3.200000e+01 : f32
    %472 = vector.broadcast %cst_280 : f32 to vector<32x1xf32>
    %473 = arith.divf %471, %472 : vector<32x1xf32>
    %474 = arith.mulf %468, %468 : vector<32x1xf32>
    %475 = arith.subf %473, %474 : vector<32x1xf32>
    %cst_281 = arith.constant 0.000000e+00 : f32
    %476 = vector.broadcast %cst_281 : f32 to vector<32x1xf32>
    %477 = arith.maximumf %475, %476 : vector<32x1xf32>
    %478 = vector.broadcast %468 : vector<32x1xf32> to vector<32x32xf32>
    %479 = arith.subf %460, %478 : vector<32x32xf32>
    %cst_282 = arith.constant 9.99999996E-13 : f32
    %480 = vector.broadcast %cst_282 : f32 to vector<32x1xf32>
    %481 = arith.addf %477, %480 : vector<32x1xf32>
    %482 = math.rsqrt %481 : vector<32x1xf32>
    %483 = vector.broadcast %482 : vector<32x1xf32> to vector<32x32xf32>
    %484 = arith.mulf %479, %483 : vector<32x32xf32>
    %485 = vector.broadcast %462 : vector<1x32xf32> to vector<32x32xf32>
    %486 = arith.mulf %484, %485 : vector<32x32xf32>
    %487 = vector.broadcast %464 : vector<1x32xf32> to vector<32x32xf32>
    %488 = arith.addf %486, %487 : vector<32x32xf32>
    %c0_283 = arith.constant 0 : index
    %c0_284 = arith.constant 0 : index
    %489 = vector.load %arg29[%c0_283, %c0_284] : memref<32x32xf32, #tpu.memory_space<vmem>>, vector<32x32xf32>
    tpu.vector_store %arg29[%c0_283, %c0_284], %488 {strides = array<i32>} : memref<32x32xf32, #tpu.memory_space<vmem>>, vector<32x32xf32>,
    %c2_i32 = arith.constant 2 : i32
    %490 = arith.muli %arg0, %c2_i32 : i32
    %c0_i32 = arith.constant 0 : i32
    %491 = arith.addi %490, %c0_i32 : i32
    %c4_i32 = arith.constant 4 : i32
    %492 = arith.muli %491, %c4_i32 : i32
    %c0_i32_285 = arith.constant 0 : i32
    %493 = arith.addi %492, %c0_i32_285 : i32
    %494 = arith.index_cast %493 : i32 to index
    %495 = memref.load %arg1[%494] : memref<8xi32, #tpu.memory_space<smem>>
    %c0_i32_286 = arith.constant 0 : i32
    %496 = arith.addi %c0_i32_286, %495 : i32
    %497 = arith.index_cast %496 : i32 to index
    %c0_287 = arith.constant 0 : index
    %498 = vector.load %arg29[%497, %c0_287] : memref<32x32xf32, #tpu.memory_space<vmem>>, vector<1x32xf32>
    %c0_288 = arith.constant 0 : index
    %c0_289 = arith.constant 0 : index
    %499 = vector.load %arg30[%c0_288, %c0_289] : memref<8x32xf32, #tpu.memory_space<vmem>>, vector<1x32xf32>
    tpu.vector_store %arg30[%c0_288, %c0_289], %498 {strides = array<i32>} : memref<8x32xf32, #tpu.memory_space<vmem>>, vector<1x32xf32>,
    %c0_i32_290 = arith.constant 0 : i32
    %500 = arith.addi %490, %c0_i32_290 : i32
    %c4_i32_291 = arith.constant 4 : i32
    %501 = arith.muli %500, %c4_i32_291 : i32
    %c1_i32 = arith.constant 1 : i32
    %502 = arith.addi %501, %c1_i32 : i32
    %503 = arith.index_cast %502 : i32 to index
    %504 = memref.load %arg1[%503] : memref<8xi32, #tpu.memory_space<smem>>
    %c0_i32_292 = arith.constant 0 : i32
    %505 = arith.addi %c0_i32_292, %504 : i32
    %506 = arith.index_cast %505 : i32 to index
    %c0_293 = arith.constant 0 : index
    %507 = vector.load %arg29[%506, %c0_293] : memref<32x32xf32, #tpu.memory_space<vmem>>, vector<1x32xf32>
    %c1_294 = arith.constant 1 : index
    %c0_295 = arith.constant 0 : index
    %508 = vector.load %arg30[%c1_294, %c0_295] : memref<8x32xf32, #tpu.memory_space<vmem>>, vector<1x32xf32>
    tpu.vector_store %arg30[%c1_294, %c0_295], %507 {strides = array<i32>} : memref<8x32xf32, #tpu.memory_space<vmem>>, vector<1x32xf32>,
    %c0_i32_296 = arith.constant 0 : i32
    %509 = arith.addi %490, %c0_i32_296 : i32
    %c4_i32_297 = arith.constant 4 : i32
    %510 = arith.muli %509, %c4_i32_297 : i32
    %c2_i32_298 = arith.constant 2 : i32
    %511 = arith.addi %510, %c2_i32_298 : i32
    %512 = arith.index_cast %511 : i32 to index
    %513 = memref.load %arg1[%512] : memref<8xi32, #tpu.memory_space<smem>>
    %c0_i32_299 = arith.constant 0 : i32
    %514 = arith.addi %c0_i32_299, %513 : i32
    %515 = arith.index_cast %514 : i32 to index
    %c0_300 = arith.constant 0 : index
    %516 = vector.load %arg29[%515, %c0_300] : memref<32x32xf32, #tpu.memory_space<vmem>>, vector<1x32xf32>
    %c2 = arith.constant 2 : index
    %c0_301 = arith.constant 0 : index
    %517 = vector.load %arg30[%c2, %c0_301] : memref<8x32xf32, #tpu.memory_space<vmem>>, vector<1x32xf32>
    tpu.vector_store %arg30[%c2, %c0_301], %516 {strides = array<i32>} : memref<8x32xf32, #tpu.memory_space<vmem>>, vector<1x32xf32>,
    %c0_i32_302 = arith.constant 0 : i32
    %518 = arith.addi %490, %c0_i32_302 : i32
    %c4_i32_303 = arith.constant 4 : i32
    %519 = arith.muli %518, %c4_i32_303 : i32
    %c3_i32 = arith.constant 3 : i32
    %520 = arith.addi %519, %c3_i32 : i32
    %521 = arith.index_cast %520 : i32 to index
    %522 = memref.load %arg1[%521] : memref<8xi32, #tpu.memory_space<smem>>
    %c0_i32_304 = arith.constant 0 : i32
    %523 = arith.addi %c0_i32_304, %522 : i32
    %524 = arith.index_cast %523 : i32 to index
    %c0_305 = arith.constant 0 : index
    %525 = vector.load %arg29[%524, %c0_305] : memref<32x32xf32, #tpu.memory_space<vmem>>, vector<1x32xf32>
    %c3 = arith.constant 3 : index
    %c0_306 = arith.constant 0 : index
    %526 = vector.load %arg30[%c3, %c0_306] : memref<8x32xf32, #tpu.memory_space<vmem>>, vector<1x32xf32>
    tpu.vector_store %arg30[%c3, %c0_306], %525 {strides = array<i32>} : memref<8x32xf32, #tpu.memory_space<vmem>>, vector<1x32xf32>,
    %c1_i32_307 = arith.constant 1 : i32
    %527 = arith.addi %490, %c1_i32_307 : i32
    %c4_i32_308 = arith.constant 4 : i32
    %528 = arith.muli %527, %c4_i32_308 : i32
    %c0_i32_309 = arith.constant 0 : i32
    %529 = arith.addi %528, %c0_i32_309 : i32
    %530 = arith.index_cast %529 : i32 to index
    %531 = memref.load %arg1[%530] : memref<8xi32, #tpu.memory_space<smem>>
    %c16_i32 = arith.constant 16 : i32
    %532 = arith.addi %c16_i32, %531 : i32
    %533 = arith.index_cast %532 : i32 to index
    %c0_310 = arith.constant 0 : index
    %534 = vector.load %arg29[%533, %c0_310] : memref<32x32xf32, #tpu.memory_space<vmem>>, vector<1x32xf32>
    %c4 = arith.constant 4 : index
    %c0_311 = arith.constant 0 : index
    %535 = vector.load %arg30[%c4, %c0_311] : memref<8x32xf32, #tpu.memory_space<vmem>>, vector<1x32xf32>
    tpu.vector_store %arg30[%c4, %c0_311], %534 {strides = array<i32>} : memref<8x32xf32, #tpu.memory_space<vmem>>, vector<1x32xf32>,
    %c1_i32_312 = arith.constant 1 : i32
    %536 = arith.addi %490, %c1_i32_312 : i32
    %c4_i32_313 = arith.constant 4 : i32
    %537 = arith.muli %536, %c4_i32_313 : i32
    %c1_i32_314 = arith.constant 1 : i32
    %538 = arith.addi %537, %c1_i32_314 : i32
    %539 = arith.index_cast %538 : i32 to index
    %540 = memref.load %arg1[%539] : memref<8xi32, #tpu.memory_space<smem>>
    %c16_i32_315 = arith.constant 16 : i32
    %541 = arith.addi %c16_i32_315, %540 : i32
    %542 = arith.index_cast %541 : i32 to index
    %c0_316 = arith.constant 0 : index
    %543 = vector.load %arg29[%542, %c0_316] : memref<32x32xf32, #tpu.memory_space<vmem>>, vector<1x32xf32>
    %c5 = arith.constant 5 : index
    %c0_317 = arith.constant 0 : index
    %544 = vector.load %arg30[%c5, %c0_317] : memref<8x32xf32, #tpu.memory_space<vmem>>, vector<1x32xf32>
    tpu.vector_store %arg30[%c5, %c0_317], %543 {strides = array<i32>} : memref<8x32xf32, #tpu.memory_space<vmem>>, vector<1x32xf32>,
    %c1_i32_318 = arith.constant 1 : i32
    %545 = arith.addi %490, %c1_i32_318 : i32
    %c4_i32_319 = arith.constant 4 : i32
    %546 = arith.muli %545, %c4_i32_319 : i32
    %c2_i32_320 = arith.constant 2 : i32
    %547 = arith.addi %546, %c2_i32_320 : i32
    %548 = arith.index_cast %547 : i32 to index
    %549 = memref.load %arg1[%548] : memref<8xi32, #tpu.memory_space<smem>>
    %c16_i32_321 = arith.constant 16 : i32
    %550 = arith.addi %c16_i32_321, %549 : i32
    %551 = arith.index_cast %550 : i32 to index
    %c0_322 = arith.constant 0 : index
    %552 = vector.load %arg29[%551, %c0_322] : memref<32x32xf32, #tpu.memory_space<vmem>>, vector<1x32xf32>
    %c6 = arith.constant 6 : index
    %c0_323 = arith.constant 0 : index
    %553 = vector.load %arg30[%c6, %c0_323] : memref<8x32xf32, #tpu.memory_space<vmem>>, vector<1x32xf32>
    tpu.vector_store %arg30[%c6, %c0_323], %552 {strides = array<i32>} : memref<8x32xf32, #tpu.memory_space<vmem>>, vector<1x32xf32>,
    %c1_i32_324 = arith.constant 1 : i32
    %554 = arith.addi %490, %c1_i32_324 : i32
    %c4_i32_325 = arith.constant 4 : i32
    %555 = arith.muli %554, %c4_i32_325 : i32
    %c3_i32_326 = arith.constant 3 : i32
    %556 = arith.addi %555, %c3_i32_326 : i32
    %557 = arith.index_cast %556 : i32 to index
    %558 = memref.load %arg1[%557] : memref<8xi32, #tpu.memory_space<smem>>
    %c16_i32_327 = arith.constant 16 : i32
    %559 = arith.addi %c16_i32_327, %558 : i32
    %560 = arith.index_cast %559 : i32 to index
    %c0_328 = arith.constant 0 : index
    %561 = vector.load %arg29[%560, %c0_328] : memref<32x32xf32, #tpu.memory_space<vmem>>, vector<1x32xf32>
    %c7 = arith.constant 7 : index
    %c0_329 = arith.constant 0 : index
    %562 = vector.load %arg30[%c7, %c0_329] : memref<8x32xf32, #tpu.memory_space<vmem>>, vector<1x32xf32>
    tpu.vector_store %arg30[%c7, %c0_329], %561 {strides = array<i32>} : memref<8x32xf32, #tpu.memory_space<vmem>>, vector<1x32xf32>,
    %c0_330 = arith.constant 0 : index
    %c0_331 = arith.constant 0 : index
    %563 = vector.load %arg30[%c0_330, %c0_331] : memref<8x32xf32, #tpu.memory_space<vmem>>, vector<8x32xf32>
    %564 = arith.truncf %563 : vector<8x32xf32> to vector<8x32xbf16>
    %c0_332 = arith.constant 0 : index
    %c0_333 = arith.constant 0 : index
    %565 = vector.load %arg22[%c0_332, %c0_333] : memref<32x32xbf16, #tpu.memory_space<vmem>>, vector<32x32xbf16>
    %cst_334 = arith.constant dense<0.000000e+00> : vector<8x32xf32>
    %566 = tpu.matmul %564, %565, %cst_334 {dimension_numbers = #tpu.dot_dimension_numbers<[1], [0], [0], [1], [0, 0, 1, 1], [], []>} : vector<8x32xbf16>, vector<32x32xbf16>, vector<8x32xf32> -> vector<8x32xf32>
    %c0_335 = arith.constant 0 : index
    %c0_336 = arith.constant 0 : index
    %567 = vector.load %arg23[%c0_335, %c0_336] : memref<1x32xf32, #tpu.memory_space<vmem>>, vector<1x32xf32>
    %568 = vector.broadcast %567 : vector<1x32xf32> to vector<8x32xf32>
    %569 = arith.addf %566, %568 : vector<8x32xf32>
    %cst_337 = arith.constant 5.000000e-01 : f32
    %570 = vector.broadcast %cst_337 : f32 to vector<8x32xf32>
    %571 = arith.mulf %570, %569 : vector<8x32xf32>
    %cst_338 = arith.constant 4.471500e-02 : f32
    %572 = vector.broadcast %cst_338 : f32 to vector<8x32xf32>
    %573 = arith.mulf %572, %569 : vector<8x32xf32>
    %574 = arith.mulf %573, %569 : vector<8x32xf32>
    %575 = arith.mulf %574, %569 : vector<8x32xf32>
    %576 = arith.addf %569, %575 : vector<8x32xf32>
    %cst_339 = arith.constant 0.797884583 : f32
    %577 = vector.broadcast %cst_339 : f32 to vector<8x32xf32>
    %578 = arith.mulf %577, %576 : vector<8x32xf32>
    %579 = math.tanh %578 : vector<8x32xf32>
    %cst_340 = arith.constant 1.000000e+00 : f32
    %580 = vector.broadcast %cst_340 : f32 to vector<8x32xf32>
    %581 = arith.addf %580, %579 : vector<8x32xf32>
    %582 = arith.mulf %571, %581 : vector<8x32xf32>
    %c0_341 = arith.constant 0 : index
    %c0_342 = arith.constant 0 : index
    %583 = vector.load %arg24[%c0_341, %c0_342] : memref<1x32xf32, #tpu.memory_space<vmem>>, vector<1x32xf32>
    %c0_343 = arith.constant 0 : index
    %c0_344 = arith.constant 0 : index
    %584 = vector.load %arg25[%c0_343, %c0_344] : memref<1x32xf32, #tpu.memory_space<vmem>>, vector<1x32xf32>
    %cst_345 = arith.constant dense<0.000000e+00> : vector<8xf32>
    %585 = vector.multi_reduction <add>, %582, %cst_345 [1] : vector<8x32xf32> to vector<8xf32>
    %586 = vector.shape_cast %585 : vector<8xf32> to vector<8x1xf32>
    %cst_346 = arith.constant 3.200000e+01 : f32
    %587 = vector.broadcast %cst_346 : f32 to vector<8x1xf32>
    %588 = arith.divf %586, %587 : vector<8x1xf32>
    %589 = arith.mulf %582, %582 : vector<8x32xf32>
    %cst_347 = arith.constant dense<0.000000e+00> : vector<8xf32>
    %590 = vector.multi_reduction <add>, %589, %cst_347 [1] : vector<8x32xf32> to vector<8xf32>
    %591 = vector.shape_cast %590 : vector<8xf32> to vector<8x1xf32>
    %cst_348 = arith.constant 3.200000e+01 : f32
    %592 = vector.broadcast %cst_348 : f32 to vector<8x1xf32>
    %593 = arith.divf %591, %592 : vector<8x1xf32>
    %594 = arith.mulf %588, %588 : vector<8x1xf32>
    %595 = arith.subf %593, %594 : vector<8x1xf32>
    %cst_349 = arith.constant 0.000000e+00 : f32
    %596 = vector.broadcast %cst_349 : f32 to vector<8x1xf32>
    %597 = arith.maximumf %595, %596 : vector<8x1xf32>
    %598 = vector.broadcast %588 : vector<8x1xf32> to vector<8x32xf32>
    %599 = arith.subf %582, %598 : vector<8x32xf32>
    %cst_350 = arith.constant 9.99999996E-13 : f32
    %600 = vector.broadcast %cst_350 : f32 to vector<8x1xf32>
    %601 = arith.addf %597, %600 : vector<8x1xf32>
    %602 = math.rsqrt %601 : vector<8x1xf32>
    %603 = vector.broadcast %602 : vector<8x1xf32> to vector<8x32xf32>
    %604 = arith.mulf %599, %603 : vector<8x32xf32>
    %605 = vector.broadcast %583 : vector<1x32xf32> to vector<8x32xf32>
    %606 = arith.mulf %604, %605 : vector<8x32xf32>
    %607 = vector.broadcast %584 : vector<1x32xf32> to vector<8x32xf32>
    %608 = arith.addf %606, %607 : vector<8x32xf32>
    %609 = arith.truncf %608 : vector<8x32xf32> to vector<8x32xbf16>
    %c0_351 = arith.constant 0 : index
    %c0_352 = arith.constant 0 : index
    %610 = vector.load %arg26[%c0_351, %c0_352] : memref<32x128xbf16, #tpu.memory_space<vmem>>, vector<32x128xbf16>
    %cst_353 = arith.constant dense<0.000000e+00> : vector<8x128xf32>
    %611 = tpu.matmul %609, %610, %cst_353 {dimension_numbers = #tpu.dot_dimension_numbers<[1], [0], [0], [1], [0, 0, 1, 1], [], []>} : vector<8x32xbf16>, vector<32x128xbf16>, vector<8x128xf32> -> vector<8x128xf32>
    %c0_354 = arith.constant 0 : index
    %c0_355 = arith.constant 0 : index
    %612 = vector.load %arg27[%c0_354, %c0_355] : memref<1x128xf32, #tpu.memory_space<vmem>>, vector<1x128xf32>
    %613 = vector.broadcast %612 : vector<1x128xf32> to vector<8x128xf32>
    %614 = arith.addf %611, %613 : vector<8x128xf32>
    %c0_356 = arith.constant 0 : index
    %c0_357 = arith.constant 0 : index
    %615 = vector.load %arg28[%c0_356, %c0_357] : memref<8x128xf32, #tpu.memory_space<vmem>>, vector<8x128xf32>
    tpu.vector_store %arg28[%c0_356, %c0_357], %614 {strides = array<i32>} : memref<8x128xf32, #tpu.memory_space<vmem>>, vector<8x128xf32>,
    return
  }
  func.func @transform_0(%arg0: i32, %arg1: memref<8xi32, #tpu.memory_space<smem>>) -> (i32, i32) {
    %c0_i32 = arith.constant 0 : i32
    %c0_i32_0 = arith.constant 0 : i32
    return %arg0, %c0_i32 : i32, i32
  }
  func.func @transform_1(%arg0: i32, %arg1: memref<8xi32, #tpu.memory_space<smem>>) -> (i32, i32, i32) {
    %c0_i32 = arith.constant 0 : i32
    %c0_i32_0 = arith.constant 0 : i32
    %c0_i32_1 = arith.constant 0 : i32
    return %arg0, %c0_i32, %c0_i32_0 : i32, i32, i32
  }
  func.func @transform_2(%arg0: i32, %arg1: memref<8xi32, #tpu.memory_space<smem>>) -> (i32, i32) {
    %c0_i32 = arith.constant 0 : i32
    %c0_i32_0 = arith.constant 0 : i32
    %c0_i32_1 = arith.constant 0 : i32
    return %c0_i32, %c0_i32_0 : i32, i32
  }
  func.func @transform_3(%arg0: i32, %arg1: memref<8xi32, #tpu.memory_space<smem>>) -> (i32, i32) {
    %c0_i32 = arith.constant 0 : i32
    %c0_i32_0 = arith.constant 0 : i32
    %c0_i32_1 = arith.constant 0 : i32
    return %c0_i32, %c0_i32_0 : i32, i32
  }
  func.func @transform_4(%arg0: i32, %arg1: memref<8xi32, #tpu.memory_space<smem>>) -> (i32, i32, i32, i32) {
    %c0_i32 = arith.constant 0 : i32
    %c0_i32_0 = arith.constant 0 : i32
    %c0_i32_1 = arith.constant 0 : i32
    %c0_i32_2 = arith.constant 0 : i32
    %c0_i32_3 = arith.constant 0 : i32
    return %c0_i32, %c0_i32_0, %c0_i32_1, %c0_i32_2 : i32, i32, i32, i32
  }
  func.func @transform_5(%arg0: i32, %arg1: memref<8xi32, #tpu.memory_space<smem>>) -> (i32, i32, i32, i32) {
    %c0_i32 = arith.constant 0 : i32
    %c0_i32_0 = arith.constant 0 : i32
    %c0_i32_1 = arith.constant 0 : i32
    %c0_i32_2 = arith.constant 0 : i32
    %c0_i32_3 = arith.constant 0 : i32
    return %c0_i32, %c0_i32_0, %c0_i32_1, %c0_i32_2 : i32, i32, i32, i32
  }
  func.func @transform_6(%arg0: i32, %arg1: memref<8xi32, #tpu.memory_space<smem>>) -> (i32, i32, i32, i32) {
    %c0_i32 = arith.constant 0 : i32
    %c0_i32_0 = arith.constant 0 : i32
    %c0_i32_1 = arith.constant 0 : i32
    %c0_i32_2 = arith.constant 0 : i32
    %c0_i32_3 = arith.constant 0 : i32
    return %c0_i32, %c0_i32_0, %c0_i32_1, %c0_i32_2 : i32, i32, i32, i32
  }
  func.func @transform_7(%arg0: i32, %arg1: memref<8xi32, #tpu.memory_space<smem>>) -> (i32, i32, i32, i32) {
    %c0_i32 = arith.constant 0 : i32
    %c0_i32_0 = arith.constant 0 : i32
    %c0_i32_1 = arith.constant 0 : i32
    %c0_i32_2 = arith.constant 0 : i32
    %c0_i32_3 = arith.constant 0 : i32
    return %c0_i32, %c0_i32_0, %c0_i32_1, %c0_i32_2 : i32, i32, i32, i32
  }
  func.func @transform_8(%arg0: i32, %arg1: memref<8xi32, #tpu.memory_space<smem>>) -> (i32, i32, i32, i32) {
    %c0_i32 = arith.constant 0 : i32
    %c0_i32_0 = arith.constant 0 : i32
    %c0_i32_1 = arith.constant 0 : i32
    %c0_i32_2 = arith.constant 0 : i32
    %c0_i32_3 = arith.constant 0 : i32
    return %c0_i32, %c0_i32_0, %c0_i32_1, %c0_i32_2 : i32, i32, i32, i32
  }
  func.func @transform_9(%arg0: i32, %arg1: memref<8xi32, #tpu.memory_space<smem>>) -> (i32, i32, i32, i32) {
    %c0_i32 = arith.constant 0 : i32
    %c0_i32_0 = arith.constant 0 : i32
    %c0_i32_1 = arith.constant 0 : i32
    %c0_i32_2 = arith.constant 0 : i32
    %c0_i32_3 = arith.constant 0 : i32
    return %c0_i32, %c0_i32_0, %c0_i32_1, %c0_i32_2 : i32, i32, i32, i32
  }
  func.func @transform_10(%arg0: i32, %arg1: memref<8xi32, #tpu.memory_space<smem>>) -> (i32, i32, i32, i32) {
    %c0_i32 = arith.constant 0 : i32
    %c0_i32_0 = arith.constant 0 : i32
    %c0_i32_1 = arith.constant 0 : i32
    %c0_i32_2 = arith.constant 0 : i32
    %c0_i32_3 = arith.constant 0 : i32
    return %c0_i32, %c0_i32_0, %c0_i32_1, %c0_i32_2 : i32, i32, i32, i32
  }
  func.func @transform_11(%arg0: i32, %arg1: memref<8xi32, #tpu.memory_space<smem>>) -> (i32, i32, i32) {
    %c0_i32 = arith.constant 0 : i32
    %c0_i32_0 = arith.constant 0 : i32
    %c0_i32_1 = arith.constant 0 : i32
    %c0_i32_2 = arith.constant 0 : i32
    return %c0_i32, %c0_i32_0, %c0_i32_1 : i32, i32, i32
  }
  func.func @transform_12(%arg0: i32, %arg1: memref<8xi32, #tpu.memory_space<smem>>) -> (i32, i32, i32) {
    %c0_i32 = arith.constant 0 : i32
    %c0_i32_0 = arith.constant 0 : i32
    %c0_i32_1 = arith.constant 0 : i32
    %c0_i32_2 = arith.constant 0 : i32
    return %c0_i32, %c0_i32_0, %c0_i32_1 : i32, i32, i32
  }
  func.func @transform_13(%arg0: i32, %arg1: memref<8xi32, #tpu.memory_space<smem>>) -> (i32, i32, i32) {
    %c0_i32 = arith.constant 0 : i32
    %c0_i32_0 = arith.constant 0 : i32
    %c0_i32_1 = arith.constant 0 : i32
    %c0_i32_2 = arith.constant 0 : i32
    return %c0_i32, %c0_i32_0, %c0_i32_1 : i32, i32, i32
  }
  func.func @transform_14(%arg0: i32, %arg1: memref<8xi32, #tpu.memory_space<smem>>) -> (i32, i32, i32) {
    %c0_i32 = arith.constant 0 : i32
    %c0_i32_0 = arith.constant 0 : i32
    %c0_i32_1 = arith.constant 0 : i32
    %c0_i32_2 = arith.constant 0 : i32
    return %c0_i32, %c0_i32_0, %c0_i32_1 : i32, i32, i32
  }
  func.func @transform_15(%arg0: i32, %arg1: memref<8xi32, #tpu.memory_space<smem>>) -> (i32, i32, i32) {
    %c0_i32 = arith.constant 0 : i32
    %c0_i32_0 = arith.constant 0 : i32
    %c0_i32_1 = arith.constant 0 : i32
    %c0_i32_2 = arith.constant 0 : i32
    return %c0_i32, %c0_i32_0, %c0_i32_1 : i32, i32, i32
  }
  func.func @transform_16(%arg0: i32, %arg1: memref<8xi32, #tpu.memory_space<smem>>) -> (i32, i32, i32) {
    %c0_i32 = arith.constant 0 : i32
    %c0_i32_0 = arith.constant 0 : i32
    %c0_i32_1 = arith.constant 0 : i32
    %c0_i32_2 = arith.constant 0 : i32
    return %c0_i32, %c0_i32_0, %c0_i32_1 : i32, i32, i32
  }
  func.func @transform_17(%arg0: i32, %arg1: memref<8xi32, #tpu.memory_space<smem>>) -> (i32, i32, i32) {
    %c0_i32 = arith.constant 0 : i32
    %c0_i32_0 = arith.constant 0 : i32
    %c0_i32_1 = arith.constant 0 : i32
    %c0_i32_2 = arith.constant 0 : i32
    return %c0_i32, %c0_i32_0, %c0_i32_1 : i32, i32, i32
  }
  func.func @transform_18(%arg0: i32, %arg1: memref<8xi32, #tpu.memory_space<smem>>) -> (i32, i32, i32) {
    %c0_i32 = arith.constant 0 : i32
    %c0_i32_0 = arith.constant 0 : i32
    %c0_i32_1 = arith.constant 0 : i32
    %c0_i32_2 = arith.constant 0 : i32
    return %c0_i32, %c0_i32_0, %c0_i32_1 : i32, i32, i32
  }
  func.func @transform_19(%arg0: i32, %arg1: memref<8xi32, #tpu.memory_space<smem>>) -> (i32, i32, i32) {
    %c0_i32 = arith.constant 0 : i32
    %c0_i32_0 = arith.constant 0 : i32
    %c0_i32_1 = arith.constant 0 : i32
    %c0_i32_2 = arith.constant 0 : i32
    return %c0_i32, %c0_i32_0, %c0_i32_1 : i32, i32, i32
  }
  func.func @transform_20(%arg0: i32, %arg1: memref<8xi32, #tpu.memory_space<smem>>) -> (i32, i32) {
    %c0_i32 = arith.constant 0 : i32
    %c0_i32_0 = arith.constant 0 : i32
    %c0_i32_1 = arith.constant 0 : i32
    return %c0_i32, %c0_i32_0 : i32, i32
  }
  func.func @transform_21(%arg0: i32, %arg1: memref<8xi32, #tpu.memory_space<smem>>) -> (i32, i32) {
    %c0_i32 = arith.constant 0 : i32
    %c0_i32_0 = arith.constant 0 : i32
    %c0_i32_1 = arith.constant 0 : i32
    return %c0_i32, %c0_i32_0 : i32, i32
  }
  func.func @transform_22(%arg0: i32, %arg1: memref<8xi32, #tpu.memory_space<smem>>) -> (i32, i32) {
    %c0_i32 = arith.constant 0 : i32
    %c0_i32_0 = arith.constant 0 : i32
    %c0_i32_1 = arith.constant 0 : i32
    return %c0_i32, %c0_i32_0 : i32, i32
  }
  func.func @transform_23(%arg0: i32, %arg1: memref<8xi32, #tpu.memory_space<smem>>) -> (i32, i32) {
    %c0_i32 = arith.constant 0 : i32
    %c0_i32_0 = arith.constant 0 : i32
    %c0_i32_1 = arith.constant 0 : i32
    return %c0_i32, %c0_i32_0 : i32, i32
  }
  func.func @transform_24(%arg0: i32, %arg1: memref<8xi32, #tpu.memory_space<smem>>) -> (i32, i32) {
    %c0_i32 = arith.constant 0 : i32
    %c0_i32_0 = arith.constant 0 : i32
    %c0_i32_1 = arith.constant 0 : i32
    return %c0_i32, %c0_i32_0 : i32, i32
  }
  func.func @transform_25(%arg0: i32, %arg1: memref<8xi32, #tpu.memory_space<smem>>) -> (i32, i32) {
    %c0_i32 = arith.constant 0 : i32
    %c0_i32_0 = arith.constant 0 : i32
    %c0_i32_1 = arith.constant 0 : i32
    return %c0_i32, %c0_i32_0 : i32, i32
  }
  func.func @transform_26(%arg0: i32, %arg1: memref<8xi32, #tpu.memory_space<smem>>) -> (i32, i32) {
    %c0_i32 = arith.constant 0 : i32
    %c0_i32_0 = arith.constant 0 : i32
    return %arg0, %c0_i32 : i32, i32
  }
}

</mosaic_0001>

<llo_original>
// kernel: predict_fn.1
$region0: #{predict_fn.1}
  #allocation0 [shape = 'u32[]', space=smem, size = 0x4, offset = 0x4, fixed_abs, tag = 'smem constant byte address 0x4 - core index']
  #allocation1 [shape = 'u32[144,128]{1,0:T(1,128)}', space=vmem, size = 0x12000, scoped, tag = 'internal scratch']
  #allocation2 [shape = 'f32[32,32]{1,0:T(8,128)}', space=vmem, size = 0x4000, scoped, tag = 'scratch operand']
  #allocation3 [shape = 'f32[8,32]{1,0:T(8,128)}', space=vmem, size = 0x1000, scoped, tag = 'scratch operand']
  #allocation4 [shape = 's32[1]{0}', space=sflag, size = 0x4, scoped, tag = 'scoped memory for predict_fn.1']
  #allocation5 [shape = 'u8[512]{0}', space=smem, size = 0x200, scoped, tag = 'prefetched SMEM operand 0']
  %s0 = inlined_call_operand.vmem [shape: s32[8], index: 0, kind: input, shape index: {}]
  %s1 = inlined_call_operand.vmem [shape: f32[32,32], index: 1, kind: input, shape index: {}]
  %s2 = inlined_call_operand.vmem [shape: f32[2,1,16], index: 2, kind: input, shape index: {}]
  %s3 = inlined_call_operand.vmem [shape: f32[1,32], index: 3, kind: input, shape index: {}]
  %s4 = inlined_call_operand.vmem [shape: f32[1,32], index: 4, kind: input, shape index: {}]
  %s5 = inlined_call_operand.vmem [shape: bf16[2,2,32,16], index: 5, kind: input, shape index: {}]
  %s6 = inlined_call_operand.vmem [shape: bf16[2,2,32,16], index: 6, kind: input, shape index: {}]
  %s7 = inlined_call_operand.vmem [shape: bf16[2,2,32,16], index: 7, kind: input, shape index: {}]
  %s8 = inlined_call_operand.vmem [shape: f32[2,2,1,16], index: 8, kind: input, shape index: {}]
  %s9 = inlined_call_operand.vmem [shape: f32[2,2,1,16], index: 9, kind: input, shape index: {}]
  %s10 = inlined_call_operand.vmem [shape: f32[2,2,1,16], index: 10, kind: input, shape index: {}]
  %s11 = inlined_call_operand.vmem [shape: bf16[2,2,16,32], index: 11, kind: input, shape index: {}]
  %s12 = inlined_call_operand.vmem [shape: f32[2,1,32], index: 12, kind: input, shape index: {}]
  %s13 = inlined_call_operand.vmem [shape: f32[2,1,32], index: 13, kind: input, shape index: {}]
  %s14 = inlined_call_operand.vmem [shape: f32[2,1,32], index: 14, kind: input, shape index: {}]
  %s15 = inlined_call_operand.vmem [shape: bf16[2,32,64], index: 15, kind: input, shape index: {}]
  %s16 = inlined_call_operand.vmem [shape: f32[2,1,64], index: 16, kind: input, shape index: {}]
  %s17 = inlined_call_operand.vmem [shape: bf16[2,64,32], index: 17, kind: input, shape index: {}]
  %s18 = inlined_call_operand.vmem [shape: f32[2,1,32], index: 18, kind: input, shape index: {}]
  %s19 = inlined_call_operand.vmem [shape: f32[2,1,32], index: 19, kind: input, shape index: {}]
  %s20 = inlined_call_operand.vmem [shape: f32[2,1,32], index: 20, kind: input, shape index: {}]
  %s21 = inlined_call_operand.vmem [shape: bf16[32,32], index: 21, kind: input, shape index: {}]
  %s22 = inlined_call_operand.vmem [shape: f32[1,32], index: 22, kind: input, shape index: {}]
  %s23 = inlined_call_operand.vmem [shape: f32[1,32], index: 23, kind: input, shape index: {}]
  %s24 = inlined_call_operand.vmem [shape: f32[1,32], index: 24, kind: input, shape index: {}]
  %s25 = inlined_call_operand.vmem [shape: bf16[32,128], index: 25, kind: input, shape index: {}]
  %s26 = inlined_call_operand.vmem [shape: f32[1,128], index: 26, kind: input, shape index: {}]
  %s27 = inlined_call_operand.vmem [shape: f32[8,128], index: 27, kind: output, shape index: {}]
  %s28 = sld [smem:[#allocation0]]
  $region114: #{predict_fn.1} parent=0
    _
  %s30 = ssub.s32 1, %s28
  %s31 = scalar_select 0, %s30, %s28
  %s32 = sshll.u32 %s0, 4
  %s33 = int_to_ptr.vmem [resolvable:$true] %s32
  %35 = dma.vmem_to_smem %s33, 16, [#allocation5], [#allocation4]
  %36 = dma.done [#allocation4], 16
  %37 = sfence
  // Predicated region
  $region2: #{predict_fn.1} parent=0 // pred_check
    _
  $region3: #{predict_fn.1} parent=0 // pred_check_branch
    %39 = sbr.rel (0) target = $region5
  $region4: #{predict_fn.1} parent=0 // pred_region
    _
  $region5: #{predict_fn.1} parent=0 // pred_fallthru
    _
  // Predicated region
  $region6: #{predict_fn.1} parent=0 // pred_check
    _
  $region7: #{predict_fn.1} parent=0 // pred_check_branch
    %41 = sbr.rel (0) target = $region9
  $region8: #{predict_fn.1} parent=0 // pred_region
    _
  $region9: #{predict_fn.1} parent=0 // pred_fallthru
    _
  // Predicated region
  $region10: #{predict_fn.1} parent=0 // pred_check
    _
  $region11: #{predict_fn.1} parent=0 // pred_check_branch
    %43 = sbr.rel (0) target = $region13
  $region12: #{predict_fn.1} parent=0 // pred_region
    _
  $region13: #{predict_fn.1} parent=0 // pred_fallthru
    _
  // Predicated region
  $region14: #{predict_fn.1} parent=0 // pred_check
    _
  $region15: #{predict_fn.1} parent=0 // pred_check_branch
    %45 = sbr.rel (0) target = $region17
  $region16: #{predict_fn.1} parent=0 // pred_region
    _
  $region17: #{predict_fn.1} parent=0 // pred_fallthru
    _
  // Predicated region
  $region18: #{predict_fn.1} parent=0 // pred_check
    _
  $region19: #{predict_fn.1} parent=0 // pred_check_branch
    %47 = sbr.rel (0) target = $region21
  $region20: #{predict_fn.1} parent=0 // pred_region
    _
  $region21: #{predict_fn.1} parent=0 // pred_fallthru
    _
  // Predicated region
  $region22: #{predict_fn.1} parent=0 // pred_check
    _
  $region23: #{predict_fn.1} parent=0 // pred_check_branch
    %49 = sbr.rel (0) target = $region25
  $region24: #{predict_fn.1} parent=0 // pred_region
    _
  $region25: #{predict_fn.1} parent=0 // pred_fallthru
    _
  // Predicated region
  $region26: #{predict_fn.1} parent=0 // pred_check
    _
  $region27: #{predict_fn.1} parent=0 // pred_check_branch
    %51 = sbr.rel (0) target = $region29
  $region28: #{predict_fn.1} parent=0 // pred_region
    _
  $region29: #{predict_fn.1} parent=0 // pred_fallthru
    _
  // Predicated region
  $region30: #{predict_fn.1} parent=0 // pred_check
    _
  $region31: #{predict_fn.1} parent=0 // pred_check_branch
    %53 = sbr.rel (0) target = $region33
  $region32: #{predict_fn.1} parent=0 // pred_region
    _
  $region33: #{predict_fn.1} parent=0 // pred_fallthru
    _
  // Predicated region
  $region34: #{predict_fn.1} parent=0 // pred_check
    _
  $region35: #{predict_fn.1} parent=0 // pred_check_branch
    %55 = sbr.rel (0) target = $region37
  $region36: #{predict_fn.1} parent=0 // pred_region
    _
  $region37: #{predict_fn.1} parent=0 // pred_fallthru
    _
  // Predicated region
  $region38: #{predict_fn.1} parent=0 // pred_check
    _
  $region39: #{predict_fn.1} parent=0 // pred_check_branch
    %57 = sbr.rel (0) target = $region41
  $region40: #{predict_fn.1} parent=0 // pred_region
    _
  $region41: #{predict_fn.1} parent=0 // pred_fallthru
    _
  // Predicated region
  $region42: #{predict_fn.1} parent=0 // pred_check
    _
  $region43: #{predict_fn.1} parent=0 // pred_check_branch
    %59 = sbr.rel (0) target = $region45
  $region44: #{predict_fn.1} parent=0 // pred_region
    _
  $region45: #{predict_fn.1} parent=0 // pred_fallthru
    _
  // Predicated region
  $region46: #{predict_fn.1} parent=0 // pred_check
    _
  $region47: #{predict_fn.1} parent=0 // pred_check_branch
    %61 = sbr.rel (0) target = $region49
  $region48: #{predict_fn.1} parent=0 // pred_region
    _
  $region49: #{predict_fn.1} parent=0 // pred_fallthru
    _
  // Predicated region
  $region50: #{predict_fn.1} parent=0 // pred_check
    _
  $region51: #{predict_fn.1} parent=0 // pred_check_branch
    %63 = sbr.rel (0) target = $region53
  $region52: #{predict_fn.1} parent=0 // pred_region
    _
  $region53: #{predict_fn.1} parent=0 // pred_fallthru
    _
  // Predicated region
  $region54: #{predict_fn.1} parent=0 // pred_check
    _
  $region55: #{predict_fn.1} parent=0 // pred_check_branch
    %65 = sbr.rel (0) target = $region57
  $region56: #{predict_fn.1} parent=0 // pred_region
    _
  $region57: #{predict_fn.1} parent=0 // pred_fallthru
    _
  // Predicated region
  $region58: #{predict_fn.1} parent=0 // pred_check
    _
  $region59: #{predict_fn.1} parent=0 // pred_check_branch
    %67 = sbr.rel (0) target = $region61
  $region60: #{predict_fn.1} parent=0 // pred_region
    _
  $region61: #{predict_fn.1} parent=0 // pred_fallthru
    _
  // Predicated region
  $region62: #{predict_fn.1} parent=0 // pred_check
    _
  $region63: #{predict_fn.1} parent=0 // pred_check_branch
    %69 = sbr.rel (0) target = $region65
  $region64: #{predict_fn.1} parent=0 // pred_region
    _
  $region65: #{predict_fn.1} parent=0 // pred_fallthru
    _
  // Predicated region
  $region66: #{predict_fn.1} parent=0 // pred_check
    _
  $region67: #{predict_fn.1} parent=0 // pred_check_branch
    %71 = sbr.rel (0) target = $region69
  $region68: #{predict_fn.1} parent=0 // pred_region
    _
  $region69: #{predict_fn.1} parent=0 // pred_fallthru
    _
  // Predicated region
  $region70: #{predict_fn.1} parent=0 // pred_check
    _
  $region71: #{predict_fn.1} parent=0 // pred_check_branch
    %73 = sbr.rel (0) target = $region73
  $region72: #{predict_fn.1} parent=0 // pred_region
    _
  $region73: #{predict_fn.1} parent=0 // pred_fallthru
    _
  // Predicated region
  $region74: #{predict_fn.1} parent=0 // pred_check
    _
  $region75: #{predict_fn.1} parent=0 // pred_check_branch
    %75 = sbr.rel (0) target = $region77
  $region76: #{predict_fn.1} parent=0 // pred_region
    _
  $region77: #{predict_fn.1} parent=0 // pred_fallthru
    _
  // Predicated region
  $region78: #{predict_fn.1} parent=0 // pred_check
    _
  $region79: #{predict_fn.1} parent=0 // pred_check_branch
    %77 = sbr.rel (0) target = $region81
  $region80: #{predict_fn.1} parent=0 // pred_region
    _
  $region81: #{predict_fn.1} parent=0 // pred_fallthru
    _
  // Predicated region
  $region82: #{predict_fn.1} parent=0 // pred_check
    _
  $region83: #{predict_fn.1} parent=0 // pred_check_branch
    %79 = sbr.rel (0) target = $region85
  $region84: #{predict_fn.1} parent=0 // pred_region
    _
  $region85: #{predict_fn.1} parent=0 // pred_fallthru
    _
  // Predicated region
  $region86: #{predict_fn.1} parent=0 // pred_check
    _
  $region87: #{predict_fn.1} parent=0 // pred_check_branch
    %81 = sbr.rel (0) target = $region89
  $region88: #{predict_fn.1} parent=0 // pred_region
    _
  $region89: #{predict_fn.1} parent=0 // pred_fallthru
    _
  // Predicated region
  $region90: #{predict_fn.1} parent=0 // pred_check
    _
  $region91: #{predict_fn.1} parent=0 // pred_check_branch
    %83 = sbr.rel (0) target = $region93
  $region92: #{predict_fn.1} parent=0 // pred_region
    _
  $region93: #{predict_fn.1} parent=0 // pred_fallthru
    _
  // Predicated region
  $region94: #{predict_fn.1} parent=0 // pred_check
    _
  $region95: #{predict_fn.1} parent=0 // pred_check_branch
    %85 = sbr.rel (0) target = $region97
  $region96: #{predict_fn.1} parent=0 // pred_region
    _
  $region97: #{predict_fn.1} parent=0 // pred_fallthru
    _
  // Predicated region
  $region98: #{predict_fn.1} parent=0 // pred_check
    _
  $region99: #{predict_fn.1} parent=0 // pred_check_branch
    %87 = sbr.rel (0) target = $region101
  $region100: #{predict_fn.1} parent=0 // pred_region
    _
  $region101: #{predict_fn.1} parent=0 // pred_fallthru
    _
  // Predicated region
  $region102: #{predict_fn.1} parent=0 // pred_check
    _
  $region103: #{predict_fn.1} parent=0 // pred_check_branch
    %89 = sbr.rel (0) target = $region105
  $region104: #{predict_fn.1} parent=0 // pred_region
    _
  $region105: #{predict_fn.1} parent=0 // pred_fallthru
    _
  %v91 = vld [vmem:[%s1] sm:$0xff]
  %v92 = vld [vmem:[%s1 + $0x8] sm:$0xff]
  %v93 = vld [vmem:[%s1 + $0x10] sm:$0xff]
  %v94 = vld [vmem:[%s1 + $0x18] sm:$0xff]
  %v95 = vld [vmem:[%s3] sm:$0x1]
  %v96 = vld [vmem:[%s4] sm:$0x1]
  %vm97 = vcmask 261120
  %v98 = vsel %vm97, %v91, 0.0
  %99 = vadd.xlane.f32.xlu0 %v98
  %v100 = vpop.xlane.xlu0 %99
  %v101 = vsel %vm97, %v92, 0.0
  %102 = vadd.xlane.f32.xlu0 %v101
  %v103 = vpop.xlane.xlu0 %102
  %v104 = vsel %vm97, %v93, 0.0
  %105 = vadd.xlane.f32.xlu0 %v104
  %v106 = vpop.xlane.xlu0 %105
  %v107 = vsel %vm97, %v94, 0.0
  %108 = vadd.xlane.f32.xlu0 %v107
  %v109 = vpop.xlane.xlu0 %108
  %v110 = vrcp.pop 32.0
  %v111 = vmul.f32 %v100, %v110
  %v112 = vmul.f32 %v103, %v110
  %v113 = vmul.f32 %v106, %v110
  %v114 = vmul.f32 %v109, %v110
  %v115 = vmul.f32 %v91, %v91
  %v116 = vmul.f32 %v92, %v92
  %v117 = vmul.f32 %v93, %v93
  %v118 = vmul.f32 %v94, %v94
  %v119 = vsel %vm97, %v115, 0.0
  %120 = vadd.xlane.f32.xlu0 %v119
  %v121 = vpop.xlane.xlu0 %120
  %v122 = vsel %vm97, %v116, 0.0
  %123 = vadd.xlane.f32.xlu0 %v122
  %v124 = vpop.xlane.xlu0 %123
  %v125 = vsel %vm97, %v117, 0.0
  %126 = vadd.xlane.f32.xlu0 %v125
  %v127 = vpop.xlane.xlu0 %126
  %v128 = vsel %vm97, %v118, 0.0
  %129 = vadd.xlane.f32.xlu0 %v128
  %v130 = vpop.xlane.xlu0 %129
  %v131 = vmul.f32 %v121, %v110
  %v132 = vmul.f32 %v124, %v110
  %v133 = vmul.f32 %v127, %v110
  %v134 = vmul.f32 %v130, %v110
  %v135 = vmul.f32 %v111, %v111
  %v136 = vmul.f32 %v112, %v112
  %v137 = vmul.f32 %v113, %v113
  %v138 = vmul.f32 %v114, %v114
  %v139 = vsub.f32 %v131, %v135
  %v140 = vsub.f32 %v132, %v136
  %v141 = vsub.f32 %v133, %v137
  %v142 = vsub.f32 %v134, %v138
  %v143 = vmax.f32 %v139, 0.0
  %v144 = vmax.f32 %v140, 0.0
  %v145 = vmax.f32 %v141, 0.0
  %v146 = vmax.f32 %v142, 0.0
  %v147 = vsub.f32 %v91, %v111
  %v148 = vsub.f32 %v92, %v112
  %v149 = vsub.f32 %v93, %v113
  %v150 = vsub.f32 %v94, %v114
  %v151 = vadd.f32 %v143, 1e-12
  %v152 = vadd.f32 %v144, 1e-12
  %v153 = vadd.f32 %v145, 1e-12
  %v154 = vadd.f32 %v146, 1e-12
  %v155 = vrsqrt.pop %v151
  %v156 = vrsqrt.pop %v152
  %v157 = vrsqrt.pop %v153
  %v158 = vrsqrt.pop %v154
  %v159 = vmul.f32 %v147, %v155
  %v160 = vmul.f32 %v148, %v156
  %v161 = vmul.f32 %v149, %v157
  %v162 = vmul.f32 %v150, %v158
  %v164 = vlaneseq
  %v165 = vshrl.u32 %v164, 7
  %v166 = vsub.s32 0, %v165
  %v167 = vrot.slane %v95, %v166
  %v169 = vmul.f32 %v159, %v167
  %v170 = vmul.f32 %v160, %v167
  %v171 = vmul.f32 %v161, %v167
  %v172 = vmul.f32 %v162, %v167
  %v174 = vlaneseq
  %v175 = vshrl.u32 %v174, 7
  %v176 = vsub.s32 0, %v175
  %v177 = vrot.slane %v96, %v176
  %v179 = vadd.f32 %v169, %v177
  %v180 = vadd.f32 %v170, %v177
  %v181 = vadd.f32 %v171, %v177
  %v182 = vadd.f32 %v172, %v177
  %v183 = vpack.c.bf16 %v180, %v179
  %v184 = vpack.c.bf16 %v182, %v181
  %v185 = vld [vmem:[%s5] sm:$0xf]
  %v186 = vld [vmem:[%s5 + $0x4] sm:$0xf]
  %v187 = vld [vmem:[%s5 + $0x8] sm:$0xf]
  %v188 = vld [vmem:[%s5 + $0xc] sm:$0xf]
  %v189 = vld [vmem:[%s8] sm:$0x1]
  %v191 = vlaneseq
  %v192 = vshrl.u32 %v191, 7
  %v193 = vsub.s32 0, %v192
  %v194 = vrot.slane %v189, %v193
  %v200 = vunpack.c.l.b16 %v185
  %v201 = vunpack.c.l.b16 %v186
  %v202 = vunpack.c.l.b16 %v187
  %v203 = vunpack.c.l.b16 %v188
  %v204 = vpack.c.b16 %v201, %v200
  %v205 = vpack.c.b16 %v203, %v202
  %v209 = vsel %vm97, %v183, 0
  %v212 = vsel %vm97, %v184, 0
  %214 = vmatprep.subr.bf16.mxu0 0
  %215 = vmatpush1.bf16.msra.mxu0 %v204
  %216 = vmatprep.subr.bf16.mxu0 0
  %217 = vmatpush1.bf16.msra.mxu0 %v205
  %218 = vmatprep.subr.bf16.mxu0 0
  %219 = vmatpush1.bf16.msra.mxu0 0
  %220 = vmatprep.subr.bf16.mxu0 0
  %221 = vmatpush1.bf16.msra.mxu0 0
  %222 = vmatprep.subr.bf16.mxu0 0
  %223 = vmatpush1.bf16.msra.mxu0 0
  %224 = vmatprep.subr.bf16.mxu0 0
  %225 = vmatpush1.bf16.msra.mxu0 0
  %226 = vmatprep.subr.bf16.mxu0 0
  %227 = vmatpush1.bf16.msra.mxu0 0
  %228 = vmatprep.subr.bf16.mxu0 0
  %229 = vmatpush1.bf16.msra.mxu0 0
  %230 = vmatprep.subr.bf16.mxu0 0
  %231 = vmatpush1.bf16.msra.mxu0 0
  %232 = vmatprep.subr.bf16.mxu0 0
  %233 = vmatpush1.bf16.msra.mxu0 0
  %234 = vmatprep.subr.bf16.mxu0 0
  %235 = vmatpush1.bf16.msra.mxu0 0
  %236 = vmatprep.subr.bf16.mxu0 0
  %237 = vmatpush1.bf16.msra.mxu0 0
  %238 = vmatprep.subr.bf16.mxu0 0
  %239 = vmatpush1.bf16.msra.mxu0 0
  %240 = vmatprep.subr.bf16.mxu0 0
  %241 = vmatpush1.bf16.msra.mxu0 0
  %242 = vmatprep.subr.bf16.mxu0 0
  %243 = vmatpush1.bf16.msra.mxu0 0
  %244 = vmatprep.subr.bf16.mxu0 0
  %245 = vmatpush1.bf16.msra.mxu0 0
  %246 = vmatprep.mubr.bf16.mxu0 0
  %247 = vmatmul.mubr.bf16.gmra.mrb[0].mxu0 %v209
  %v248 = vpop.f32.mrb[0].mxu0
  %v249 = vadd.f32 %v194, %v248
  %v250 = vpop.f32.mrb[0].mxu0
  %v251 = vpop.f32.mrb[0].mxu0
  %v252 = vadd.f32 %v194, %v251
  %v253 = vpop.f32.mrb[0].mxu0
  %254 = vmatprep.mubr.bf16.mxu0 0
  %255 = vmatmul.mubr.bf16.gmra.mrb[0].mxu0 %v212
  %v256 = vpop.f32.mrb[0].mxu0
  %v257 = vadd.f32 %v194, %v256
  %v258 = vpop.f32.mrb[0].mxu0
  %v259 = vpop.f32.mrb[0].mxu0
  %v260 = vadd.f32 %v194, %v259
  %v261 = vpop.f32.mrb[0].mxu0
  %262 = vdwg.mxu0
  %v263 = vld [vmem:[%s6] sm:$0xf]
  %v264 = vld [vmem:[%s6 + $0x4] sm:$0xf]
  %v265 = vld [vmem:[%s6 + $0x8] sm:$0xf]
  %v266 = vld [vmem:[%s6 + $0xc] sm:$0xf]
  %v267 = vld [vmem:[%s9] sm:$0x1]
  %v269 = vlaneseq
  %v270 = vshrl.u32 %v269, 7
  %v271 = vsub.s32 0, %v270
  %v272 = vrot.slane %v267, %v271
  %v278 = vunpack.c.l.b16 %v263
  %v279 = vunpack.c.l.b16 %v264
  %v280 = vunpack.c.l.b16 %v265
  %v281 = vunpack.c.l.b16 %v266
  %v282 = vpack.c.b16 %v279, %v278
  %v283 = vpack.c.b16 %v281, %v280
  %286 = vmatprep.subr.bf16.mxu0 0
  %287 = vmatpush1.bf16.msra.mxu0 %v282
  %288 = vmatprep.subr.bf16.mxu0 0
  %289 = vmatpush1.bf16.msra.mxu0 %v283
  %290 = vmatprep.subr.bf16.mxu0 0
  %291 = vmatpush1.bf16.msra.mxu0 0
  %292 = vmatprep.subr.bf16.mxu0 0
  %293 = vmatpush1.bf16.msra.mxu0 0
  %294 = vmatprep.subr.bf16.mxu0 0
  %295 = vmatpush1.bf16.msra.mxu0 0
  %296 = vmatprep.subr.bf16.mxu0 0
  %297 = vmatpush1.bf16.msra.mxu0 0
  %298 = vmatprep.subr.bf16.mxu0 0
  %299 = vmatpush1.bf16.msra.mxu0 0
  %300 = vmatprep.subr.bf16.mxu0 0
  %301 = vmatpush1.bf16.msra.mxu0 0
  %302 = vmatprep.subr.bf16.mxu0 0
  %303 = vmatpush1.bf16.msra.mxu0 0
  %304 = vmatprep.subr.bf16.mxu0 0
  %305 = vmatpush1.bf16.msra.mxu0 0
  %306 = vmatprep.subr.bf16.mxu0 0
  %307 = vmatpush1.bf16.msra.mxu0 0
  %308 = vmatprep.subr.bf16.mxu0 0
  %309 = vmatpush1.bf16.msra.mxu0 0
  %310 = vmatprep.subr.bf16.mxu0 0
  %311 = vmatpush1.bf16.msra.mxu0 0
  %312 = vmatprep.subr.bf16.mxu0 0
  %313 = vmatpush1.bf16.msra.mxu0 0
  %314 = vmatprep.subr.bf16.mxu0 0
  %315 = vmatpush1.bf16.msra.mxu0 0
  %316 = vmatprep.subr.bf16.mxu0 0
  %317 = vmatpush1.bf16.msra.mxu0 0
  %318 = vmatprep.mubr.bf16.mxu0 0
  %319 = vmatmul.mubr.bf16.gmra.mrb[0].mxu0 %v209
  %v320 = vpop.f32.mrb[0].mxu0
  %v321 = vadd.f32 %v272, %v320
  %v322 = vpop.f32.mrb[0].mxu0
  %v323 = vpop.f32.mrb[0].mxu0
  %v324 = vadd.f32 %v272, %v323
  %v325 = vpop.f32.mrb[0].mxu0
  %326 = vmatprep.mubr.bf16.mxu0 0
  %327 = vmatmul.mubr.bf16.gmra.mrb[0].mxu0 %v212
  %v328 = vpop.f32.mrb[0].mxu0
  %v329 = vadd.f32 %v272, %v328
  %v330 = vpop.f32.mrb[0].mxu0
  %v331 = vpop.f32.mrb[0].mxu0
  %v332 = vadd.f32 %v272, %v331
  %v333 = vpop.f32.mrb[0].mxu0
  %334 = vdwg.mxu0
  %v335 = vld [vmem:[%s7] sm:$0xf]
  %v336 = vld [vmem:[%s7 + $0x4] sm:$0xf]
  %v337 = vld [vmem:[%s7 + $0x8] sm:$0xf]
  %v338 = vld [vmem:[%s7 + $0xc] sm:$0xf]
  %v339 = vld [vmem:[%s10] sm:$0x1]
  %v341 = vlaneseq
  %v342 = vshrl.u32 %v341, 7
  %v343 = vsub.s32 0, %v342
  %v344 = vrot.slane %v339, %v343
  %v350 = vunpack.c.l.b16 %v335
  %v351 = vunpack.c.l.b16 %v336
  %v352 = vunpack.c.l.b16 %v337
  %v353 = vunpack.c.l.b16 %v338
  %v354 = vpack.c.b16 %v351, %v350
  %v355 = vpack.c.b16 %v353, %v352
  %358 = vmatprep.subr.bf16.mxu0 0
  %359 = vmatpush1.bf16.msra.mxu0 %v354
  %360 = vmatprep.subr.bf16.mxu0 0
  %361 = vmatpush1.bf16.msra.mxu0 %v355
  %362 = vmatprep.subr.bf16.mxu0 0
  %363 = vmatpush1.bf16.msra.mxu0 0
  %364 = vmatprep.subr.bf16.mxu0 0
  %365 = vmatpush1.bf16.msra.mxu0 0
  %366 = vmatprep.subr.bf16.mxu0 0
  %367 = vmatpush1.bf16.msra.mxu0 0
  %368 = vmatprep.subr.bf16.mxu0 0
  %369 = vmatpush1.bf16.msra.mxu0 0
  %370 = vmatprep.subr.bf16.mxu0 0
  %371 = vmatpush1.bf16.msra.mxu0 0
  %372 = vmatprep.subr.bf16.mxu0 0
  %373 = vmatpush1.bf16.msra.mxu0 0
  %374 = vmatprep.subr.bf16.mxu0 0
  %375 = vmatpush1.bf16.msra.mxu0 0
  %376 = vmatprep.subr.bf16.mxu0 0
  %377 = vmatpush1.bf16.msra.mxu0 0
  %378 = vmatprep.subr.bf16.mxu0 0
  %379 = vmatpush1.bf16.msra.mxu0 0
  %380 = vmatprep.subr.bf16.mxu0 0
  %381 = vmatpush1.bf16.msra.mxu0 0
  %382 = vmatprep.subr.bf16.mxu0 0
  %383 = vmatpush1.bf16.msra.mxu0 0
  %384 = vmatprep.subr.bf16.mxu0 0
  %385 = vmatpush1.bf16.msra.mxu0 0
  %386 = vmatprep.subr.bf16.mxu0 0
  %387 = vmatpush1.bf16.msra.mxu0 0
  %388 = vmatprep.subr.bf16.mxu0 0
  %389 = vmatpush1.bf16.msra.mxu0 0
  %390 = vmatprep.mubr.bf16.mxu0 0
  %391 = vmatmul.mubr.bf16.gmra.mrb[0].mxu0 %v209
  %v392 = vpop.f32.mrb[0].mxu0
  %v393 = vadd.f32 %v344, %v392
  %v394 = vpop.f32.mrb[0].mxu0
  %v395 = vpop.f32.mrb[0].mxu0
  %v396 = vadd.f32 %v344, %v395
  %v397 = vpop.f32.mrb[0].mxu0
  %398 = vmatprep.mubr.bf16.mxu0 0
  %399 = vmatmul.mubr.bf16.gmra.mrb[0].mxu0 %v212
  %v400 = vpop.f32.mrb[0].mxu0
  %v401 = vadd.f32 %v344, %v400
  %v402 = vpop.f32.mrb[0].mxu0
  %v403 = vpop.f32.mrb[0].mxu0
  %v404 = vadd.f32 %v344, %v403
  %v405 = vpop.f32.mrb[0].mxu0
  %406 = vdwg.mxu0
  %v407 = vpack.c.bf16 %v252, %v249
  %v408 = vpack.c.bf16 %v260, %v257
  %v409 = vpack.c.bf16 %v324, %v321
  %v410 = vpack.c.bf16 %v332, %v329
  %v411 = vpack.c.bf16 %v396, %v393
  %v412 = vpack.c.bf16 %v404, %v401
  %v413 = vld [vmem:[%s2] sm:$0x1]
  %v415 = vlaneseq
  %v416 = vshrl.u32 %v415, 7
  %v417 = vsub.s32 0, %v416
  %v418 = vrot.slane %v413, %v417
  %vm420 = vcmask 130048
  %v422 = vsel %vm420, %v407, 0
  %v425 = vsel %vm420, %v409, 0
  %427 = vmatprep.subr.bf16.mxu0 0
  %428 = vmatpush1.bf16.xpose.msra.mxu0 %v425
  %429 = vmatprep.subr.bf16.mxu0 0
  %430 = vmatpush1.bf16.xpose.msra.mxu0 0
  %431 = vmatprep.subr.bf16.mxu0 0
  %432 = vmatpush1.bf16.xpose.msra.mxu0 0
  %433 = vmatprep.subr.bf16.mxu0 0
  %434 = vmatpush1.bf16.xpose.msra.mxu0 0
  %435 = vmatprep.subr.bf16.mxu0 0
  %436 = vmatpush1.bf16.xpose.msra.mxu0 0
  %437 = vmatprep.subr.bf16.mxu0 0
  %438 = vmatpush1.bf16.xpose.msra.mxu0 0
  %439 = vmatprep.subr.bf16.mxu0 0
  %440 = vmatpush1.bf16.xpose.msra.mxu0 0
  %441 = vmatprep.subr.bf16.mxu0 0
  %442 = vmatpush1.bf16.xpose.msra.mxu0 0
  %443 = vmatprep.subr.bf16.mxu0 0
  %444 = vmatpush1.bf16.xpose.msra.mxu0 0
  %445 = vmatprep.subr.bf16.mxu0 0
  %446 = vmatpush1.bf16.xpose.msra.mxu0 0
  %447 = vmatprep.subr.bf16.mxu0 0
  %448 = vmatpush1.bf16.xpose.msra.mxu0 0
  %449 = vmatprep.subr.bf16.mxu0 0
  %450 = vmatpush1.bf16.xpose.msra.mxu0 0
  %451 = vmatprep.subr.bf16.mxu0 0
  %452 = vmatpush1.bf16.xpose.msra.mxu0 0
  %453 = vmatprep.subr.bf16.mxu0 0
  %454 = vmatpush1.bf16.xpose.msra.mxu0 0
  %455 = vmatprep.subr.bf16.mxu0 0
  %456 = vmatpush1.bf16.xpose.msra.mxu0 0
  %457 = vmatprep.subr.bf16.mxu0 0
  %458 = vmatpush1.bf16.xpose.msra.mxu0 0
  %459 = vmatprep.mubr.bf16.mxu0 0
  %460 = vmatmul.mubr.bf16.gmra.mrb[0].mxu0 %v422
  %v461 = vpop.f32.mrb[0].mxu0
  %v462 = vadd.f32 %v418, %v461
  %v463 = vpop.f32.mrb[0].mxu0
  %v464 = vpop.f32.mrb[0].mxu0
  %v465 = vadd.f32 %v418, %v464
  %v466 = vpop.f32.mrb[0].mxu0
  %467 = vdwg.mxu0
  %v468 = vsel %vm420, %v462, -inf
  %469 = vmax.xlane.f32.xlu0 %v468
  %v470 = vpop.xlane.xlu0 %469
  %v471 = vsel %vm420, %v465, -inf
  %472 = vmax.xlane.f32.xlu0 %v471
  %v473 = vpop.xlane.xlu0 %472
  %v474 = vsub.f32 %v462, %v470
  %v475 = vsub.f32 %v465, %v473
  %v476 = vmul.f32 %v474, 1.442695
  %v477 = vpow.pop %v476
  %v478 = vmul.f32 %v475, 1.442695
  %v479 = vpow.pop %v478
  %v480 = vsel %vm420, %v477, 0.0
  %481 = vadd.xlane.f32.xlu0 %v480
  %v482 = vpop.xlane.xlu0 %481
  %v483 = vsel %vm420, %v479, 0.0
  %484 = vadd.xlane.f32.xlu0 %v483
  %v485 = vpop.xlane.xlu0 %484
  %v486 = vrcp.pop %v482
  %v487 = vrcp.pop %v485
  %v488 = vmul.f32 %v477, %v486
  %v489 = vmul.f32 %v479, %v487
  %v490 = vpack.c.bf16 %v489, %v488
  %v492 = vsel %vm420, %v490, 0
  %494 = vmatprep.subr.bf16.mxu0 0
  %495 = vmatpush1.bf16.msra.mxu0 %v411
  %496 = vmatprep.subr.bf16.mxu0 0
  %497 = vmatpush1.bf16.msra.mxu0 0
  %498 = vmatprep.subr.bf16.mxu0 0
  %499 = vmatpush1.bf16.msra.mxu0 0
  %500 = vmatprep.subr.bf16.mxu0 0
  %501 = vmatpush1.bf16.msra.mxu0 0
  %502 = vmatprep.subr.bf16.mxu0 0
  %503 = vmatpush1.bf16.msra.mxu0 0
  %504 = vmatprep.subr.bf16.mxu0 0
  %505 = vmatpush1.bf16.msra.mxu0 0
  %506 = vmatprep.subr.bf16.mxu0 0
  %507 = vmatpush1.bf16.msra.mxu0 0
  %508 = vmatprep.subr.bf16.mxu0 0
  %509 = vmatpush1.bf16.msra.mxu0 0
  %510 = vmatprep.subr.bf16.mxu0 0
  %511 = vmatpush1.bf16.msra.mxu0 0
  %512 = vmatprep.subr.bf16.mxu0 0
  %513 = vmatpush1.bf16.msra.mxu0 0
  %514 = vmatprep.subr.bf16.mxu0 0
  %515 = vmatpush1.bf16.msra.mxu0 0
  %516 = vmatprep.subr.bf16.mxu0 0
  %517 = vmatpush1.bf16.msra.mxu0 0
  %518 = vmatprep.subr.bf16.mxu0 0
  %519 = vmatpush1.bf16.msra.mxu0 0
  %520 = vmatprep.subr.bf16.mxu0 0
  %521 = vmatpush1.bf16.msra.mxu0 0
  %522 = vmatprep.subr.bf16.mxu0 0
  %523 = vmatpush1.bf16.msra.mxu0 0
  %524 = vmatprep.subr.bf16.mxu0 0
  %525 = vmatpush1.bf16.msra.mxu0 0
  %526 = vmatprep.mubr.bf16.mxu0 0
  %527 = vmatmul.mubr.bf16.gmra.mrb[0].mxu0 %v492
  %v528 = vpop.f32.mrb[0].mxu0
  %v529 = vadd.f32 0.0, %v528
  %v530 = vpop.f32.mrb[0].mxu0
  %v531 = vpop.f32.mrb[0].mxu0
  %v532 = vadd.f32 0.0, %v531
  %v533 = vpop.f32.mrb[0].mxu0
  %534 = vdwg.mxu0
  %s535 = scalar_lea.vmem %s2, 1
  %v536 = vld [vmem:[%s535] sm:$0x1]
  %v538 = vlaneseq
  %v539 = vshrl.u32 %v538, 7
  %v540 = vsub.s32 0, %v539
  %v541 = vrot.slane %v536, %v540
  %v544 = vsel %vm420, %v408, 0
  %v547 = vsel %vm420, %v410, 0
  %549 = vmatprep.subr.bf16.mxu0 0
  %550 = vmatpush1.bf16.xpose.msra.mxu0 %v547
  %551 = vmatprep.subr.bf16.mxu0 0
  %552 = vmatpush1.bf16.xpose.msra.mxu0 0
  %553 = vmatprep.subr.bf16.mxu0 0
  %554 = vmatpush1.bf16.xpose.msra.mxu0 0
  %555 = vmatprep.subr.bf16.mxu0 0
  %556 = vmatpush1.bf16.xpose.msra.mxu0 0
  %557 = vmatprep.subr.bf16.mxu0 0
  %558 = vmatpush1.bf16.xpose.msra.mxu0 0
  %559 = vmatprep.subr.bf16.mxu0 0
  %560 = vmatpush1.bf16.xpose.msra.mxu0 0
  %561 = vmatprep.subr.bf16.mxu0 0
  %562 = vmatpush1.bf16.xpose.msra.mxu0 0
  %563 = vmatprep.subr.bf16.mxu0 0
  %564 = vmatpush1.bf16.xpose.msra.mxu0 0
  %565 = vmatprep.subr.bf16.mxu0 0
  %566 = vmatpush1.bf16.xpose.msra.mxu0 0
  %567 = vmatprep.subr.bf16.mxu0 0
  %568 = vmatpush1.bf16.xpose.msra.mxu0 0
  %569 = vmatprep.subr.bf16.mxu0 0
  %570 = vmatpush1.bf16.xpose.msra.mxu0 0
  %571 = vmatprep.subr.bf16.mxu0 0
  %572 = vmatpush1.bf16.xpose.msra.mxu0 0
  %573 = vmatprep.subr.bf16.mxu0 0
  %574 = vmatpush1.bf16.xpose.msra.mxu0 0
  %575 = vmatprep.subr.bf16.mxu0 0
  %576 = vmatpush1.bf16.xpose.msra.mxu0 0
  %577 = vmatprep.subr.bf16.mxu0 0
  %578 = vmatpush1.bf16.xpose.msra.mxu0 0
  %579 = vmatprep.subr.bf16.mxu0 0
  %580 = vmatpush1.bf16.xpose.msra.mxu0 0
  %581 = vmatprep.mubr.bf16.mxu0 0
  %582 = vmatmul.mubr.bf16.gmra.mrb[0].mxu0 %v544
  %v583 = vpop.f32.mrb[0].mxu0
  %v584 = vadd.f32 %v541, %v583
  %v585 = vpop.f32.mrb[0].mxu0
  %v586 = vpop.f32.mrb[0].mxu0
  %v587 = vadd.f32 %v541, %v586
  %v588 = vpop.f32.mrb[0].mxu0
  %589 = vdwg.mxu0
  %v590 = vsel %vm420, %v584, -inf
  %591 = vmax.xlane.f32.xlu0 %v590
  %v592 = vpop.xlane.xlu0 %591
  %v593 = vsel %vm420, %v587, -inf
  %594 = vmax.xlane.f32.xlu0 %v593
  %v595 = vpop.xlane.xlu0 %594
  %v596 = vsub.f32 %v584, %v592
  %v597 = vsub.f32 %v587, %v595
  %v598 = vmul.f32 %v596, 1.442695
  %v599 = vpow.pop %v598
  %v600 = vmul.f32 %v597, 1.442695
  %v601 = vpow.pop %v600
  %v602 = vsel %vm420, %v599, 0.0
  %603 = vadd.xlane.f32.xlu0 %v602
  %v604 = vpop.xlane.xlu0 %603
  %v605 = vsel %vm420, %v601, 0.0
  %606 = vadd.xlane.f32.xlu0 %v605
  %v607 = vpop.xlane.xlu0 %606
  %v608 = vrcp.pop %v604
  %v609 = vrcp.pop %v607
  %v610 = vmul.f32 %v599, %v608
  %v611 = vmul.f32 %v601, %v609
  %v612 = vpack.c.bf16 %v611, %v610
  %v614 = vsel %vm420, %v612, 0
  %616 = vmatprep.subr.bf16.mxu0 0
  %617 = vmatpush1.bf16.msra.mxu0 %v412
  %618 = vmatprep.subr.bf16.mxu0 0
  %619 = vmatpush1.bf16.msra.mxu0 0
  %620 = vmatprep.subr.bf16.mxu0 0
  %621 = vmatpush1.bf16.msra.mxu0 0
  %622 = vmatprep.subr.bf16.mxu0 0
  %623 = vmatpush1.bf16.msra.mxu0 0
  %624 = vmatprep.subr.bf16.mxu0 0
  %625 = vmatpush1.bf16.msra.mxu0 0
  %626 = vmatprep.subr.bf16.mxu0 0
  %627 = vmatpush1.bf16.msra.mxu0 0
  %628 = vmatprep.subr.bf16.mxu0 0
  %629 = vmatpush1.bf16.msra.mxu0 0
  %630 = vmatprep.subr.bf16.mxu0 0
  %631 = vmatpush1.bf16.msra.mxu0 0
  %632 = vmatprep.subr.bf16.mxu0 0
  %633 = vmatpush1.bf16.msra.mxu0 0
  %634 = vmatprep.subr.bf16.mxu0 0
  %635 = vmatpush1.bf16.msra.mxu0 0
  %636 = vmatprep.subr.bf16.mxu0 0
  %637 = vmatpush1.bf16.msra.mxu0 0
  %638 = vmatprep.subr.bf16.mxu0 0
  %639 = vmatpush1.bf16.msra.mxu0 0
  %640 = vmatprep.subr.bf16.mxu0 0
  %641 = vmatpush1.bf16.msra.mxu0 0
  %642 = vmatprep.subr.bf16.mxu0 0
  %643 = vmatpush1.bf16.msra.mxu0 0
  %644 = vmatprep.subr.bf16.mxu0 0
  %645 = vmatpush1.bf16.msra.mxu0 0
  %646 = vmatprep.subr.bf16.mxu0 0
  %647 = vmatpush1.bf16.msra.mxu0 0
  %648 = vmatprep.mubr.bf16.mxu0 0
  %649 = vmatmul.mubr.bf16.gmra.mrb[0].mxu0 %v614
  %v650 = vpop.f32.mrb[0].mxu0
  %v651 = vadd.f32 0.0, %v650
  %v652 = vpop.f32.mrb[0].mxu0
  %v653 = vpop.f32.mrb[0].mxu0
  %v654 = vadd.f32 0.0, %v653
  %v655 = vpop.f32.mrb[0].mxu0
  %656 = vdwg.mxu0
  %v657 = vpack.c.bf16 %v532, %v529
  %v658 = vpack.c.bf16 %v654, %v651
  %v659 = vld [vmem:[%s11] sm:$0xf]
  %v660 = vld [vmem:[%s11 + $0x4] sm:$0xf]
  %s661 = scalar_lea.vmem %s5, 16
  %v662 = vld [vmem:[%s661] sm:$0xf]
  %v663 = vld [vmem:[%s661 + $0x4] sm:$0xf]
  %v664 = vld [vmem:[%s661 + $0x8] sm:$0xf]
  %v665 = vld [vmem:[%s661 + $0xc] sm:$0xf]
  %s666 = scalar_lea.vmem %s8, 1
  %v667 = vld [vmem:[%s666] sm:$0x1]
  %v669 = vlaneseq
  %v670 = vshrl.u32 %v669, 7
  %v671 = vsub.s32 0, %v670
  %v672 = vrot.slane %v667, %v671
  %v678 = vunpack.c.l.b16 %v662
  %v679 = vunpack.c.l.b16 %v663
  %v680 = vunpack.c.l.b16 %v664
  %v681 = vunpack.c.l.b16 %v665
  %v682 = vpack.c.b16 %v679, %v678
  %v683 = vpack.c.b16 %v681, %v680
  %686 = vmatprep.subr.bf16.mxu0 0
  %687 = vmatpush1.bf16.msra.mxu0 %v682
  %688 = vmatprep.subr.bf16.mxu0 0
  %689 = vmatpush1.bf16.msra.mxu0 %v683
  %690 = vmatprep.subr.bf16.mxu0 0
  %691 = vmatpush1.bf16.msra.mxu0 0
  %692 = vmatprep.subr.bf16.mxu0 0
  %693 = vmatpush1.bf16.msra.mxu0 0
  %694 = vmatprep.subr.bf16.mxu0 0
  %695 = vmatpush1.bf16.msra.mxu0 0
  %696 = vmatprep.subr.bf16.mxu0 0
  %697 = vmatpush1.bf16.msra.mxu0 0
  %698 = vmatprep.subr.bf16.mxu0 0
  %699 = vmatpush1.bf16.msra.mxu0 0
  %700 = vmatprep.subr.bf16.mxu0 0
  %701 = vmatpush1.bf16.msra.mxu0 0
  %702 = vmatprep.subr.bf16.mxu0 0
  %703 = vmatpush1.bf16.msra.mxu0 0
  %704 = vmatprep.subr.bf16.mxu0 0
  %705 = vmatpush1.bf16.msra.mxu0 0
  %706 = vmatprep.subr.bf16.mxu0 0
  %707 = vmatpush1.bf16.msra.mxu0 0
  %708 = vmatprep.subr.bf16.mxu0 0
  %709 = vmatpush1.bf16.msra.mxu0 0
  %710 = vmatprep.subr.bf16.mxu0 0
  %711 = vmatpush1.bf16.msra.mxu0 0
  %712 = vmatprep.subr.bf16.mxu0 0
  %713 = vmatpush1.bf16.msra.mxu0 0
  %714 = vmatprep.subr.bf16.mxu0 0
  %715 = vmatpush1.bf16.msra.mxu0 0
  %716 = vmatprep.subr.bf16.mxu0 0
  %717 = vmatpush1.bf16.msra.mxu0 0
  %718 = vmatprep.mubr.bf16.mxu0 0
  %719 = vmatmul.mubr.bf16.gmra.mrb[0].mxu0 %v209
  %v720 = vpop.f32.mrb[0].mxu0
  %v721 = vadd.f32 %v672, %v720
  %v722 = vpop.f32.mrb[0].mxu0
  %v723 = vpop.f32.mrb[0].mxu0
  %v724 = vadd.f32 %v672, %v723
  %v725 = vpop.f32.mrb[0].mxu0
  %726 = vmatprep.mubr.bf16.mxu0 0
  %727 = vmatmul.mubr.bf16.gmra.mrb[0].mxu0 %v212
  %v728 = vpop.f32.mrb[0].mxu0
  %v729 = vadd.f32 %v672, %v728
  %v730 = vpop.f32.mrb[0].mxu0
  %v731 = vpop.f32.mrb[0].mxu0
  %v732 = vadd.f32 %v672, %v731
  %v733 = vpop.f32.mrb[0].mxu0
  %734 = vdwg.mxu0
  %s735 = scalar_lea.vmem %s6, 16
  %v736 = vld [vmem:[%s735] sm:$0xf]
  %v737 = vld [vmem:[%s735 + $0x4] sm:$0xf]
  %v738 = vld [vmem:[%s735 + $0x8] sm:$0xf]
  %v739 = vld [vmem:[%s735 + $0xc] sm:$0xf]
  %s740 = scalar_lea.vmem %s9, 1
  %v741 = vld [vmem:[%s740] sm:$0x1]
  %v743 = vlaneseq
  %v744 = vshrl.u32 %v743, 7
  %v745 = vsub.s32 0, %v744
  %v746 = vrot.slane %v741, %v745
  %v752 = vunpack.c.l.b16 %v736
  %v753 = vunpack.c.l.b16 %v737
  %v754 = vunpack.c.l.b16 %v738
  %v755 = vunpack.c.l.b16 %v739
  %v756 = vpack.c.b16 %v753, %v752
  %v757 = vpack.c.b16 %v755, %v754
  %760 = vmatprep.subr.bf16.mxu0 0
  %761 = vmatpush1.bf16.msra.mxu0 %v756
  %762 = vmatprep.subr.bf16.mxu0 0
  %763 = vmatpush1.bf16.msra.mxu0 %v757
  %764 = vmatprep.subr.bf16.mxu0 0
  %765 = vmatpush1.bf16.msra.mxu0 0
  %766 = vmatprep.subr.bf16.mxu0 0
  %767 = vmatpush1.bf16.msra.mxu0 0
  %768 = vmatprep.subr.bf16.mxu0 0
  %769 = vmatpush1.bf16.msra.mxu0 0
  %770 = vmatprep.subr.bf16.mxu0 0
  %771 = vmatpush1.bf16.msra.mxu0 0
  %772 = vmatprep.subr.bf16.mxu0 0
  %773 = vmatpush1.bf16.msra.mxu0 0
  %774 = vmatprep.subr.bf16.mxu0 0
  %775 = vmatpush1.bf16.msra.mxu0 0
  %776 = vmatprep.subr.bf16.mxu0 0
  %777 = vmatpush1.bf16.msra.mxu0 0
  %778 = vmatprep.subr.bf16.mxu0 0
  %779 = vmatpush1.bf16.msra.mxu0 0
  %780 = vmatprep.subr.bf16.mxu0 0
  %781 = vmatpush1.bf16.msra.mxu0 0
  %782 = vmatprep.subr.bf16.mxu0 0
  %783 = vmatpush1.bf16.msra.mxu0 0
  %784 = vmatprep.subr.bf16.mxu0 0
  %785 = vmatpush1.bf16.msra.mxu0 0
  %786 = vmatprep.subr.bf16.mxu0 0
  %787 = vmatpush1.bf16.msra.mxu0 0
  %788 = vmatprep.subr.bf16.mxu0 0
  %789 = vmatpush1.bf16.msra.mxu0 0
  %790 = vmatprep.subr.bf16.mxu0 0
  %791 = vmatpush1.bf16.msra.mxu0 0
  %792 = vmatprep.mubr.bf16.mxu0 0
  %793 = vmatmul.mubr.bf16.gmra.mrb[0].mxu0 %v209
  %v794 = vpop.f32.mrb[0].mxu0
  %v795 = vadd.f32 %v746, %v794
  %v796 = vpop.f32.mrb[0].mxu0
  %v797 = vpop.f32.mrb[0].mxu0
  %v798 = vadd.f32 %v746, %v797
  %v799 = vpop.f32.mrb[0].mxu0
  %800 = vmatprep.mubr.bf16.mxu0 0
  %801 = vmatmul.mubr.bf16.gmra.mrb[0].mxu0 %v212
  %v802 = vpop.f32.mrb[0].mxu0
  %v803 = vadd.f32 %v746, %v802
  %v804 = vpop.f32.mrb[0].mxu0
  %v805 = vpop.f32.mrb[0].mxu0
  %v806 = vadd.f32 %v746, %v805
  %v807 = vpop.f32.mrb[0].mxu0
  %808 = vdwg.mxu0
  %s809 = scalar_lea.vmem %s7, 16
  %v810 = vld [vmem:[%s809] sm:$0xf]
  %v811 = vld [vmem:[%s809 + $0x4] sm:$0xf]
  %v812 = vld [vmem:[%s809 + $0x8] sm:$0xf]
  %v813 = vld [vmem:[%s809 + $0xc] sm:$0xf]
  %s814 = scalar_lea.vmem %s10, 1
  %v815 = vld [vmem:[%s814] sm:$0x1]
  %v817 = vlaneseq
  %v818 = vshrl.u32 %v817, 7
  %v819 = vsub.s32 0, %v818
  %v820 = vrot.slane %v815, %v819
  %v826 = vunpack.c.l.b16 %v810
  %v827 = vunpack.c.l.b16 %v811
  %v828 = vunpack.c.l.b16 %v812
  %v829 = vunpack.c.l.b16 %v813
  %v830 = vpack.c.b16 %v827, %v826
  %v831 = vpack.c.b16 %v829, %v828
  %834 = vmatprep.subr.bf16.mxu0 0
  %835 = vmatpush1.bf16.msra.mxu0 %v830
  %836 = vmatprep.subr.bf16.mxu0 0
  %837 = vmatpush1.bf16.msra.mxu0 %v831
  %838 = vmatprep.subr.bf16.mxu0 0
  %839 = vmatpush1.bf16.msra.mxu0 0
  %840 = vmatprep.subr.bf16.mxu0 0
  %841 = vmatpush1.bf16.msra.mxu0 0
  %842 = vmatprep.subr.bf16.mxu0 0
  %843 = vmatpush1.bf16.msra.mxu0 0
  %844 = vmatprep.subr.bf16.mxu0 0
  %845 = vmatpush1.bf16.msra.mxu0 0
  %846 = vmatprep.subr.bf16.mxu0 0
  %847 = vmatpush1.bf16.msra.mxu0 0
  %848 = vmatprep.subr.bf16.mxu0 0
  %849 = vmatpush1.bf16.msra.mxu0 0
  %850 = vmatprep.subr.bf16.mxu0 0
  %851 = vmatpush1.bf16.msra.mxu0 0
  %852 = vmatprep.subr.bf16.mxu0 0
  %853 = vmatpush1.bf16.msra.mxu0 0
  %854 = vmatprep.subr.bf16.mxu0 0
  %855 = vmatpush1.bf16.msra.mxu0 0
  %856 = vmatprep.subr.bf16.mxu0 0
  %857 = vmatpush1.bf16.msra.mxu0 0
  %858 = vmatprep.subr.bf16.mxu0 0
  %859 = vmatpush1.bf16.msra.mxu0 0
  %860 = vmatprep.subr.bf16.mxu0 0
  %861 = vmatpush1.bf16.msra.mxu0 0
  %862 = vmatprep.subr.bf16.mxu0 0
  %863 = vmatpush1.bf16.msra.mxu0 0
  %864 = vmatprep.subr.bf16.mxu0 0
  %865 = vmatpush1.bf16.msra.mxu0 0
  %866 = vmatprep.mubr.bf16.mxu0 0
  %867 = vmatmul.mubr.bf16.gmra.mrb[0].mxu0 %v209
  %v868 = vpop.f32.mrb[0].mxu0
  %v869 = vadd.f32 %v820, %v868
  %v870 = vpop.f32.mrb[0].mxu0
  %v871 = vpop.f32.mrb[0].mxu0
  %v872 = vadd.f32 %v820, %v871
  %v873 = vpop.f32.mrb[0].mxu0
  %874 = vmatprep.mubr.bf16.mxu0 0
  %875 = vmatmul.mubr.bf16.gmra.mrb[0].mxu0 %v212
  %v876 = vpop.f32.mrb[0].mxu0
  %v877 = vadd.f32 %v820, %v876
  %v878 = vpop.f32.mrb[0].mxu0
  %v879 = vpop.f32.mrb[0].mxu0
  %v880 = vadd.f32 %v820, %v879
  %v881 = vpop.f32.mrb[0].mxu0
  %882 = vdwg.mxu0
  %v883 = vpack.c.bf16 %v724, %v721
  %v884 = vpack.c.bf16 %v732, %v729
  %v885 = vpack.c.bf16 %v798, %v795
  %v886 = vpack.c.bf16 %v806, %v803
  %v887 = vpack.c.bf16 %v872, %v869
  %v888 = vpack.c.bf16 %v880, %v877
  %v890 = vsel %vm420, %v883, 0
  %v893 = vsel %vm420, %v885, 0
  %895 = vmatprep.subr.bf16.mxu0 0
  %896 = vmatpush1.bf16.xpose.msra.mxu0 %v893
  %897 = vmatprep.subr.bf16.mxu0 0
  %898 = vmatpush1.bf16.xpose.msra.mxu0 0
  %899 = vmatprep.subr.bf16.mxu0 0
  %900 = vmatpush1.bf16.xpose.msra.mxu0 0
  %901 = vmatprep.subr.bf16.mxu0 0
  %902 = vmatpush1.bf16.xpose.msra.mxu0 0
  %903 = vmatprep.subr.bf16.mxu0 0
  %904 = vmatpush1.bf16.xpose.msra.mxu0 0
  %905 = vmatprep.subr.bf16.mxu0 0
  %906 = vmatpush1.bf16.xpose.msra.mxu0 0
  %907 = vmatprep.subr.bf16.mxu0 0
  %908 = vmatpush1.bf16.xpose.msra.mxu0 0
  %909 = vmatprep.subr.bf16.mxu0 0
  %910 = vmatpush1.bf16.xpose.msra.mxu0 0
  %911 = vmatprep.subr.bf16.mxu0 0
  %912 = vmatpush1.bf16.xpose.msra.mxu0 0
  %913 = vmatprep.subr.bf16.mxu0 0
  %914 = vmatpush1.bf16.xpose.msra.mxu0 0
  %915 = vmatprep.subr.bf16.mxu0 0
  %916 = vmatpush1.bf16.xpose.msra.mxu0 0
  %917 = vmatprep.subr.bf16.mxu0 0
  %918 = vmatpush1.bf16.xpose.msra.mxu0 0
  %919 = vmatprep.subr.bf16.mxu0 0
  %920 = vmatpush1.bf16.xpose.msra.mxu0 0
  %921 = vmatprep.subr.bf16.mxu0 0
  %922 = vmatpush1.bf16.xpose.msra.mxu0 0
  %923 = vmatprep.subr.bf16.mxu0 0
  %924 = vmatpush1.bf16.xpose.msra.mxu0 0
  %925 = vmatprep.subr.bf16.mxu0 0
  %926 = vmatpush1.bf16.xpose.msra.mxu0 0
  %927 = vmatprep.mubr.bf16.mxu0 0
  %928 = vmatmul.mubr.bf16.gmra.mrb[0].mxu0 %v890
  %v929 = vpop.f32.mrb[0].mxu0
  %v930 = vadd.f32 %v418, %v929
  %v931 = vpop.f32.mrb[0].mxu0
  %v932 = vpop.f32.mrb[0].mxu0
  %v933 = vadd.f32 %v418, %v932
  %v934 = vpop.f32.mrb[0].mxu0
  %935 = vdwg.mxu0
  %v936 = vsel %vm420, %v930, -inf
  %937 = vmax.xlane.f32.xlu0 %v936
  %v938 = vpop.xlane.xlu0 %937
  %v939 = vsel %vm420, %v933, -inf
  %940 = vmax.xlane.f32.xlu0 %v939
  %v941 = vpop.xlane.xlu0 %940
  %v942 = vsub.f32 %v930, %v938
  %v943 = vsub.f32 %v933, %v941
  %v944 = vmul.f32 %v942, 1.442695
  %v945 = vpow.pop %v944
  %v946 = vmul.f32 %v943, 1.442695
  %v947 = vpow.pop %v946
  %v948 = vsel %vm420, %v945, 0.0
  %949 = vadd.xlane.f32.xlu0 %v948
  %v950 = vpop.xlane.xlu0 %949
  %v951 = vsel %vm420, %v947, 0.0
  %952 = vadd.xlane.f32.xlu0 %v951
  %v953 = vpop.xlane.xlu0 %952
  %v954 = vrcp.pop %v950
  %v955 = vrcp.pop %v953
  %v956 = vmul.f32 %v945, %v954
  %v957 = vmul.f32 %v947, %v955
  %v958 = vpack.c.bf16 %v957, %v956
  %v960 = vsel %vm420, %v958, 0
  %962 = vmatprep.subr.bf16.mxu0 0
  %963 = vmatpush1.bf16.msra.mxu0 %v887
  %964 = vmatprep.subr.bf16.mxu0 0
  %965 = vmatpush1.bf16.msra.mxu0 0
  %966 = vmatprep.subr.bf16.mxu0 0
  %967 = vmatpush1.bf16.msra.mxu0 0
  %968 = vmatprep.subr.bf16.mxu0 0
  %969 = vmatpush1.bf16.msra.mxu0 0
  %970 = vmatprep.subr.bf16.mxu0 0
  %971 = vmatpush1.bf16.msra.mxu0 0
  %972 = vmatprep.subr.bf16.mxu0 0
  %973 = vmatpush1.bf16.msra.mxu0 0
  %974 = vmatprep.subr.bf16.mxu0 0
  %975 = vmatpush1.bf16.msra.mxu0 0
  %976 = vmatprep.subr.bf16.mxu0 0
  %977 = vmatpush1.bf16.msra.mxu0 0
  %978 = vmatprep.subr.bf16.mxu0 0
  %979 = vmatpush1.bf16.msra.mxu0 0
  %980 = vmatprep.subr.bf16.mxu0 0
  %981 = vmatpush1.bf16.msra.mxu0 0
  %982 = vmatprep.subr.bf16.mxu0 0
  %983 = vmatpush1.bf16.msra.mxu0 0
  %984 = vmatprep.subr.bf16.mxu0 0
  %985 = vmatpush1.bf16.msra.mxu0 0
  %986 = vmatprep.subr.bf16.mxu0 0
  %987 = vmatpush1.bf16.msra.mxu0 0
  %988 = vmatprep.subr.bf16.mxu0 0
  %989 = vmatpush1.bf16.msra.mxu0 0
  %990 = vmatprep.subr.bf16.mxu0 0
  %991 = vmatpush1.bf16.msra.mxu0 0
  %992 = vmatprep.subr.bf16.mxu0 0
  %993 = vmatpush1.bf16.msra.mxu0 0
  %994 = vmatprep.mubr.bf16.mxu0 0
  %995 = vmatmul.mubr.bf16.gmra.mrb[0].mxu0 %v960
  %v996 = vpop.f32.mrb[0].mxu0
  %v997 = vadd.f32 0.0, %v996
  %v998 = vpop.f32.mrb[0].mxu0
  %v999 = vpop.f32.mrb[0].mxu0
  %v1000 = vadd.f32 0.0, %v999
  %v1001 = vpop.f32.mrb[0].mxu0
  %1002 = vdwg.mxu0
  %v1004 = vsel %vm420, %v884, 0
  %v1007 = vsel %vm420, %v886, 0
  %1009 = vmatprep.subr.bf16.mxu0 0
  %1010 = vmatpush1.bf16.xpose.msra.mxu0 %v1007
  %1011 = vmatprep.subr.bf16.mxu0 0
  %1012 = vmatpush1.bf16.xpose.msra.mxu0 0
  %1013 = vmatprep.subr.bf16.mxu0 0
  %1014 = vmatpush1.bf16.xpose.msra.mxu0 0
  %1015 = vmatprep.subr.bf16.mxu0 0
  %1016 = vmatpush1.bf16.xpose.msra.mxu0 0
  %1017 = vmatprep.subr.bf16.mxu0 0
  %1018 = vmatpush1.bf16.xpose.msra.mxu0 0
  %1019 = vmatprep.subr.bf16.mxu0 0
  %1020 = vmatpush1.bf16.xpose.msra.mxu0 0
  %1021 = vmatprep.subr.bf16.mxu0 0
  %1022 = vmatpush1.bf16.xpose.msra.mxu0 0
  %1023 = vmatprep.subr.bf16.mxu0 0
  %1024 = vmatpush1.bf16.xpose.msra.mxu0 0
  %1025 = vmatprep.subr.bf16.mxu0 0
  %1026 = vmatpush1.bf16.xpose.msra.mxu0 0
  %1027 = vmatprep.subr.bf16.mxu0 0
  %1028 = vmatpush1.bf16.xpose.msra.mxu0 0
  %1029 = vmatprep.subr.bf16.mxu0 0
  %1030 = vmatpush1.bf16.xpose.msra.mxu0 0
  %1031 = vmatprep.subr.bf16.mxu0 0
  %1032 = vmatpush1.bf16.xpose.msra.mxu0 0
  %1033 = vmatprep.subr.bf16.mxu0 0
  %1034 = vmatpush1.bf16.xpose.msra.mxu0 0
  %1035 = vmatprep.subr.bf16.mxu0 0
  %1036 = vmatpush1.bf16.xpose.msra.mxu0 0
  %1037 = vmatprep.subr.bf16.mxu0 0
  %1038 = vmatpush1.bf16.xpose.msra.mxu0 0
  %1039 = vmatprep.subr.bf16.mxu0 0
  %1040 = vmatpush1.bf16.xpose.msra.mxu0 0
  %1041 = vmatprep.mubr.bf16.mxu0 0
  %1042 = vmatmul.mubr.bf16.gmra.mrb[0].mxu0 %v1004
  %v1043 = vpop.f32.mrb[0].mxu0
  %v1044 = vadd.f32 %v541, %v1043
  %v1045 = vpop.f32.mrb[0].mxu0
  %v1046 = vpop.f32.mrb[0].mxu0
  %v1047 = vadd.f32 %v541, %v1046
  %v1048 = vpop.f32.mrb[0].mxu0
  %1049 = vdwg.mxu0
  %v1050 = vsel %vm420, %v1044, -inf
  %1051 = vmax.xlane.f32.xlu0 %v1050
  %v1052 = vpop.xlane.xlu0 %1051
  %v1053 = vsel %vm420, %v1047, -inf
  %1054 = vmax.xlane.f32.xlu0 %v1053
  %v1055 = vpop.xlane.xlu0 %1054
  %v1056 = vsub.f32 %v1044, %v1052
  %v1057 = vsub.f32 %v1047, %v1055
  %v1058 = vmul.f32 %v1056, 1.442695
  %v1059 = vpow.pop %v1058
  %v1060 = vmul.f32 %v1057, 1.442695
  %v1061 = vpow.pop %v1060
  %v1062 = vsel %vm420, %v1059, 0.0
  %1063 = vadd.xlane.f32.xlu0 %v1062
  %v1064 = vpop.xlane.xlu0 %1063
  %v1065 = vsel %vm420, %v1061, 0.0
  %1066 = vadd.xlane.f32.xlu0 %v1065
  %v1067 = vpop.xlane.xlu0 %1066
  %v1068 = vrcp.pop %v1064
  %v1069 = vrcp.pop %v1067
  %v1070 = vmul.f32 %v1059, %v1068
  %v1071 = vmul.f32 %v1061, %v1069
  %v1072 = vpack.c.bf16 %v1071, %v1070
  %v1074 = vsel %vm420, %v1072, 0
  %1076 = vmatprep.subr.bf16.mxu0 0
  %1077 = vmatpush1.bf16.msra.mxu0 %v888
  %1078 = vmatprep.subr.bf16.mxu0 0
  %1079 = vmatpush1.bf16.msra.mxu0 0
  %1080 = vmatprep.subr.bf16.mxu0 0
  %1081 = vmatpush1.bf16.msra.mxu0 0
  %1082 = vmatprep.subr.bf16.mxu0 0
  %1083 = vmatpush1.bf16.msra.mxu0 0
  %1084 = vmatprep.subr.bf16.mxu0 0
  %1085 = vmatpush1.bf16.msra.mxu0 0
  %1086 = vmatprep.subr.bf16.mxu0 0
  %1087 = vmatpush1.bf16.msra.mxu0 0
  %1088 = vmatprep.subr.bf16.mxu0 0
  %1089 = vmatpush1.bf16.msra.mxu0 0
  %1090 = vmatprep.subr.bf16.mxu0 0
  %1091 = vmatpush1.bf16.msra.mxu0 0
  %1092 = vmatprep.subr.bf16.mxu0 0
  %1093 = vmatpush1.bf16.msra.mxu0 0
  %1094 = vmatprep.subr.bf16.mxu0 0
  %1095 = vmatpush1.bf16.msra.mxu0 0
  %1096 = vmatprep.subr.bf16.mxu0 0
  %1097 = vmatpush1.bf16.msra.mxu0 0
  %1098 = vmatprep.subr.bf16.mxu0 0
  %1099 = vmatpush1.bf16.msra.mxu0 0
  %1100 = vmatprep.subr.bf16.mxu0 0
  %1101 = vmatpush1.bf16.msra.mxu0 0
  %1102 = vmatprep.subr.bf16.mxu0 0
  %1103 = vmatpush1.bf16.msra.mxu0 0
  %1104 = vmatprep.subr.bf16.mxu0 0
  %1105 = vmatpush1.bf16.msra.mxu0 0
  %1106 = vmatprep.subr.bf16.mxu0 0
  %1107 = vmatpush1.bf16.msra.mxu0 0
  %1108 = vmatprep.mubr.bf16.mxu0 0
  %1109 = vmatmul.mubr.bf16.gmra.mrb[0].mxu0 %v1074
  %v1110 = vpop.f32.mrb[0].mxu0
  %v1111 = vadd.f32 0.0, %v1110
  %v1112 = vpop.f32.mrb[0].mxu0
  %v1113 = vpop.f32.mrb[0].mxu0
  %v1114 = vadd.f32 0.0, %v1113
  %v1115 = vpop.f32.mrb[0].mxu0
  %1116 = vdwg.mxu0
  %v1117 = vpack.c.bf16 %v1000, %v997
  %v1118 = vpack.c.bf16 %v1114, %v1111
  %s1119 = scalar_lea.vmem %s11, 8
  %v1120 = vld [vmem:[%s1119] sm:$0xf]
  %v1121 = vld [vmem:[%s1119 + $0x4] sm:$0xf]
  %v1124 = vunpack.c.l.b16 %v1120
  %v1125 = vunpack.c.l.b16 %v1121
  %v1126 = vpack.c.b16 %v1125, %v1124
  %v1129 = vsel %vm420, %v1117, 0
  %v1132 = vsel %vm420, %v1118, 0
  %1134 = vmatprep.subr.bf16.mxu0 0
  %1135 = vmatpush1.bf16.msra.mxu0 %v1126
  %1136 = vmatprep.subr.bf16.mxu0 0
  %1137 = vmatpush1.bf16.msra.mxu0 0
  %1138 = vmatprep.subr.bf16.mxu0 0
  %1139 = vmatpush1.bf16.msra.mxu0 0
  %1140 = vmatprep.subr.bf16.mxu0 0
  %1141 = vmatpush1.bf16.msra.mxu0 0
  %1142 = vmatprep.subr.bf16.mxu0 0
  %1143 = vmatpush1.bf16.msra.mxu0 0
  %1144 = vmatprep.subr.bf16.mxu0 0
  %1145 = vmatpush1.bf16.msra.mxu0 0
  %1146 = vmatprep.subr.bf16.mxu0 0
  %1147 = vmatpush1.bf16.msra.mxu0 0
  %1148 = vmatprep.subr.bf16.mxu0 0
  %1149 = vmatpush1.bf16.msra.mxu0 0
  %1150 = vmatprep.subr.bf16.mxu0 0
  %1151 = vmatpush1.bf16.msra.mxu0 0
  %1152 = vmatprep.subr.bf16.mxu0 0
  %1153 = vmatpush1.bf16.msra.mxu0 0
  %1154 = vmatprep.subr.bf16.mxu0 0
  %1155 = vmatpush1.bf16.msra.mxu0 0
  %1156 = vmatprep.subr.bf16.mxu0 0
  %1157 = vmatpush1.bf16.msra.mxu0 0
  %1158 = vmatprep.subr.bf16.mxu0 0
  %1159 = vmatpush1.bf16.msra.mxu0 0
  %1160 = vmatprep.subr.bf16.mxu0 0
  %1161 = vmatpush1.bf16.msra.mxu0 0
  %1162 = vmatprep.subr.bf16.mxu0 0
  %1163 = vmatpush1.bf16.msra.mxu0 0
  %1164 = vmatprep.subr.bf16.mxu0 0
  %1165 = vmatpush1.bf16.msra.mxu0 0
  %1166 = vmatprep.mubr.bf16.mxu0 0
  %1167 = vmatmul.mubr.bf16.gmra.mrb[0].mxu0 %v1129
  %v1168 = vpop.f32.mrb[0].mxu0
  %v1169 = vadd.f32 0.0, %v1168
  %v1170 = vpop.f32.mrb[0].mxu0
  %v1171 = vpop.f32.mrb[0].mxu0
  %v1172 = vadd.f32 0.0, %v1171
  %v1173 = vpop.f32.mrb[0].mxu0
  %1174 = vmatprep.mubr.bf16.mxu0 0
  %1175 = vmatmul.mubr.bf16.gmra.mrb[0].mxu0 %v1132
  %v1176 = vpop.f32.mrb[0].mxu0
  %v1177 = vadd.f32 0.0, %v1176
  %v1178 = vpop.f32.mrb[0].mxu0
  %v1179 = vpop.f32.mrb[0].mxu0
  %v1180 = vadd.f32 0.0, %v1179
  %v1181 = vpop.f32.mrb[0].mxu0
  %1182 = vdwg.mxu0
  %v1185 = vunpack.c.l.b16 %v659
  %v1186 = vunpack.c.l.b16 %v660
  %v1187 = vpack.c.b16 %v1186, %v1185
  %v1190 = vsel %vm420, %v657, 0
  %v1193 = vsel %vm420, %v658, 0
  %1195 = vmatprep.subr.bf16.mxu0 0
  %1196 = vmatpush1.bf16.msra.mxu0 %v1187
  %1197 = vmatprep.subr.bf16.mxu0 0
  %1198 = vmatpush1.bf16.msra.mxu0 0
  %1199 = vmatprep.subr.bf16.mxu0 0
  %1200 = vmatpush1.bf16.msra.mxu0 0
  %1201 = vmatprep.subr.bf16.mxu0 0
  %1202 = vmatpush1.bf16.msra.mxu0 0
  %1203 = vmatprep.subr.bf16.mxu0 0
  %1204 = vmatpush1.bf16.msra.mxu0 0
  %1205 = vmatprep.subr.bf16.mxu0 0
  %1206 = vmatpush1.bf16.msra.mxu0 0
  %1207 = vmatprep.subr.bf16.mxu0 0
  %1208 = vmatpush1.bf16.msra.mxu0 0
  %1209 = vmatprep.subr.bf16.mxu0 0
  %1210 = vmatpush1.bf16.msra.mxu0 0
  %1211 = vmatprep.subr.bf16.mxu0 0
  %1212 = vmatpush1.bf16.msra.mxu0 0
  %1213 = vmatprep.subr.bf16.mxu0 0
  %1214 = vmatpush1.bf16.msra.mxu0 0
  %1215 = vmatprep.subr.bf16.mxu0 0
  %1216 = vmatpush1.bf16.msra.mxu0 0
  %1217 = vmatprep.subr.bf16.mxu0 0
  %1218 = vmatpush1.bf16.msra.mxu0 0
  %1219 = vmatprep.subr.bf16.mxu0 0
  %1220 = vmatpush1.bf16.msra.mxu0 0
  %1221 = vmatprep.subr.bf16.mxu0 0
  %1222 = vmatpush1.bf16.msra.mxu0 0
  %1223 = vmatprep.subr.bf16.mxu0 0
  %1224 = vmatpush1.bf16.msra.mxu0 0
  %1225 = vmatprep.subr.bf16.mxu0 0
  %1226 = vmatpush1.bf16.msra.mxu0 0
  %1227 = vmatprep.mubr.bf16.mxu0 0
  %1228 = vmatmul.mubr.bf16.gmra.mrb[0].mxu0 %v1190
  %v1229 = vpop.f32.mrb[0].mxu0
  %v1230 = vadd.f32 %v1169, %v1229
  %v1231 = vpop.f32.mrb[0].mxu0
  %v1232 = vpop.f32.mrb[0].mxu0
  %v1233 = vadd.f32 %v1172, %v1232
  %v1234 = vpop.f32.mrb[0].mxu0
  %1235 = vmatprep.mubr.bf16.mxu0 0
  %1236 = vmatmul.mubr.bf16.gmra.mrb[0].mxu0 %v1193
  %v1237 = vpop.f32.mrb[0].mxu0
  %v1238 = vadd.f32 %v1177, %v1237
  %v1239 = vpop.f32.mrb[0].mxu0
  %v1240 = vpop.f32.mrb[0].mxu0
  %v1241 = vadd.f32 %v1180, %v1240
  %v1242 = vpop.f32.mrb[0].mxu0
  %1243 = vdwg.mxu0
  %v1244 = vld [vmem:[%s12] sm:$0x1]
  %v1246 = vlaneseq
  %v1247 = vshrl.u32 %v1246, 7
  %v1248 = vsub.s32 0, %v1247
  %v1249 = vrot.slane %v1244, %v1248
  %v1251 = vadd.f32 %v1230, %v1249
  %v1252 = vadd.f32 %v1233, %v1249
  %v1253 = vadd.f32 %v1238, %v1249
  %v1254 = vadd.f32 %v1241, %v1249
  %v1255 = vadd.f32 %v179, %v1251
  %v1256 = vadd.f32 %v180, %v1252
  %v1257 = vadd.f32 %v181, %v1253
  %v1258 = vadd.f32 %v182, %v1254
  %v1259 = vld [vmem:[%s13] sm:$0x1]
  %v1260 = vld [vmem:[%s14] sm:$0x1]
  %v1261 = vsel %vm97, %v1255, 0.0
  %1262 = vadd.xlane.f32.xlu0 %v1261
  %v1263 = vpop.xlane.xlu0 %1262
  %v1264 = vsel %vm97, %v1256, 0.0
  %1265 = vadd.xlane.f32.xlu0 %v1264
  %v1266 = vpop.xlane.xlu0 %1265
  %v1267 = vsel %vm97, %v1257, 0.0
  %1268 = vadd.xlane.f32.xlu0 %v1267
  %v1269 = vpop.xlane.xlu0 %1268
  %v1270 = vsel %vm97, %v1258, 0.0
  %1271 = vadd.xlane.f32.xlu0 %v1270
  %v1272 = vpop.xlane.xlu0 %1271
  %v1273 = vmul.f32 %v1263, %v110
  %v1274 = vmul.f32 %v1266, %v110
  %v1275 = vmul.f32 %v1269, %v110
  %v1276 = vmul.f32 %v1272, %v110
  %v1277 = vmul.f32 %v1255, %v1255
  %v1278 = vmul.f32 %v1256, %v1256
  %v1279 = vmul.f32 %v1257, %v1257
  %v1280 = vmul.f32 %v1258, %v1258
  %v1281 = vsel %vm97, %v1277, 0.0
  %1282 = vadd.xlane.f32.xlu0 %v1281
  %v1283 = vpop.xlane.xlu0 %1282
  %v1284 = vsel %vm97, %v1278, 0.0
  %1285 = vadd.xlane.f32.xlu0 %v1284
  %v1286 = vpop.xlane.xlu0 %1285
  %v1287 = vsel %vm97, %v1279, 0.0
  %1288 = vadd.xlane.f32.xlu0 %v1287
  %v1289 = vpop.xlane.xlu0 %1288
  %v1290 = vsel %vm97, %v1280, 0.0
  %1291 = vadd.xlane.f32.xlu0 %v1290
  %v1292 = vpop.xlane.xlu0 %1291
  %v1293 = vmul.f32 %v1283, %v110
  %v1294 = vmul.f32 %v1286, %v110
  %v1295 = vmul.f32 %v1289, %v110
  %v1296 = vmul.f32 %v1292, %v110
  %v1297 = vmul.f32 %v1273, %v1273
  %v1298 = vmul.f32 %v1274, %v1274
  %v1299 = vmul.f32 %v1275, %v1275
  %v1300 = vmul.f32 %v1276, %v1276
  %v1301 = vsub.f32 %v1293, %v1297
  %v1302 = vsub.f32 %v1294, %v1298
  %v1303 = vsub.f32 %v1295, %v1299
  %v1304 = vsub.f32 %v1296, %v1300
  %v1305 = vmax.f32 %v1301, 0.0
  %v1306 = vmax.f32 %v1302, 0.0
  %v1307 = vmax.f32 %v1303, 0.0
  %v1308 = vmax.f32 %v1304, 0.0
  %v1309 = vsub.f32 %v1255, %v1273
  %v1310 = vsub.f32 %v1256, %v1274
  %v1311 = vsub.f32 %v1257, %v1275
  %v1312 = vsub.f32 %v1258, %v1276
  %v1313 = vadd.f32 %v1305, 1e-12
  %v1314 = vadd.f32 %v1306, 1e-12
  %v1315 = vadd.f32 %v1307, 1e-12
  %v1316 = vadd.f32 %v1308, 1e-12
  %v1317 = vrsqrt.pop %v1313
  %v1318 = vrsqrt.pop %v1314
  %v1319 = vrsqrt.pop %v1315
  %v1320 = vrsqrt.pop %v1316
  %v1321 = vmul.f32 %v1309, %v1317
  %v1322 = vmul.f32 %v1310, %v1318
  %v1323 = vmul.f32 %v1311, %v1319
  %v1324 = vmul.f32 %v1312, %v1320
  %v1326 = vlaneseq
  %v1327 = vshrl.u32 %v1326, 7
  %v1328 = vsub.s32 0, %v1327
  %v1329 = vrot.slane %v1259, %v1328
  %v1331 = vmul.f32 %v1321, %v1329
  %v1332 = vmul.f32 %v1322, %v1329
  %v1333 = vmul.f32 %v1323, %v1329
  %v1334 = vmul.f32 %v1324, %v1329
  %v1336 = vlaneseq
  %v1337 = vshrl.u32 %v1336, 7
  %v1338 = vsub.s32 0, %v1337
  %v1339 = vrot.slane %v1260, %v1338
  %v1341 = vadd.f32 %v1331, %v1339
  %v1342 = vadd.f32 %v1332, %v1339
  %v1343 = vadd.f32 %v1333, %v1339
  %v1344 = vadd.f32 %v1334, %v1339
  %v1345 = vpack.c.bf16 %v1342, %v1341
  %v1346 = vpack.c.bf16 %v1344, %v1343
  %v1347 = vld [vmem:[%s15] sm:$0xf]
  %v1348 = vld [vmem:[%s15 + $0x4] sm:$0xf]
  %v1349 = vld [vmem:[%s15 + $0x8] sm:$0xf]
  %v1350 = vld [vmem:[%s15 + $0xc] sm:$0xf]
  %v1351 = vld [vmem:[%s16] sm:$0x1]
  %v1353 = vlaneseq
  %v1354 = vshrl.u32 %v1353, 7
  %v1355 = vsub.s32 0, %v1354
  %v1356 = vrot.slane %v1351, %v1355
  %v1362 = vunpack.c.l.b16 %v1347
  %v1363 = vunpack.c.l.b16 %v1348
  %v1364 = vunpack.c.l.b16 %v1349
  %v1365 = vunpack.c.l.b16 %v1350
  %v1366 = vpack.c.b16 %v1363, %v1362
  %v1367 = vpack.c.b16 %v1365, %v1364
  %v1371 = vsel %vm97, %v1345, 0
  %v1374 = vsel %vm97, %v1346, 0
  %1376 = vmatprep.subr.bf16.mxu0 0
  %1377 = vmatpush1.bf16.msra.mxu0 %v1366
  %1378 = vmatprep.subr.bf16.mxu0 0
  %1379 = vmatpush1.bf16.msra.mxu0 %v1367
  %1380 = vmatprep.subr.bf16.mxu0 0
  %1381 = vmatpush1.bf16.msra.mxu0 0
  %1382 = vmatprep.subr.bf16.mxu0 0
  %1383 = vmatpush1.bf16.msra.mxu0 0
  %1384 = vmatprep.subr.bf16.mxu0 0
  %1385 = vmatpush1.bf16.msra.mxu0 0
  %1386 = vmatprep.subr.bf16.mxu0 0
  %1387 = vmatpush1.bf16.msra.mxu0 0
  %1388 = vmatprep.subr.bf16.mxu0 0
  %1389 = vmatpush1.bf16.msra.mxu0 0
  %1390 = vmatprep.subr.bf16.mxu0 0
  %1391 = vmatpush1.bf16.msra.mxu0 0
  %1392 = vmatprep.subr.bf16.mxu0 0
  %1393 = vmatpush1.bf16.msra.mxu0 0
  %1394 = vmatprep.subr.bf16.mxu0 0
  %1395 = vmatpush1.bf16.msra.mxu0 0
  %1396 = vmatprep.subr.bf16.mxu0 0
  %1397 = vmatpush1.bf16.msra.mxu0 0
  %1398 = vmatprep.subr.bf16.mxu0 0
  %1399 = vmatpush1.bf16.msra.mxu0 0
  %1400 = vmatprep.subr.bf16.mxu0 0
  %1401 = vmatpush1.bf16.msra.mxu0 0
  %1402 = vmatprep.subr.bf16.mxu0 0
  %1403 = vmatpush1.bf16.msra.mxu0 0
  %1404 = vmatprep.subr.bf16.mxu0 0
  %1405 = vmatpush1.bf16.msra.mxu0 0
  %1406 = vmatprep.subr.bf16.mxu0 0
  %1407 = vmatpush1.bf16.msra.mxu0 0
  %1408 = vmatprep.mubr.bf16.mxu0 0
  %1409 = vmatmul.mubr.bf16.gmra.mrb[0].mxu0 %v1371
  %v1410 = vpop.f32.mrb[0].mxu0
  %v1411 = vadd.f32 %v1356, %v1410
  %v1412 = vpop.f32.mrb[0].mxu0
  %v1413 = vpop.f32.mrb[0].mxu0
  %v1414 = vadd.f32 %v1356, %v1413
  %v1415 = vpop.f32.mrb[0].mxu0
  %1416 = vmatprep.mubr.bf16.mxu0 0
  %1417 = vmatmul.mubr.bf16.gmra.mrb[0].mxu0 %v1374
  %v1418 = vpop.f32.mrb[0].mxu0
  %v1419 = vadd.f32 %v1356, %v1418
  %v1420 = vpop.f32.mrb[0].mxu0
  %v1421 = vpop.f32.mrb[0].mxu0
  %v1422 = vadd.f32 %v1356, %v1421
  %v1423 = vpop.f32.mrb[0].mxu0
  %1424 = vdwg.mxu0
  %v1425 = vmul.f32 %v1411, 0.5
  %v1426 = vmul.f32 %v1414, 0.5
  %v1427 = vmul.f32 %v1419, 0.5
  %v1428 = vmul.f32 %v1422, 0.5
  %v1429 = vmul.f32 %v1411, 0.044715
  %v1430 = vmul.f32 %v1414, 0.044715
  %v1431 = vmul.f32 %v1419, 0.044715
  %v1432 = vmul.f32 %v1422, 0.044715
  %v1433 = vmul.f32 %v1429, %v1411
  %v1434 = vmul.f32 %v1430, %v1414
  %v1435 = vmul.f32 %v1431, %v1419
  %v1436 = vmul.f32 %v1432, %v1422
  %v1437 = vmul.f32 %v1433, %v1411
  %v1438 = vmul.f32 %v1434, %v1414
  %v1439 = vmul.f32 %v1435, %v1419
  %v1440 = vmul.f32 %v1436, %v1422
  %v1441 = vadd.f32 %v1411, %v1437
  %v1442 = vadd.f32 %v1414, %v1438
  %v1443 = vadd.f32 %v1419, %v1439
  %v1444 = vadd.f32 %v1422, %v1440
  %v1445 = vmul.f32 %v1441, 0.7978846
  %v1446 = vmul.f32 %v1442, 0.7978846
  %v1447 = vmul.f32 %v1443, 0.7978846
  %v1448 = vmul.f32 %v1444, 0.7978846
  %v1449 = vtanh.pop %v1445
  %v1450 = vtanh.pop %v1446
  %v1451 = vtanh.pop %v1447
  %v1452 = vtanh.pop %v1448
  %v1453 = vadd.f32 %v1449, 1.0
  %v1454 = vadd.f32 %v1450, 1.0
  %v1455 = vadd.f32 %v1451, 1.0
  %v1456 = vadd.f32 %v1452, 1.0
  %v1457 = vmul.f32 %v1425, %v1453
  %v1458 = vmul.f32 %v1426, %v1454
  %v1459 = vmul.f32 %v1427, %v1455
  %v1460 = vmul.f32 %v1428, %v1456
  %v1461 = vpack.c.bf16 %v1458, %v1457
  %v1462 = vpack.c.bf16 %v1460, %v1459
  %v1463 = vld [vmem:[%s17] sm:$0xf]
  %v1464 = vld [vmem:[%s17 + $0x4] sm:$0xf]
  %v1465 = vld [vmem:[%s17 + $0x8] sm:$0xf]
  %v1466 = vld [vmem:[%s17 + $0xc] sm:$0xf]
  %v1467 = vld [vmem:[%s17 + $0x10] sm:$0xf]
  %v1468 = vld [vmem:[%s17 + $0x14] sm:$0xf]
  %v1469 = vld [vmem:[%s17 + $0x18] sm:$0xf]
  %v1470 = vld [vmem:[%s17 + $0x1c] sm:$0xf]
  %v1471 = vld [vmem:[%s18] sm:$0x1]
  %v1473 = vlaneseq
  %v1474 = vshrl.u32 %v1473, 7
  %v1475 = vsub.s32 0, %v1474
  %v1476 = vrot.slane %v1471, %v1475
  %v1486 = vunpack.c.l.b16 %v1463
  %v1487 = vunpack.c.l.b16 %v1464
  %v1488 = vunpack.c.l.b16 %v1465
  %v1489 = vunpack.c.l.b16 %v1466
  %v1490 = vunpack.c.l.b16 %v1467
  %v1491 = vunpack.c.l.b16 %v1468
  %v1492 = vunpack.c.l.b16 %v1469
  %v1493 = vunpack.c.l.b16 %v1470
  %v1494 = vpack.c.b16 %v1487, %v1486
  %v1495 = vpack.c.b16 %v1489, %v1488
  %v1496 = vpack.c.b16 %v1491, %v1490
  %v1497 = vpack.c.b16 %v1493, %v1492
  %vm1502 = vcmask 523264
  %v1504 = vsel %vm1502, %v1461, 0
  %v1507 = vsel %vm1502, %v1462, 0
  %1509 = vmatprep.subr.bf16.mxu0 0
  %1510 = vmatpush1.bf16.msra.mxu0 %v1494
  %1511 = vmatprep.subr.bf16.mxu0 0
  %1512 = vmatpush1.bf16.msra.mxu0 %v1495
  %1513 = vmatprep.subr.bf16.mxu0 0
  %1514 = vmatpush1.bf16.msra.mxu0 %v1496
  %1515 = vmatprep.subr.bf16.mxu0 0
  %1516 = vmatpush1.bf16.msra.mxu0 %v1497
  %1517 = vmatprep.subr.bf16.mxu0 0
  %1518 = vmatpush1.bf16.msra.mxu0 0
  %1519 = vmatprep.subr.bf16.mxu0 0
  %1520 = vmatpush1.bf16.msra.mxu0 0
  %1521 = vmatprep.subr.bf16.mxu0 0
  %1522 = vmatpush1.bf16.msra.mxu0 0
  %1523 = vmatprep.subr.bf16.mxu0 0
  %1524 = vmatpush1.bf16.msra.mxu0 0
  %1525 = vmatprep.subr.bf16.mxu0 0
  %1526 = vmatpush1.bf16.msra.mxu0 0
  %1527 = vmatprep.subr.bf16.mxu0 0
  %1528 = vmatpush1.bf16.msra.mxu0 0
  %1529 = vmatprep.subr.bf16.mxu0 0
  %1530 = vmatpush1.bf16.msra.mxu0 0
  %1531 = vmatprep.subr.bf16.mxu0 0
  %1532 = vmatpush1.bf16.msra.mxu0 0
  %1533 = vmatprep.subr.bf16.mxu0 0
  %1534 = vmatpush1.bf16.msra.mxu0 0
  %1535 = vmatprep.subr.bf16.mxu0 0
  %1536 = vmatpush1.bf16.msra.mxu0 0
  %1537 = vmatprep.subr.bf16.mxu0 0
  %1538 = vmatpush1.bf16.msra.mxu0 0
  %1539 = vmatprep.subr.bf16.mxu0 0
  %1540 = vmatpush1.bf16.msra.mxu0 0
  %1541 = vmatprep.mubr.bf16.mxu0 0
  %1542 = vmatmul.mubr.bf16.gmra.mrb[0].mxu0 %v1504
  %v1543 = vpop.f32.mrb[0].mxu0
  %v1544 = vadd.f32 %v1476, %v1543
  %v1545 = vpop.f32.mrb[0].mxu0
  %v1546 = vpop.f32.mrb[0].mxu0
  %v1547 = vadd.f32 %v1476, %v1546
  %v1548 = vpop.f32.mrb[0].mxu0
  %1549 = vmatprep.mubr.bf16.mxu0 0
  %1550 = vmatmul.mubr.bf16.gmra.mrb[0].mxu0 %v1507
  %v1551 = vpop.f32.mrb[0].mxu0
  %v1552 = vadd.f32 %v1476, %v1551
  %v1553 = vpop.f32.mrb[0].mxu0
  %v1554 = vpop.f32.mrb[0].mxu0
  %v1555 = vadd.f32 %v1476, %v1554
  %v1556 = vpop.f32.mrb[0].mxu0
  %1557 = vdwg.mxu0
  %v1558 = vadd.f32 %v1341, %v1544
  %v1559 = vadd.f32 %v1342, %v1547
  %v1560 = vadd.f32 %v1343, %v1552
  %v1561 = vadd.f32 %v1344, %v1555
  %v1562 = vld [vmem:[%s19] sm:$0x1]
  %v1563 = vld [vmem:[%s20] sm:$0x1]
  %v1564 = vsel %vm97, %v1558, 0.0
  %1565 = vadd.xlane.f32.xlu0 %v1564
  %v1566 = vpop.xlane.xlu0 %1565
  %v1567 = vsel %vm97, %v1559, 0.0
  %1568 = vadd.xlane.f32.xlu0 %v1567
  %v1569 = vpop.xlane.xlu0 %1568
  %v1570 = vsel %vm97, %v1560, 0.0
  %1571 = vadd.xlane.f32.xlu0 %v1570
  %v1572 = vpop.xlane.xlu0 %1571
  %v1573 = vsel %vm97, %v1561, 0.0
  %1574 = vadd.xlane.f32.xlu0 %v1573
  %v1575 = vpop.xlane.xlu0 %1574
  %v1576 = vmul.f32 %v1566, %v110
  %v1577 = vmul.f32 %v1569, %v110
  %v1578 = vmul.f32 %v1572, %v110
  %v1579 = vmul.f32 %v1575, %v110
  %v1580 = vmul.f32 %v1558, %v1558
  %v1581 = vmul.f32 %v1559, %v1559
  %v1582 = vmul.f32 %v1560, %v1560
  %v1583 = vmul.f32 %v1561, %v1561
  %v1584 = vsel %vm97, %v1580, 0.0
  %1585 = vadd.xlane.f32.xlu0 %v1584
  %v1586 = vpop.xlane.xlu0 %1585
  %v1587 = vsel %vm97, %v1581, 0.0
  %1588 = vadd.xlane.f32.xlu0 %v1587
  %v1589 = vpop.xlane.xlu0 %1588
  %v1590 = vsel %vm97, %v1582, 0.0
  %1591 = vadd.xlane.f32.xlu0 %v1590
  %v1592 = vpop.xlane.xlu0 %1591
  %v1593 = vsel %vm97, %v1583, 0.0
  %1594 = vadd.xlane.f32.xlu0 %v1593
  %v1595 = vpop.xlane.xlu0 %1594
  %v1596 = vmul.f32 %v1586, %v110
  %v1597 = vmul.f32 %v1589, %v110
  %v1598 = vmul.f32 %v1592, %v110
  %v1599 = vmul.f32 %v1595, %v110
  %v1600 = vmul.f32 %v1576, %v1576
  %v1601 = vmul.f32 %v1577, %v1577
  %v1602 = vmul.f32 %v1578, %v1578
  %v1603 = vmul.f32 %v1579, %v1579
  %v1604 = vsub.f32 %v1596, %v1600
  %v1605 = vsub.f32 %v1597, %v1601
  %v1606 = vsub.f32 %v1598, %v1602
  %v1607 = vsub.f32 %v1599, %v1603
  %v1608 = vmax.f32 %v1604, 0.0
  %v1609 = vmax.f32 %v1605, 0.0
  %v1610 = vmax.f32 %v1606, 0.0
  %v1611 = vmax.f32 %v1607, 0.0
  %v1612 = vsub.f32 %v1558, %v1576
  %v1613 = vsub.f32 %v1559, %v1577
  %v1614 = vsub.f32 %v1560, %v1578
  %v1615 = vsub.f32 %v1561, %v1579
  %v1616 = vadd.f32 %v1608, 1e-12
  %v1617 = vadd.f32 %v1609, 1e-12
  %v1618 = vadd.f32 %v1610, 1e-12
  %v1619 = vadd.f32 %v1611, 1e-12
  %v1620 = vrsqrt.pop %v1616
  %v1621 = vrsqrt.pop %v1617
  %v1622 = vrsqrt.pop %v1618
  %v1623 = vrsqrt.pop %v1619
  %v1624 = vmul.f32 %v1612, %v1620
  %v1625 = vmul.f32 %v1613, %v1621
  %v1626 = vmul.f32 %v1614, %v1622
  %v1627 = vmul.f32 %v1615, %v1623
  %v1629 = vlaneseq
  %v1630 = vshrl.u32 %v1629, 7
  %v1631 = vsub.s32 0, %v1630
  %v1632 = vrot.slane %v1562, %v1631
  %v1634 = vmul.f32 %v1624, %v1632
  %v1635 = vmul.f32 %v1625, %v1632
  %v1636 = vmul.f32 %v1626, %v1632
  %v1637 = vmul.f32 %v1627, %v1632
  %v1639 = vlaneseq
  %v1640 = vshrl.u32 %v1639, 7
  %v1641 = vsub.s32 0, %v1640
  %v1642 = vrot.slane %v1563, %v1641
  %v1644 = vadd.f32 %v1634, %v1642
  %v1645 = vadd.f32 %v1635, %v1642
  %v1646 = vadd.f32 %v1636, %v1642
  %v1647 = vadd.f32 %v1637, %v1642
  %v1648 = vpack.c.bf16 %v1645, %v1644
  %v1649 = vpack.c.bf16 %v1647, %v1646
  %s1650 = scalar_lea.vmem %s5, 32
  %v1651 = vld [vmem:[%s1650] sm:$0xf]
  %v1652 = vld [vmem:[%s1650 + $0x4] sm:$0xf]
  %v1653 = vld [vmem:[%s1650 + $0x8] sm:$0xf]
  %v1654 = vld [vmem:[%s1650 + $0xc] sm:$0xf]
  %s1655 = scalar_lea.vmem %s8, 2
  %v1656 = vld [vmem:[%s1655] sm:$0x1]
  %v1658 = vlaneseq
  %v1659 = vshrl.u32 %v1658, 7
  %v1660 = vsub.s32 0, %v1659
  %v1661 = vrot.slane %v1656, %v1660
  %v1667 = vunpack.c.l.b16 %v1651
  %v1668 = vunpack.c.l.b16 %v1652
  %v1669 = vunpack.c.l.b16 %v1653
  %v1670 = vunpack.c.l.b16 %v1654
  %v1671 = vpack.c.b16 %v1668, %v1667
  %v1672 = vpack.c.b16 %v1670, %v1669
  %v1676 = vsel %vm97, %v1648, 0
  %v1679 = vsel %vm97, %v1649, 0
  %1681 = vmatprep.subr.bf16.mxu0 0
  %1682 = vmatpush1.bf16.msra.mxu0 %v1671
  %1683 = vmatprep.subr.bf16.mxu0 0
  %1684 = vmatpush1.bf16.msra.mxu0 %v1672
  %1685 = vmatprep.subr.bf16.mxu0 0
  %1686 = vmatpush1.bf16.msra.mxu0 0
  %1687 = vmatprep.subr.bf16.mxu0 0
  %1688 = vmatpush1.bf16.msra.mxu0 0
  %1689 = vmatprep.subr.bf16.mxu0 0
  %1690 = vmatpush1.bf16.msra.mxu0 0
  %1691 = vmatprep.subr.bf16.mxu0 0
  %1692 = vmatpush1.bf16.msra.mxu0 0
  %1693 = vmatprep.subr.bf16.mxu0 0
  %1694 = vmatpush1.bf16.msra.mxu0 0
  %1695 = vmatprep.subr.bf16.mxu0 0
  %1696 = vmatpush1.bf16.msra.mxu0 0
  %1697 = vmatprep.subr.bf16.mxu0 0
  %1698 = vmatpush1.bf16.msra.mxu0 0
  %1699 = vmatprep.subr.bf16.mxu0 0
  %1700 = vmatpush1.bf16.msra.mxu0 0
  %1701 = vmatprep.subr.bf16.mxu0 0
  %1702 = vmatpush1.bf16.msra.mxu0 0
  %1703 = vmatprep.subr.bf16.mxu0 0
  %1704 = vmatpush1.bf16.msra.mxu0 0
  %1705 = vmatprep.subr.bf16.mxu0 0
  %1706 = vmatpush1.bf16.msra.mxu0 0
  %1707 = vmatprep.subr.bf16.mxu0 0
  %1708 = vmatpush1.bf16.msra.mxu0 0
  %1709 = vmatprep.subr.bf16.mxu0 0
  %1710 = vmatpush1.bf16.msra.mxu0 0
  %1711 = vmatprep.subr.bf16.mxu0 0
  %1712 = vmatpush1.bf16.msra.mxu0 0
  %1713 = vmatprep.mubr.bf16.mxu0 0
  %1714 = vmatmul.mubr.bf16.gmra.mrb[0].mxu0 %v1676
  %v1715 = vpop.f32.mrb[0].mxu0
  %v1716 = vadd.f32 %v1661, %v1715
  %v1717 = vpop.f32.mrb[0].mxu0
  %v1718 = vpop.f32.mrb[0].mxu0
  %v1719 = vadd.f32 %v1661, %v1718
  %v1720 = vpop.f32.mrb[0].mxu0
  %1721 = vmatprep.mubr.bf16.mxu0 0
  %1722 = vmatmul.mubr.bf16.gmra.mrb[0].mxu0 %v1679
  %v1723 = vpop.f32.mrb[0].mxu0
  %v1724 = vadd.f32 %v1661, %v1723
  %v1725 = vpop.f32.mrb[0].mxu0
  %v1726 = vpop.f32.mrb[0].mxu0
  %v1727 = vadd.f32 %v1661, %v1726
  %v1728 = vpop.f32.mrb[0].mxu0
  %1729 = vdwg.mxu0
  %s1730 = scalar_lea.vmem %s6, 32
  %v1731 = vld [vmem:[%s1730] sm:$0xf]
  %v1732 = vld [vmem:[%s1730 + $0x4] sm:$0xf]
  %v1733 = vld [vmem:[%s1730 + $0x8] sm:$0xf]
  %v1734 = vld [vmem:[%s1730 + $0xc] sm:$0xf]
  %s1735 = scalar_lea.vmem %s9, 2
  %v1736 = vld [vmem:[%s1735] sm:$0x1]
  %v1738 = vlaneseq
  %v1739 = vshrl.u32 %v1738, 7
  %v1740 = vsub.s32 0, %v1739
  %v1741 = vrot.slane %v1736, %v1740
  %v1747 = vunpack.c.l.b16 %v1731
  %v1748 = vunpack.c.l.b16 %v1732
  %v1749 = vunpack.c.l.b16 %v1733
  %v1750 = vunpack.c.l.b16 %v1734
  %v1751 = vpack.c.b16 %v1748, %v1747
  %v1752 = vpack.c.b16 %v1750, %v1749
  %1755 = vmatprep.subr.bf16.mxu0 0
  %1756 = vmatpush1.bf16.msra.mxu0 %v1751
  %1757 = vmatprep.subr.bf16.mxu0 0
  %1758 = vmatpush1.bf16.msra.mxu0 %v1752
  %1759 = vmatprep.subr.bf16.mxu0 0
  %1760 = vmatpush1.bf16.msra.mxu0 0
  %1761 = vmatprep.subr.bf16.mxu0 0
  %1762 = vmatpush1.bf16.msra.mxu0 0
  %1763 = vmatprep.subr.bf16.mxu0 0
  %1764 = vmatpush1.bf16.msra.mxu0 0
  %1765 = vmatprep.subr.bf16.mxu0 0
  %1766 = vmatpush1.bf16.msra.mxu0 0
  %1767 = vmatprep.subr.bf16.mxu0 0
  %1768 = vmatpush1.bf16.msra.mxu0 0
  %1769 = vmatprep.subr.bf16.mxu0 0
  %1770 = vmatpush1.bf16.msra.mxu0 0
  %1771 = vmatprep.subr.bf16.mxu0 0
  %1772 = vmatpush1.bf16.msra.mxu0 0
  %1773 = vmatprep.subr.bf16.mxu0 0
  %1774 = vmatpush1.bf16.msra.mxu0 0
  %1775 = vmatprep.subr.bf16.mxu0 0
  %1776 = vmatpush1.bf16.msra.mxu0 0
  %1777 = vmatprep.subr.bf16.mxu0 0
  %1778 = vmatpush1.bf16.msra.mxu0 0
  %1779 = vmatprep.subr.bf16.mxu0 0
  %1780 = vmatpush1.bf16.msra.mxu0 0
  %1781 = vmatprep.subr.bf16.mxu0 0
  %1782 = vmatpush1.bf16.msra.mxu0 0
  %1783 = vmatprep.subr.bf16.mxu0 0
  %1784 = vmatpush1.bf16.msra.mxu0 0
  %1785 = vmatprep.subr.bf16.mxu0 0
  %1786 = vmatpush1.bf16.msra.mxu0 0
  %1787 = vmatprep.mubr.bf16.mxu0 0
  %1788 = vmatmul.mubr.bf16.gmra.mrb[0].mxu0 %v1676
  %v1789 = vpop.f32.mrb[0].mxu0
  %v1790 = vadd.f32 %v1741, %v1789
  %v1791 = vpop.f32.mrb[0].mxu0
  %v1792 = vpop.f32.mrb[0].mxu0
  %v1793 = vadd.f32 %v1741, %v1792
  %v1794 = vpop.f32.mrb[0].mxu0
  %1795 = vmatprep.mubr.bf16.mxu0 0
  %1796 = vmatmul.mubr.bf16.gmra.mrb[0].mxu0 %v1679
  %v1797 = vpop.f32.mrb[0].mxu0
  %v1798 = vadd.f32 %v1741, %v1797
  %v1799 = vpop.f32.mrb[0].mxu0
  %v1800 = vpop.f32.mrb[0].mxu0
  %v1801 = vadd.f32 %v1741, %v1800
  %v1802 = vpop.f32.mrb[0].mxu0
  %1803 = vdwg.mxu0
  %s1804 = scalar_lea.vmem %s7, 32
  %v1805 = vld [vmem:[%s1804] sm:$0xf]
  %v1806 = vld [vmem:[%s1804 + $0x4] sm:$0xf]
  %v1807 = vld [vmem:[%s1804 + $0x8] sm:$0xf]
  %v1808 = vld [vmem:[%s1804 + $0xc] sm:$0xf]
  %s1809 = scalar_lea.vmem %s10, 2
  %v1810 = vld [vmem:[%s1809] sm:$0x1]
  %v1812 = vlaneseq
  %v1813 = vshrl.u32 %v1812, 7
  %v1814 = vsub.s32 0, %v1813
  %v1815 = vrot.slane %v1810, %v1814
  %v1821 = vunpack.c.l.b16 %v1805
  %v1822 = vunpack.c.l.b16 %v1806
  %v1823 = vunpack.c.l.b16 %v1807
  %v1824 = vunpack.c.l.b16 %v1808
  %v1825 = vpack.c.b16 %v1822, %v1821
  %v1826 = vpack.c.b16 %v1824, %v1823
  %1829 = vmatprep.subr.bf16.mxu0 0
  %1830 = vmatpush1.bf16.msra.mxu0 %v1825
  %1831 = vmatprep.subr.bf16.mxu0 0
  %1832 = vmatpush1.bf16.msra.mxu0 %v1826
  %1833 = vmatprep.subr.bf16.mxu0 0
  %1834 = vmatpush1.bf16.msra.mxu0 0
  %1835 = vmatprep.subr.bf16.mxu0 0
  %1836 = vmatpush1.bf16.msra.mxu0 0
  %1837 = vmatprep.subr.bf16.mxu0 0
  %1838 = vmatpush1.bf16.msra.mxu0 0
  %1839 = vmatprep.subr.bf16.mxu0 0
  %1840 = vmatpush1.bf16.msra.mxu0 0
  %1841 = vmatprep.subr.bf16.mxu0 0
  %1842 = vmatpush1.bf16.msra.mxu0 0
  %1843 = vmatprep.subr.bf16.mxu0 0
  %1844 = vmatpush1.bf16.msra.mxu0 0
  %1845 = vmatprep.subr.bf16.mxu0 0
  %1846 = vmatpush1.bf16.msra.mxu0 0
  %1847 = vmatprep.subr.bf16.mxu0 0
  %1848 = vmatpush1.bf16.msra.mxu0 0
  %1849 = vmatprep.subr.bf16.mxu0 0
  %1850 = vmatpush1.bf16.msra.mxu0 0
  %1851 = vmatprep.subr.bf16.mxu0 0
  %1852 = vmatpush1.bf16.msra.mxu0 0
  %1853 = vmatprep.subr.bf16.mxu0 0
  %1854 = vmatpush1.bf16.msra.mxu0 0
  %1855 = vmatprep.subr.bf16.mxu0 0
  %1856 = vmatpush1.bf16.msra.mxu0 0
  %1857 = vmatprep.subr.bf16.mxu0 0
  %1858 = vmatpush1.bf16.msra.mxu0 0
  %1859 = vmatprep.subr.bf16.mxu0 0
  %1860 = vmatpush1.bf16.msra.mxu0 0
  %1861 = vmatprep.mubr.bf16.mxu0 0
  %1862 = vmatmul.mubr.bf16.gmra.mrb[0].mxu0 %v1676
  %v1863 = vpop.f32.mrb[0].mxu0
  %v1864 = vadd.f32 %v1815, %v1863
  %v1865 = vpop.f32.mrb[0].mxu0
  %v1866 = vpop.f32.mrb[0].mxu0
  %v1867 = vadd.f32 %v1815, %v1866
  %v1868 = vpop.f32.mrb[0].mxu0
  %1869 = vmatprep.mubr.bf16.mxu0 0
  %1870 = vmatmul.mubr.bf16.gmra.mrb[0].mxu0 %v1679
  %v1871 = vpop.f32.mrb[0].mxu0
  %v1872 = vadd.f32 %v1815, %v1871
  %v1873 = vpop.f32.mrb[0].mxu0
  %v1874 = vpop.f32.mrb[0].mxu0
  %v1875 = vadd.f32 %v1815, %v1874
  %v1876 = vpop.f32.mrb[0].mxu0
  %1877 = vdwg.mxu0
  %v1878 = vpack.c.bf16 %v1719, %v1716
  %v1879 = vpack.c.bf16 %v1727, %v1724
  %v1880 = vpack.c.bf16 %v1793, %v1790
  %v1881 = vpack.c.bf16 %v1801, %v1798
  %v1882 = vpack.c.bf16 %v1867, %v1864
  %v1883 = vpack.c.bf16 %v1875, %v1872
  %v1885 = vsel %vm420, %v1878, 0
  %v1888 = vsel %vm420, %v1880, 0
  %1890 = vmatprep.subr.bf16.mxu0 0
  %1891 = vmatpush1.bf16.xpose.msra.mxu0 %v1888
  %1892 = vmatprep.subr.bf16.mxu0 0
  %1893 = vmatpush1.bf16.xpose.msra.mxu0 0
  %1894 = vmatprep.subr.bf16.mxu0 0
  %1895 = vmatpush1.bf16.xpose.msra.mxu0 0
  %1896 = vmatprep.subr.bf16.mxu0 0
  %1897 = vmatpush1.bf16.xpose.msra.mxu0 0
  %1898 = vmatprep.subr.bf16.mxu0 0
  %1899 = vmatpush1.bf16.xpose.msra.mxu0 0
  %1900 = vmatprep.subr.bf16.mxu0 0
  %1901 = vmatpush1.bf16.xpose.msra.mxu0 0
  %1902 = vmatprep.subr.bf16.mxu0 0
  %1903 = vmatpush1.bf16.xpose.msra.mxu0 0
  %1904 = vmatprep.subr.bf16.mxu0 0
  %1905 = vmatpush1.bf16.xpose.msra.mxu0 0
  %1906 = vmatprep.subr.bf16.mxu0 0
  %1907 = vmatpush1.bf16.xpose.msra.mxu0 0
  %1908 = vmatprep.subr.bf16.mxu0 0
  %1909 = vmatpush1.bf16.xpose.msra.mxu0 0
  %1910 = vmatprep.subr.bf16.mxu0 0
  %1911 = vmatpush1.bf16.xpose.msra.mxu0 0
  %1912 = vmatprep.subr.bf16.mxu0 0
  %1913 = vmatpush1.bf16.xpose.msra.mxu0 0
  %1914 = vmatprep.subr.bf16.mxu0 0
  %1915 = vmatpush1.bf16.xpose.msra.mxu0 0
  %1916 = vmatprep.subr.bf16.mxu0 0
  %1917 = vmatpush1.bf16.xpose.msra.mxu0 0
  %1918 = vmatprep.subr.bf16.mxu0 0
  %1919 = vmatpush1.bf16.xpose.msra.mxu0 0
  %1920 = vmatprep.subr.bf16.mxu0 0
  %1921 = vmatpush1.bf16.xpose.msra.mxu0 0
  %1922 = vmatprep.mubr.bf16.mxu0 0
  %1923 = vmatmul.mubr.bf16.gmra.mrb[0].mxu0 %v1885
  %v1924 = vpop.f32.mrb[0].mxu0
  %v1925 = vadd.f32 %v418, %v1924
  %v1926 = vpop.f32.mrb[0].mxu0
  %v1927 = vpop.f32.mrb[0].mxu0
  %v1928 = vadd.f32 %v418, %v1927
  %v1929 = vpop.f32.mrb[0].mxu0
  %1930 = vdwg.mxu0
  %v1931 = vsel %vm420, %v1925, -inf
  %1932 = vmax.xlane.f32.xlu0 %v1931
  %v1933 = vpop.xlane.xlu0 %1932
  %v1934 = vsel %vm420, %v1928, -inf
  %1935 = vmax.xlane.f32.xlu0 %v1934
  %v1936 = vpop.xlane.xlu0 %1935
  %v1937 = vsub.f32 %v1925, %v1933
  %v1938 = vsub.f32 %v1928, %v1936
  %v1939 = vmul.f32 %v1937, 1.442695
  %v1940 = vpow.pop %v1939
  %v1941 = vmul.f32 %v1938, 1.442695
  %v1942 = vpow.pop %v1941
  %v1943 = vsel %vm420, %v1940, 0.0
  %1944 = vadd.xlane.f32.xlu0 %v1943
  %v1945 = vpop.xlane.xlu0 %1944
  %v1946 = vsel %vm420, %v1942, 0.0
  %1947 = vadd.xlane.f32.xlu0 %v1946
  %v1948 = vpop.xlane.xlu0 %1947
  %v1949 = vrcp.pop %v1945
  %v1950 = vrcp.pop %v1948
  %v1951 = vmul.f32 %v1940, %v1949
  %v1952 = vmul.f32 %v1942, %v1950
  %v1953 = vpack.c.bf16 %v1952, %v1951
  %v1955 = vsel %vm420, %v1953, 0
  %1957 = vmatprep.subr.bf16.mxu0 0
  %1958 = vmatpush1.bf16.msra.mxu0 %v1882
  %1959 = vmatprep.subr.bf16.mxu0 0
  %1960 = vmatpush1.bf16.msra.mxu0 0
  %1961 = vmatprep.subr.bf16.mxu0 0
  %1962 = vmatpush1.bf16.msra.mxu0 0
  %1963 = vmatprep.subr.bf16.mxu0 0
  %1964 = vmatpush1.bf16.msra.mxu0 0
  %1965 = vmatprep.subr.bf16.mxu0 0
  %1966 = vmatpush1.bf16.msra.mxu0 0
  %1967 = vmatprep.subr.bf16.mxu0 0
  %1968 = vmatpush1.bf16.msra.mxu0 0
  %1969 = vmatprep.subr.bf16.mxu0 0
  %1970 = vmatpush1.bf16.msra.mxu0 0
  %1971 = vmatprep.subr.bf16.mxu0 0
  %1972 = vmatpush1.bf16.msra.mxu0 0
  %1973 = vmatprep.subr.bf16.mxu0 0
  %1974 = vmatpush1.bf16.msra.mxu0 0
  %1975 = vmatprep.subr.bf16.mxu0 0
  %1976 = vmatpush1.bf16.msra.mxu0 0
  %1977 = vmatprep.subr.bf16.mxu0 0
  %1978 = vmatpush1.bf16.msra.mxu0 0
  %1979 = vmatprep.subr.bf16.mxu0 0
  %1980 = vmatpush1.bf16.msra.mxu0 0
  %1981 = vmatprep.subr.bf16.mxu0 0
  %1982 = vmatpush1.bf16.msra.mxu0 0
  %1983 = vmatprep.subr.bf16.mxu0 0
  %1984 = vmatpush1.bf16.msra.mxu0 0
  %1985 = vmatprep.subr.bf16.mxu0 0
  %1986 = vmatpush1.bf16.msra.mxu0 0
  %1987 = vmatprep.subr.bf16.mxu0 0
  %1988 = vmatpush1.bf16.msra.mxu0 0
  %1989 = vmatprep.mubr.bf16.mxu0 0
  %1990 = vmatmul.mubr.bf16.gmra.mrb[0].mxu0 %v1955
  %v1991 = vpop.f32.mrb[0].mxu0
  %v1992 = vadd.f32 0.0, %v1991
  %v1993 = vpop.f32.mrb[0].mxu0
  %v1994 = vpop.f32.mrb[0].mxu0
  %v1995 = vadd.f32 0.0, %v1994
  %v1996 = vpop.f32.mrb[0].mxu0
  %1997 = vdwg.mxu0
  %v1999 = vsel %vm420, %v1879, 0
  %v2002 = vsel %vm420, %v1881, 0
  %2004 = vmatprep.subr.bf16.mxu0 0
  %2005 = vmatpush1.bf16.xpose.msra.mxu0 %v2002
  %2006 = vmatprep.subr.bf16.mxu0 0
  %2007 = vmatpush1.bf16.xpose.msra.mxu0 0
  %2008 = vmatprep.subr.bf16.mxu0 0
  %2009 = vmatpush1.bf16.xpose.msra.mxu0 0
  %2010 = vmatprep.subr.bf16.mxu0 0
  %2011 = vmatpush1.bf16.xpose.msra.mxu0 0
  %2012 = vmatprep.subr.bf16.mxu0 0
  %2013 = vmatpush1.bf16.xpose.msra.mxu0 0
  %2014 = vmatprep.subr.bf16.mxu0 0
  %2015 = vmatpush1.bf16.xpose.msra.mxu0 0
  %2016 = vmatprep.subr.bf16.mxu0 0
  %2017 = vmatpush1.bf16.xpose.msra.mxu0 0
  %2018 = vmatprep.subr.bf16.mxu0 0
  %2019 = vmatpush1.bf16.xpose.msra.mxu0 0
  %2020 = vmatprep.subr.bf16.mxu0 0
  %2021 = vmatpush1.bf16.xpose.msra.mxu0 0
  %2022 = vmatprep.subr.bf16.mxu0 0
  %2023 = vmatpush1.bf16.xpose.msra.mxu0 0
  %2024 = vmatprep.subr.bf16.mxu0 0
  %2025 = vmatpush1.bf16.xpose.msra.mxu0 0
  %2026 = vmatprep.subr.bf16.mxu0 0
  %2027 = vmatpush1.bf16.xpose.msra.mxu0 0
  %2028 = vmatprep.subr.bf16.mxu0 0
  %2029 = vmatpush1.bf16.xpose.msra.mxu0 0
  %2030 = vmatprep.subr.bf16.mxu0 0
  %2031 = vmatpush1.bf16.xpose.msra.mxu0 0
  %2032 = vmatprep.subr.bf16.mxu0 0
  %2033 = vmatpush1.bf16.xpose.msra.mxu0 0
  %2034 = vmatprep.subr.bf16.mxu0 0
  %2035 = vmatpush1.bf16.xpose.msra.mxu0 0
  %2036 = vmatprep.mubr.bf16.mxu0 0
  %2037 = vmatmul.mubr.bf16.gmra.mrb[0].mxu0 %v1999
  %v2038 = vpop.f32.mrb[0].mxu0
  %v2039 = vadd.f32 %v541, %v2038
  %v2040 = vpop.f32.mrb[0].mxu0
  %v2041 = vpop.f32.mrb[0].mxu0
  %v2042 = vadd.f32 %v541, %v2041
  %v2043 = vpop.f32.mrb[0].mxu0
  %2044 = vdwg.mxu0
  %v2045 = vsel %vm420, %v2039, -inf
  %2046 = vmax.xlane.f32.xlu0 %v2045
  %v2047 = vpop.xlane.xlu0 %2046
  %v2048 = vsel %vm420, %v2042, -inf
  %2049 = vmax.xlane.f32.xlu0 %v2048
  %v2050 = vpop.xlane.xlu0 %2049
  %v2051 = vsub.f32 %v2039, %v2047
  %v2052 = vsub.f32 %v2042, %v2050
  %v2053 = vmul.f32 %v2051, 1.442695
  %v2054 = vpow.pop %v2053
  %v2055 = vmul.f32 %v2052, 1.442695
  %v2056 = vpow.pop %v2055
  %v2057 = vsel %vm420, %v2054, 0.0
  %2058 = vadd.xlane.f32.xlu0 %v2057
  %v2059 = vpop.xlane.xlu0 %2058
  %v2060 = vsel %vm420, %v2056, 0.0
  %2061 = vadd.xlane.f32.xlu0 %v2060
  %v2062 = vpop.xlane.xlu0 %2061
  %v2063 = vrcp.pop %v2059
  %v2064 = vrcp.pop %v2062
  %v2065 = vmul.f32 %v2054, %v2063
  %v2066 = vmul.f32 %v2056, %v2064
  %v2067 = vpack.c.bf16 %v2066, %v2065
  %v2069 = vsel %vm420, %v2067, 0
  %2071 = vmatprep.subr.bf16.mxu0 0
  %2072 = vmatpush1.bf16.msra.mxu0 %v1883
  %2073 = vmatprep.subr.bf16.mxu0 0
  %2074 = vmatpush1.bf16.msra.mxu0 0
  %2075 = vmatprep.subr.bf16.mxu0 0
  %2076 = vmatpush1.bf16.msra.mxu0 0
  %2077 = vmatprep.subr.bf16.mxu0 0
  %2078 = vmatpush1.bf16.msra.mxu0 0
  %2079 = vmatprep.subr.bf16.mxu0 0
  %2080 = vmatpush1.bf16.msra.mxu0 0
  %2081 = vmatprep.subr.bf16.mxu0 0
  %2082 = vmatpush1.bf16.msra.mxu0 0
  %2083 = vmatprep.subr.bf16.mxu0 0
  %2084 = vmatpush1.bf16.msra.mxu0 0
  %2085 = vmatprep.subr.bf16.mxu0 0
  %2086 = vmatpush1.bf16.msra.mxu0 0
  %2087 = vmatprep.subr.bf16.mxu0 0
  %2088 = vmatpush1.bf16.msra.mxu0 0
  %2089 = vmatprep.subr.bf16.mxu0 0
  %2090 = vmatpush1.bf16.msra.mxu0 0
  %2091 = vmatprep.subr.bf16.mxu0 0
  %2092 = vmatpush1.bf16.msra.mxu0 0
  %2093 = vmatprep.subr.bf16.mxu0 0
  %2094 = vmatpush1.bf16.msra.mxu0 0
  %2095 = vmatprep.subr.bf16.mxu0 0
  %2096 = vmatpush1.bf16.msra.mxu0 0
  %2097 = vmatprep.subr.bf16.mxu0 0
  %2098 = vmatpush1.bf16.msra.mxu0 0
  %2099 = vmatprep.subr.bf16.mxu0 0
  %2100 = vmatpush1.bf16.msra.mxu0 0
  %2101 = vmatprep.subr.bf16.mxu0 0
  %2102 = vmatpush1.bf16.msra.mxu0 0
  %2103 = vmatprep.mubr.bf16.mxu0 0
  %2104 = vmatmul.mubr.bf16.gmra.mrb[0].mxu0 %v2069
  %v2105 = vpop.f32.mrb[0].mxu0
  %v2106 = vadd.f32 0.0, %v2105
  %v2107 = vpop.f32.mrb[0].mxu0
  %v2108 = vpop.f32.mrb[0].mxu0
  %v2109 = vadd.f32 0.0, %v2108
  %v2110 = vpop.f32.mrb[0].mxu0
  %2111 = vdwg.mxu0
  %v2112 = vpack.c.bf16 %v1995, %v1992
  %v2113 = vpack.c.bf16 %v2109, %v2106
  %s2114 = scalar_lea.vmem %s11, 16
  %v2115 = vld [vmem:[%s2114] sm:$0xf]
  %v2116 = vld [vmem:[%s2114 + $0x4] sm:$0xf]
  %s2117 = scalar_lea.vmem %s5, 48
  %v2118 = vld [vmem:[%s2117] sm:$0xf]
  %v2119 = vld [vmem:[%s2117 + $0x4] sm:$0xf]
  %v2120 = vld [vmem:[%s2117 + $0x8] sm:$0xf]
  %v2121 = vld [vmem:[%s2117 + $0xc] sm:$0xf]
  %s2122 = scalar_lea.vmem %s8, 3
  %v2123 = vld [vmem:[%s2122] sm:$0x1]
  %v2125 = vlaneseq
  %v2126 = vshrl.u32 %v2125, 7
  %v2127 = vsub.s32 0, %v2126
  %v2128 = vrot.slane %v2123, %v2127
  %v2134 = vunpack.c.l.b16 %v2118
  %v2135 = vunpack.c.l.b16 %v2119
  %v2136 = vunpack.c.l.b16 %v2120
  %v2137 = vunpack.c.l.b16 %v2121
  %v2138 = vpack.c.b16 %v2135, %v2134
  %v2139 = vpack.c.b16 %v2137, %v2136
  %2142 = vmatprep.subr.bf16.mxu0 0
  %2143 = vmatpush1.bf16.msra.mxu0 %v2138
  %2144 = vmatprep.subr.bf16.mxu0 0
  %2145 = vmatpush1.bf16.msra.mxu0 %v2139
  %2146 = vmatprep.subr.bf16.mxu0 0
  %2147 = vmatpush1.bf16.msra.mxu0 0
  %2148 = vmatprep.subr.bf16.mxu0 0
  %2149 = vmatpush1.bf16.msra.mxu0 0
  %2150 = vmatprep.subr.bf16.mxu0 0
  %2151 = vmatpush1.bf16.msra.mxu0 0
  %2152 = vmatprep.subr.bf16.mxu0 0
  %2153 = vmatpush1.bf16.msra.mxu0 0
  %2154 = vmatprep.subr.bf16.mxu0 0
  %2155 = vmatpush1.bf16.msra.mxu0 0
  %2156 = vmatprep.subr.bf16.mxu0 0
  %2157 = vmatpush1.bf16.msra.mxu0 0
  %2158 = vmatprep.subr.bf16.mxu0 0
  %2159 = vmatpush1.bf16.msra.mxu0 0
  %2160 = vmatprep.subr.bf16.mxu0 0
  %2161 = vmatpush1.bf16.msra.mxu0 0
  %2162 = vmatprep.subr.bf16.mxu0 0
  %2163 = vmatpush1.bf16.msra.mxu0 0
  %2164 = vmatprep.subr.bf16.mxu0 0
  %2165 = vmatpush1.bf16.msra.mxu0 0
  %2166 = vmatprep.subr.bf16.mxu0 0
  %2167 = vmatpush1.bf16.msra.mxu0 0
  %2168 = vmatprep.subr.bf16.mxu0 0
  %2169 = vmatpush1.bf16.msra.mxu0 0
  %2170 = vmatprep.subr.bf16.mxu0 0
  %2171 = vmatpush1.bf16.msra.mxu0 0
  %2172 = vmatprep.subr.bf16.mxu0 0
  %2173 = vmatpush1.bf16.msra.mxu0 0
  %2174 = vmatprep.mubr.bf16.mxu0 0
  %2175 = vmatmul.mubr.bf16.gmra.mrb[0].mxu0 %v1676
  %v2176 = vpop.f32.mrb[0].mxu0
  %v2177 = vadd.f32 %v2128, %v2176
  %v2178 = vpop.f32.mrb[0].mxu0
  %v2179 = vpop.f32.mrb[0].mxu0
  %v2180 = vadd.f32 %v2128, %v2179
  %v2181 = vpop.f32.mrb[0].mxu0
  %2182 = vmatprep.mubr.bf16.mxu0 0
  %2183 = vmatmul.mubr.bf16.gmra.mrb[0].mxu0 %v1679
  %v2184 = vpop.f32.mrb[0].mxu0
  %v2185 = vadd.f32 %v2128, %v2184
  %v2186 = vpop.f32.mrb[0].mxu0
  %v2187 = vpop.f32.mrb[0].mxu0
  %v2188 = vadd.f32 %v2128, %v2187
  %v2189 = vpop.f32.mrb[0].mxu0
  %2190 = vdwg.mxu0
  %s2191 = scalar_lea.vmem %s6, 48
  %v2192 = vld [vmem:[%s2191] sm:$0xf]
  %v2193 = vld [vmem:[%s2191 + $0x4] sm:$0xf]
  %v2194 = vld [vmem:[%s2191 + $0x8] sm:$0xf]
  %v2195 = vld [vmem:[%s2191 + $0xc] sm:$0xf]
  %s2196 = scalar_lea.vmem %s9, 3
  %v2197 = vld [vmem:[%s2196] sm:$0x1]
  %v2199 = vlaneseq
  %v2200 = vshrl.u32 %v2199, 7
  %v2201 = vsub.s32 0, %v2200
  %v2202 = vrot.slane %v2197, %v2201
  %v2208 = vunpack.c.l.b16 %v2192
  %v2209 = vunpack.c.l.b16 %v2193
  %v2210 = vunpack.c.l.b16 %v2194
  %v2211 = vunpack.c.l.b16 %v2195
  %v2212 = vpack.c.b16 %v2209, %v2208
  %v2213 = vpack.c.b16 %v2211, %v2210
  %2216 = vmatprep.subr.bf16.mxu0 0
  %2217 = vmatpush1.bf16.msra.mxu0 %v2212
  %2218 = vmatprep.subr.bf16.mxu0 0
  %2219 = vmatpush1.bf16.msra.mxu0 %v2213
  %2220 = vmatprep.subr.bf16.mxu0 0
  %2221 = vmatpush1.bf16.msra.mxu0 0
  %2222 = vmatprep.subr.bf16.mxu0 0
  %2223 = vmatpush1.bf16.msra.mxu0 0
  %2224 = vmatprep.subr.bf16.mxu0 0
  %2225 = vmatpush1.bf16.msra.mxu0 0
  %2226 = vmatprep.subr.bf16.mxu0 0
  %2227 = vmatpush1.bf16.msra.mxu0 0
  %2228 = vmatprep.subr.bf16.mxu0 0
  %2229 = vmatpush1.bf16.msra.mxu0 0
  %2230 = vmatprep.subr.bf16.mxu0 0
  %2231 = vmatpush1.bf16.msra.mxu0 0
  %2232 = vmatprep.subr.bf16.mxu0 0
  %2233 = vmatpush1.bf16.msra.mxu0 0
  %2234 = vmatprep.subr.bf16.mxu0 0
  %2235 = vmatpush1.bf16.msra.mxu0 0
  %2236 = vmatprep.subr.bf16.mxu0 0
  %2237 = vmatpush1.bf16.msra.mxu0 0
  %2238 = vmatprep.subr.bf16.mxu0 0
  %2239 = vmatpush1.bf16.msra.mxu0 0
  %2240 = vmatprep.subr.bf16.mxu0 0
  %2241 = vmatpush1.bf16.msra.mxu0 0
  %2242 = vmatprep.subr.bf16.mxu0 0
  %2243 = vmatpush1.bf16.msra.mxu0 0
  %2244 = vmatprep.subr.bf16.mxu0 0
  %2245 = vmatpush1.bf16.msra.mxu0 0
  %2246 = vmatprep.subr.bf16.mxu0 0
  %2247 = vmatpush1.bf16.msra.mxu0 0
  %2248 = vmatprep.mubr.bf16.mxu0 0
  %2249 = vmatmul.mubr.bf16.gmra.mrb[0].mxu0 %v1676
  %v2250 = vpop.f32.mrb[0].mxu0
  %v2251 = vadd.f32 %v2202, %v2250
  %v2252 = vpop.f32.mrb[0].mxu0
  %v2253 = vpop.f32.mrb[0].mxu0
  %v2254 = vadd.f32 %v2202, %v2253
  %v2255 = vpop.f32.mrb[0].mxu0
  %2256 = vmatprep.mubr.bf16.mxu0 0
  %2257 = vmatmul.mubr.bf16.gmra.mrb[0].mxu0 %v1679
  %v2258 = vpop.f32.mrb[0].mxu0
  %v2259 = vadd.f32 %v2202, %v2258
  %v2260 = vpop.f32.mrb[0].mxu0
  %v2261 = vpop.f32.mrb[0].mxu0
  %v2262 = vadd.f32 %v2202, %v2261
  %v2263 = vpop.f32.mrb[0].mxu0
  %2264 = vdwg.mxu0
  %s2265 = scalar_lea.vmem %s7, 48
  %v2266 = vld [vmem:[%s2265] sm:$0xf]
  %v2267 = vld [vmem:[%s2265 + $0x4] sm:$0xf]
  %v2268 = vld [vmem:[%s2265 + $0x8] sm:$0xf]
  %v2269 = vld [vmem:[%s2265 + $0xc] sm:$0xf]
  %s2270 = scalar_lea.vmem %s10, 3
  %v2271 = vld [vmem:[%s2270] sm:$0x1]
  %v2273 = vlaneseq
  %v2274 = vshrl.u32 %v2273, 7
  %v2275 = vsub.s32 0, %v2274
  %v2276 = vrot.slane %v2271, %v2275
  %v2282 = vunpack.c.l.b16 %v2266
  %v2283 = vunpack.c.l.b16 %v2267
  %v2284 = vunpack.c.l.b16 %v2268
  %v2285 = vunpack.c.l.b16 %v2269
  %v2286 = vpack.c.b16 %v2283, %v2282
  %v2287 = vpack.c.b16 %v2285, %v2284
  %2290 = vmatprep.subr.bf16.mxu0 0
  %2291 = vmatpush1.bf16.msra.mxu0 %v2286
  %2292 = vmatprep.subr.bf16.mxu0 0
  %2293 = vmatpush1.bf16.msra.mxu0 %v2287
  %2294 = vmatprep.subr.bf16.mxu0 0
  %2295 = vmatpush1.bf16.msra.mxu0 0
  %2296 = vmatprep.subr.bf16.mxu0 0
  %2297 = vmatpush1.bf16.msra.mxu0 0
  %2298 = vmatprep.subr.bf16.mxu0 0
  %2299 = vmatpush1.bf16.msra.mxu0 0
  %2300 = vmatprep.subr.bf16.mxu0 0
  %2301 = vmatpush1.bf16.msra.mxu0 0
  %2302 = vmatprep.subr.bf16.mxu0 0
  %2303 = vmatpush1.bf16.msra.mxu0 0
  %2304 = vmatprep.subr.bf16.mxu0 0
  %2305 = vmatpush1.bf16.msra.mxu0 0
  %2306 = vmatprep.subr.bf16.mxu0 0
  %2307 = vmatpush1.bf16.msra.mxu0 0
  %2308 = vmatprep.subr.bf16.mxu0 0
  %2309 = vmatpush1.bf16.msra.mxu0 0
  %2310 = vmatprep.subr.bf16.mxu0 0
  %2311 = vmatpush1.bf16.msra.mxu0 0
  %2312 = vmatprep.subr.bf16.mxu0 0
  %2313 = vmatpush1.bf16.msra.mxu0 0
  %2314 = vmatprep.subr.bf16.mxu0 0
  %2315 = vmatpush1.bf16.msra.mxu0 0
  %2316 = vmatprep.subr.bf16.mxu0 0
  %2317 = vmatpush1.bf16.msra.mxu0 0
  %2318 = vmatprep.subr.bf16.mxu0 0
  %2319 = vmatpush1.bf16.msra.mxu0 0
  %2320 = vmatprep.subr.bf16.mxu0 0
  %2321 = vmatpush1.bf16.msra.mxu0 0
  %2322 = vmatprep.mubr.bf16.mxu0 0
  %2323 = vmatmul.mubr.bf16.gmra.mrb[0].mxu0 %v1676
  %v2324 = vpop.f32.mrb[0].mxu0
  %v2325 = vadd.f32 %v2276, %v2324
  %v2326 = vpop.f32.mrb[0].mxu0
  %v2327 = vpop.f32.mrb[0].mxu0
  %v2328 = vadd.f32 %v2276, %v2327
  %v2329 = vpop.f32.mrb[0].mxu0
  %2330 = vmatprep.mubr.bf16.mxu0 0
  %2331 = vmatmul.mubr.bf16.gmra.mrb[0].mxu0 %v1679
  %v2332 = vpop.f32.mrb[0].mxu0
  %v2333 = vadd.f32 %v2276, %v2332
  %v2334 = vpop.f32.mrb[0].mxu0
  %v2335 = vpop.f32.mrb[0].mxu0
  %v2336 = vadd.f32 %v2276, %v2335
  %v2337 = vpop.f32.mrb[0].mxu0
  %2338 = vdwg.mxu0
  %v2339 = vpack.c.bf16 %v2180, %v2177
  %v2340 = vpack.c.bf16 %v2188, %v2185
  %v2341 = vpack.c.bf16 %v2254, %v2251
  %v2342 = vpack.c.bf16 %v2262, %v2259
  %v2343 = vpack.c.bf16 %v2328, %v2325
  %v2344 = vpack.c.bf16 %v2336, %v2333
  %v2346 = vsel %vm420, %v2339, 0
  %v2349 = vsel %vm420, %v2341, 0
  %2351 = vmatprep.subr.bf16.mxu0 0
  %2352 = vmatpush1.bf16.xpose.msra.mxu0 %v2349
  %2353 = vmatprep.subr.bf16.mxu0 0
  %2354 = vmatpush1.bf16.xpose.msra.mxu0 0
  %2355 = vmatprep.subr.bf16.mxu0 0
  %2356 = vmatpush1.bf16.xpose.msra.mxu0 0
  %2357 = vmatprep.subr.bf16.mxu0 0
  %2358 = vmatpush1.bf16.xpose.msra.mxu0 0
  %2359 = vmatprep.subr.bf16.mxu0 0
  %2360 = vmatpush1.bf16.xpose.msra.mxu0 0
  %2361 = vmatprep.subr.bf16.mxu0 0
  %2362 = vmatpush1.bf16.xpose.msra.mxu0 0
  %2363 = vmatprep.subr.bf16.mxu0 0
  %2364 = vmatpush1.bf16.xpose.msra.mxu0 0
  %2365 = vmatprep.subr.bf16.mxu0 0
  %2366 = vmatpush1.bf16.xpose.msra.mxu0 0
  %2367 = vmatprep.subr.bf16.mxu0 0
  %2368 = vmatpush1.bf16.xpose.msra.mxu0 0
  %2369 = vmatprep.subr.bf16.mxu0 0
  %2370 = vmatpush1.bf16.xpose.msra.mxu0 0
  %2371 = vmatprep.subr.bf16.mxu0 0
  %2372 = vmatpush1.bf16.xpose.msra.mxu0 0
  %2373 = vmatprep.subr.bf16.mxu0 0
  %2374 = vmatpush1.bf16.xpose.msra.mxu0 0
  %2375 = vmatprep.subr.bf16.mxu0 0
  %2376 = vmatpush1.bf16.xpose.msra.mxu0 0
  %2377 = vmatprep.subr.bf16.mxu0 0
  %2378 = vmatpush1.bf16.xpose.msra.mxu0 0
  %2379 = vmatprep.subr.bf16.mxu0 0
  %2380 = vmatpush1.bf16.xpose.msra.mxu0 0
  %2381 = vmatprep.subr.bf16.mxu0 0
  %2382 = vmatpush1.bf16.xpose.msra.mxu0 0
  %2383 = vmatprep.mubr.bf16.mxu0 0
  %2384 = vmatmul.mubr.bf16.gmra.mrb[0].mxu0 %v2346
  %v2385 = vpop.f32.mrb[0].mxu0
  %v2386 = vadd.f32 %v418, %v2385
  %v2387 = vpop.f32.mrb[0].mxu0
  %v2388 = vpop.f32.mrb[0].mxu0
  %v2389 = vadd.f32 %v418, %v2388
  %v2390 = vpop.f32.mrb[0].mxu0
  %2391 = vdwg.mxu0
  %v2392 = vsel %vm420, %v2386, -inf
  %2393 = vmax.xlane.f32.xlu0 %v2392
  %v2394 = vpop.xlane.xlu0 %2393
  %v2395 = vsel %vm420, %v2389, -inf
  %2396 = vmax.xlane.f32.xlu0 %v2395
  %v2397 = vpop.xlane.xlu0 %2396
  %v2398 = vsub.f32 %v2386, %v2394
  %v2399 = vsub.f32 %v2389, %v2397
  %v2400 = vmul.f32 %v2398, 1.442695
  %v2401 = vpow.pop %v2400
  %v2402 = vmul.f32 %v2399, 1.442695
  %v2403 = vpow.pop %v2402
  %v2404 = vsel %vm420, %v2401, 0.0
  %2405 = vadd.xlane.f32.xlu0 %v2404
  %v2406 = vpop.xlane.xlu0 %2405
  %v2407 = vsel %vm420, %v2403, 0.0
  %2408 = vadd.xlane.f32.xlu0 %v2407
  %v2409 = vpop.xlane.xlu0 %2408
  %v2410 = vrcp.pop %v2406
  %v2411 = vrcp.pop %v2409
  %v2412 = vmul.f32 %v2401, %v2410
  %v2413 = vmul.f32 %v2403, %v2411
  %v2414 = vpack.c.bf16 %v2413, %v2412
  %v2416 = vsel %vm420, %v2414, 0
  %2418 = vmatprep.subr.bf16.mxu0 0
  %2419 = vmatpush1.bf16.msra.mxu0 %v2343
  %2420 = vmatprep.subr.bf16.mxu0 0
  %2421 = vmatpush1.bf16.msra.mxu0 0
  %2422 = vmatprep.subr.bf16.mxu0 0
  %2423 = vmatpush1.bf16.msra.mxu0 0
  %2424 = vmatprep.subr.bf16.mxu0 0
  %2425 = vmatpush1.bf16.msra.mxu0 0
  %2426 = vmatprep.subr.bf16.mxu0 0
  %2427 = vmatpush1.bf16.msra.mxu0 0
  %2428 = vmatprep.subr.bf16.mxu0 0
  %2429 = vmatpush1.bf16.msra.mxu0 0
  %2430 = vmatprep.subr.bf16.mxu0 0
  %2431 = vmatpush1.bf16.msra.mxu0 0
  %2432 = vmatprep.subr.bf16.mxu0 0
  %2433 = vmatpush1.bf16.msra.mxu0 0
  %2434 = vmatprep.subr.bf16.mxu0 0
  %2435 = vmatpush1.bf16.msra.mxu0 0
  %2436 = vmatprep.subr.bf16.mxu0 0
  %2437 = vmatpush1.bf16.msra.mxu0 0
  %2438 = vmatprep.subr.bf16.mxu0 0
  %2439 = vmatpush1.bf16.msra.mxu0 0
  %2440 = vmatprep.subr.bf16.mxu0 0
  %2441 = vmatpush1.bf16.msra.mxu0 0
  %2442 = vmatprep.subr.bf16.mxu0 0
  %2443 = vmatpush1.bf16.msra.mxu0 0
  %2444 = vmatprep.subr.bf16.mxu0 0
  %2445 = vmatpush1.bf16.msra.mxu0 0
  %2446 = vmatprep.subr.bf16.mxu0 0
  %2447 = vmatpush1.bf16.msra.mxu0 0
  %2448 = vmatprep.subr.bf16.mxu0 0
  %2449 = vmatpush1.bf16.msra.mxu0 0
  %2450 = vmatprep.mubr.bf16.mxu0 0
  %2451 = vmatmul.mubr.bf16.gmra.mrb[0].mxu0 %v2416
  %v2452 = vpop.f32.mrb[0].mxu0
  %v2453 = vadd.f32 0.0, %v2452
  %v2454 = vpop.f32.mrb[0].mxu0
  %v2455 = vpop.f32.mrb[0].mxu0
  %v2456 = vadd.f32 0.0, %v2455
  %v2457 = vpop.f32.mrb[0].mxu0
  %2458 = vdwg.mxu0
  %v2460 = vsel %vm420, %v2340, 0
  %v2463 = vsel %vm420, %v2342, 0
  %2465 = vmatprep.subr.bf16.mxu0 0
  %2466 = vmatpush1.bf16.xpose.msra.mxu0 %v2463
  %2467 = vmatprep.subr.bf16.mxu0 0
  %2468 = vmatpush1.bf16.xpose.msra.mxu0 0
  %2469 = vmatprep.subr.bf16.mxu0 0
  %2470 = vmatpush1.bf16.xpose.msra.mxu0 0
  %2471 = vmatprep.subr.bf16.mxu0 0
  %2472 = vmatpush1.bf16.xpose.msra.mxu0 0
  %2473 = vmatprep.subr.bf16.mxu0 0
  %2474 = vmatpush1.bf16.xpose.msra.mxu0 0
  %2475 = vmatprep.subr.bf16.mxu0 0
  %2476 = vmatpush1.bf16.xpose.msra.mxu0 0
  %2477 = vmatprep.subr.bf16.mxu0 0
  %2478 = vmatpush1.bf16.xpose.msra.mxu0 0
  %2479 = vmatprep.subr.bf16.mxu0 0
  %2480 = vmatpush1.bf16.xpose.msra.mxu0 0
  %2481 = vmatprep.subr.bf16.mxu0 0
  %2482 = vmatpush1.bf16.xpose.msra.mxu0 0
  %2483 = vmatprep.subr.bf16.mxu0 0
  %2484 = vmatpush1.bf16.xpose.msra.mxu0 0
  %2485 = vmatprep.subr.bf16.mxu0 0
  %2486 = vmatpush1.bf16.xpose.msra.mxu0 0
  %2487 = vmatprep.subr.bf16.mxu0 0
  %2488 = vmatpush1.bf16.xpose.msra.mxu0 0
  %2489 = vmatprep.subr.bf16.mxu0 0
  %2490 = vmatpush1.bf16.xpose.msra.mxu0 0
  %2491 = vmatprep.subr.bf16.mxu0 0
  %2492 = vmatpush1.bf16.xpose.msra.mxu0 0
  %2493 = vmatprep.subr.bf16.mxu0 0
  %2494 = vmatpush1.bf16.xpose.msra.mxu0 0
  %2495 = vmatprep.subr.bf16.mxu0 0
  %2496 = vmatpush1.bf16.xpose.msra.mxu0 0
  %2497 = vmatprep.mubr.bf16.mxu0 0
  %2498 = vmatmul.mubr.bf16.gmra.mrb[0].mxu0 %v2460
  %v2499 = vpop.f32.mrb[0].mxu0
  %v2500 = vadd.f32 %v541, %v2499
  %v2501 = vpop.f32.mrb[0].mxu0
  %v2502 = vpop.f32.mrb[0].mxu0
  %v2503 = vadd.f32 %v541, %v2502
  %v2504 = vpop.f32.mrb[0].mxu0
  %2505 = vdwg.mxu0
  %v2506 = vsel %vm420, %v2500, -inf
  %2507 = vmax.xlane.f32.xlu0 %v2506
  %v2508 = vpop.xlane.xlu0 %2507
  %v2509 = vsel %vm420, %v2503, -inf
  %2510 = vmax.xlane.f32.xlu0 %v2509
  %v2511 = vpop.xlane.xlu0 %2510
  %v2512 = vsub.f32 %v2500, %v2508
  %v2513 = vsub.f32 %v2503, %v2511
  %v2514 = vmul.f32 %v2512, 1.442695
  %v2515 = vpow.pop %v2514
  %v2516 = vmul.f32 %v2513, 1.442695
  %v2517 = vpow.pop %v2516
  %v2518 = vsel %vm420, %v2515, 0.0
  %2519 = vadd.xlane.f32.xlu0 %v2518
  %v2520 = vpop.xlane.xlu0 %2519
  %v2521 = vsel %vm420, %v2517, 0.0
  %2522 = vadd.xlane.f32.xlu0 %v2521
  %v2523 = vpop.xlane.xlu0 %2522
  %v2524 = vrcp.pop %v2520
  %v2525 = vrcp.pop %v2523
  %v2526 = vmul.f32 %v2515, %v2524
  %v2527 = vmul.f32 %v2517, %v2525
  %v2528 = vpack.c.bf16 %v2527, %v2526
  %v2530 = vsel %vm420, %v2528, 0
  %2532 = vmatprep.subr.bf16.mxu0 0
  %2533 = vmatpush1.bf16.msra.mxu0 %v2344
  %2534 = vmatprep.subr.bf16.mxu0 0
  %2535 = vmatpush1.bf16.msra.mxu0 0
  %2536 = vmatprep.subr.bf16.mxu0 0
  %2537 = vmatpush1.bf16.msra.mxu0 0
  %2538 = vmatprep.subr.bf16.mxu0 0
  %2539 = vmatpush1.bf16.msra.mxu0 0
  %2540 = vmatprep.subr.bf16.mxu0 0
  %2541 = vmatpush1.bf16.msra.mxu0 0
  %2542 = vmatprep.subr.bf16.mxu0 0
  %2543 = vmatpush1.bf16.msra.mxu0 0
  %2544 = vmatprep.subr.bf16.mxu0 0
  %2545 = vmatpush1.bf16.msra.mxu0 0
  %2546 = vmatprep.subr.bf16.mxu0 0
  %2547 = vmatpush1.bf16.msra.mxu0 0
  %2548 = vmatprep.subr.bf16.mxu0 0
  %2549 = vmatpush1.bf16.msra.mxu0 0
  %2550 = vmatprep.subr.bf16.mxu0 0
  %2551 = vmatpush1.bf16.msra.mxu0 0
  %2552 = vmatprep.subr.bf16.mxu0 0
  %2553 = vmatpush1.bf16.msra.mxu0 0
  %2554 = vmatprep.subr.bf16.mxu0 0
  %2555 = vmatpush1.bf16.msra.mxu0 0
  %2556 = vmatprep.subr.bf16.mxu0 0
  %2557 = vmatpush1.bf16.msra.mxu0 0
  %2558 = vmatprep.subr.bf16.mxu0 0
  %2559 = vmatpush1.bf16.msra.mxu0 0
  %2560 = vmatprep.subr.bf16.mxu0 0
  %2561 = vmatpush1.bf16.msra.mxu0 0
  %2562 = vmatprep.subr.bf16.mxu0 0
  %2563 = vmatpush1.bf16.msra.mxu0 0
  %2564 = vmatprep.mubr.bf16.mxu0 0
  %2565 = vmatmul.mubr.bf16.gmra.mrb[0].mxu0 %v2530
  %v2566 = vpop.f32.mrb[0].mxu0
  %v2567 = vadd.f32 0.0, %v2566
  %v2568 = vpop.f32.mrb[0].mxu0
  %v2569 = vpop.f32.mrb[0].mxu0
  %v2570 = vadd.f32 0.0, %v2569
  %v2571 = vpop.f32.mrb[0].mxu0
  %2572 = vdwg.mxu0
  %v2573 = vpack.c.bf16 %v2456, %v2453
  %v2574 = vpack.c.bf16 %v2570, %v2567
  %s2575 = scalar_lea.vmem %s11, 24
  %v2576 = vld [vmem:[%s2575] sm:$0xf]
  %v2577 = vld [vmem:[%s2575 + $0x4] sm:$0xf]
  %v2580 = vunpack.c.l.b16 %v2576
  %v2581 = vunpack.c.l.b16 %v2577
  %v2582 = vpack.c.b16 %v2581, %v2580
  %v2585 = vsel %vm420, %v2573, 0
  %v2588 = vsel %vm420, %v2574, 0
  %2590 = vmatprep.subr.bf16.mxu0 0
  %2591 = vmatpush1.bf16.msra.mxu0 %v2582
  %2592 = vmatprep.subr.bf16.mxu0 0
  %2593 = vmatpush1.bf16.msra.mxu0 0
  %2594 = vmatprep.subr.bf16.mxu0 0
  %2595 = vmatpush1.bf16.msra.mxu0 0
  %2596 = vmatprep.subr.bf16.mxu0 0
  %2597 = vmatpush1.bf16.msra.mxu0 0
  %2598 = vmatprep.subr.bf16.mxu0 0
  %2599 = vmatpush1.bf16.msra.mxu0 0
  %2600 = vmatprep.subr.bf16.mxu0 0
  %2601 = vmatpush1.bf16.msra.mxu0 0
  %2602 = vmatprep.subr.bf16.mxu0 0
  %2603 = vmatpush1.bf16.msra.mxu0 0
  %2604 = vmatprep.subr.bf16.mxu0 0
  %2605 = vmatpush1.bf16.msra.mxu0 0
  %2606 = vmatprep.subr.bf16.mxu0 0
  %2607 = vmatpush1.bf16.msra.mxu0 0
  %2608 = vmatprep.subr.bf16.mxu0 0
  %2609 = vmatpush1.bf16.msra.mxu0 0
  %2610 = vmatprep.subr.bf16.mxu0 0
  %2611 = vmatpush1.bf16.msra.mxu0 0
  %2612 = vmatprep.subr.bf16.mxu0 0
  %2613 = vmatpush1.bf16.msra.mxu0 0
  %2614 = vmatprep.subr.bf16.mxu0 0
  %2615 = vmatpush1.bf16.msra.mxu0 0
  %2616 = vmatprep.subr.bf16.mxu0 0
  %2617 = vmatpush1.bf16.msra.mxu0 0
  %2618 = vmatprep.subr.bf16.mxu0 0
  %2619 = vmatpush1.bf16.msra.mxu0 0
  %2620 = vmatprep.subr.bf16.mxu0 0
  %2621 = vmatpush1.bf16.msra.mxu0 0
  %2622 = vmatprep.mubr.bf16.mxu0 0
  %2623 = vmatmul.mubr.bf16.gmra.mrb[0].mxu0 %v2585
  %v2624 = vpop.f32.mrb[0].mxu0
  %v2625 = vadd.f32 0.0, %v2624
  %v2626 = vpop.f32.mrb[0].mxu0
  %v2627 = vpop.f32.mrb[0].mxu0
  %v2628 = vadd.f32 0.0, %v2627
  %v2629 = vpop.f32.mrb[0].mxu0
  %2630 = vmatprep.mubr.bf16.mxu0 0
  %2631 = vmatmul.mubr.bf16.gmra.mrb[0].mxu0 %v2588
  %v2632 = vpop.f32.mrb[0].mxu0
  %v2633 = vadd.f32 0.0, %v2632
  %v2634 = vpop.f32.mrb[0].mxu0
  %v2635 = vpop.f32.mrb[0].mxu0
  %v2636 = vadd.f32 0.0, %v2635
  %v2637 = vpop.f32.mrb[0].mxu0
  %2638 = vdwg.mxu0
  %v2641 = vunpack.c.l.b16 %v2115
  %v2642 = vunpack.c.l.b16 %v2116
  %v2643 = vpack.c.b16 %v2642, %v2641
  %v2646 = vsel %vm420, %v2112, 0
  %v2649 = vsel %vm420, %v2113, 0
  %2651 = vmatprep.subr.bf16.mxu0 0
  %2652 = vmatpush1.bf16.msra.mxu0 %v2643
  %2653 = vmatprep.subr.bf16.mxu0 0
  %2654 = vmatpush1.bf16.msra.mxu0 0
  %2655 = vmatprep.subr.bf16.mxu0 0
  %2656 = vmatpush1.bf16.msra.mxu0 0
  %2657 = vmatprep.subr.bf16.mxu0 0
  %2658 = vmatpush1.bf16.msra.mxu0 0
  %2659 = vmatprep.subr.bf16.mxu0 0
  %2660 = vmatpush1.bf16.msra.mxu0 0
  %2661 = vmatprep.subr.bf16.mxu0 0
  %2662 = vmatpush1.bf16.msra.mxu0 0
  %2663 = vmatprep.subr.bf16.mxu0 0
  %2664 = vmatpush1.bf16.msra.mxu0 0
  %2665 = vmatprep.subr.bf16.mxu0 0
  %2666 = vmatpush1.bf16.msra.mxu0 0
  %2667 = vmatprep.subr.bf16.mxu0 0
  %2668 = vmatpush1.bf16.msra.mxu0 0
  %2669 = vmatprep.subr.bf16.mxu0 0
  %2670 = vmatpush1.bf16.msra.mxu0 0
  %2671 = vmatprep.subr.bf16.mxu0 0
  %2672 = vmatpush1.bf16.msra.mxu0 0
  %2673 = vmatprep.subr.bf16.mxu0 0
  %2674 = vmatpush1.bf16.msra.mxu0 0
  %2675 = vmatprep.subr.bf16.mxu0 0
  %2676 = vmatpush1.bf16.msra.mxu0 0
  %2677 = vmatprep.subr.bf16.mxu0 0
  %2678 = vmatpush1.bf16.msra.mxu0 0
  %2679 = vmatprep.subr.bf16.mxu0 0
  %2680 = vmatpush1.bf16.msra.mxu0 0
  %2681 = vmatprep.subr.bf16.mxu0 0
  %2682 = vmatpush1.bf16.msra.mxu0 0
  %2683 = vmatprep.mubr.bf16.mxu0 0
  %2684 = vmatmul.mubr.bf16.gmra.mrb[0].mxu0 %v2646
  %v2685 = vpop.f32.mrb[0].mxu0
  %v2686 = vadd.f32 %v2625, %v2685
  %v2687 = vpop.f32.mrb[0].mxu0
  %v2688 = vpop.f32.mrb[0].mxu0
  %v2689 = vadd.f32 %v2628, %v2688
  %v2690 = vpop.f32.mrb[0].mxu0
  %2691 = vmatprep.mubr.bf16.mxu0 0
  %2692 = vmatmul.mubr.bf16.gmra.mrb[0].mxu0 %v2649
  %v2693 = vpop.f32.mrb[0].mxu0
  %v2694 = vadd.f32 %v2633, %v2693
  %v2695 = vpop.f32.mrb[0].mxu0
  %v2696 = vpop.f32.mrb[0].mxu0
  %v2697 = vadd.f32 %v2636, %v2696
  %v2698 = vpop.f32.mrb[0].mxu0
  %2699 = vdwg.mxu0
  %s2700 = scalar_lea.vmem %s12, 1
  %v2701 = vld [vmem:[%s2700] sm:$0x1]
  %v2703 = vlaneseq
  %v2704 = vshrl.u32 %v2703, 7
  %v2705 = vsub.s32 0, %v2704
  %v2706 = vrot.slane %v2701, %v2705
  %v2708 = vadd.f32 %v2686, %v2706
  %v2709 = vadd.f32 %v2689, %v2706
  %v2710 = vadd.f32 %v2694, %v2706
  %v2711 = vadd.f32 %v2697, %v2706
  %v2712 = vadd.f32 %v1644, %v2708
  %v2713 = vadd.f32 %v1645, %v2709
  %v2714 = vadd.f32 %v1646, %v2710
  %v2715 = vadd.f32 %v1647, %v2711
  %s2716 = scalar_lea.vmem %s13, 1
  %v2717 = vld [vmem:[%s2716] sm:$0x1]
  %s2718 = scalar_lea.vmem %s14, 1
  %v2719 = vld [vmem:[%s2718] sm:$0x1]
  %v2720 = vsel %vm97, %v2712, 0.0
  %2721 = vadd.xlane.f32.xlu0 %v2720
  %v2722 = vpop.xlane.xlu0 %2721
  %v2723 = vsel %vm97, %v2713, 0.0
  %2724 = vadd.xlane.f32.xlu0 %v2723
  %v2725 = vpop.xlane.xlu0 %2724
  %v2726 = vsel %vm97, %v2714, 0.0
  %2727 = vadd.xlane.f32.xlu0 %v2726
  %v2728 = vpop.xlane.xlu0 %2727
  %v2729 = vsel %vm97, %v2715, 0.0
  %2730 = vadd.xlane.f32.xlu0 %v2729
  %v2731 = vpop.xlane.xlu0 %2730
  %v2732 = vmul.f32 %v2722, %v110
  %v2733 = vmul.f32 %v2725, %v110
  %v2734 = vmul.f32 %v2728, %v110
  %v2735 = vmul.f32 %v2731, %v110
  %v2736 = vmul.f32 %v2712, %v2712
  %v2737 = vmul.f32 %v2713, %v2713
  %v2738 = vmul.f32 %v2714, %v2714
  %v2739 = vmul.f32 %v2715, %v2715
  %v2740 = vsel %vm97, %v2736, 0.0
  %2741 = vadd.xlane.f32.xlu0 %v2740
  %v2742 = vpop.xlane.xlu0 %2741
  %v2743 = vsel %vm97, %v2737, 0.0
  %2744 = vadd.xlane.f32.xlu0 %v2743
  %v2745 = vpop.xlane.xlu0 %2744
  %v2746 = vsel %vm97, %v2738, 0.0
  %2747 = vadd.xlane.f32.xlu0 %v2746
  %v2748 = vpop.xlane.xlu0 %2747
  %v2749 = vsel %vm97, %v2739, 0.0
  %2750 = vadd.xlane.f32.xlu0 %v2749
  %v2751 = vpop.xlane.xlu0 %2750
  %v2752 = vmul.f32 %v2742, %v110
  %v2753 = vmul.f32 %v2745, %v110
  %v2754 = vmul.f32 %v2748, %v110
  %v2755 = vmul.f32 %v2751, %v110
  %v2756 = vmul.f32 %v2732, %v2732
  %v2757 = vmul.f32 %v2733, %v2733
  %v2758 = vmul.f32 %v2734, %v2734
  %v2759 = vmul.f32 %v2735, %v2735
  %v2760 = vsub.f32 %v2752, %v2756
  %v2761 = vsub.f32 %v2753, %v2757
  %v2762 = vsub.f32 %v2754, %v2758
  %v2763 = vsub.f32 %v2755, %v2759
  %v2764 = vmax.f32 %v2760, 0.0
  %v2765 = vmax.f32 %v2761, 0.0
  %v2766 = vmax.f32 %v2762, 0.0
  %v2767 = vmax.f32 %v2763, 0.0
  %v2768 = vsub.f32 %v2712, %v2732
  %v2769 = vsub.f32 %v2713, %v2733
  %v2770 = vsub.f32 %v2714, %v2734
  %v2771 = vsub.f32 %v2715, %v2735
  %v2772 = vadd.f32 %v2764, 1e-12
  %v2773 = vadd.f32 %v2765, 1e-12
  %v2774 = vadd.f32 %v2766, 1e-12
  %v2775 = vadd.f32 %v2767, 1e-12
  %v2776 = vrsqrt.pop %v2772
  %v2777 = vrsqrt.pop %v2773
  %v2778 = vrsqrt.pop %v2774
  %v2779 = vrsqrt.pop %v2775
  %v2780 = vmul.f32 %v2768, %v2776
  %v2781 = vmul.f32 %v2769, %v2777
  %v2782 = vmul.f32 %v2770, %v2778
  %v2783 = vmul.f32 %v2771, %v2779
  %v2785 = vlaneseq
  %v2786 = vshrl.u32 %v2785, 7
  %v2787 = vsub.s32 0, %v2786
  %v2788 = vrot.slane %v2717, %v2787
  %v2790 = vmul.f32 %v2780, %v2788
  %v2791 = vmul.f32 %v2781, %v2788
  %v2792 = vmul.f32 %v2782, %v2788
  %v2793 = vmul.f32 %v2783, %v2788
  %v2795 = vlaneseq
  %v2796 = vshrl.u32 %v2795, 7
  %v2797 = vsub.s32 0, %v2796
  %v2798 = vrot.slane %v2719, %v2797
  %v2800 = vadd.f32 %v2790, %v2798
  %v2801 = vadd.f32 %v2791, %v2798
  %v2802 = vadd.f32 %v2792, %v2798
  %v2803 = vadd.f32 %v2793, %v2798
  %v2804 = vpack.c.bf16 %v2801, %v2800
  %v2805 = vpack.c.bf16 %v2803, %v2802
  %s2806 = scalar_lea.vmem %s15, 16
  %v2807 = vld [vmem:[%s2806] sm:$0xf]
  %v2808 = vld [vmem:[%s2806 + $0x4] sm:$0xf]
  %v2809 = vld [vmem:[%s2806 + $0x8] sm:$0xf]
  %v2810 = vld [vmem:[%s2806 + $0xc] sm:$0xf]
  %s2811 = scalar_lea.vmem %s16, 1
  %v2812 = vld [vmem:[%s2811] sm:$0x1]
  %v2814 = vlaneseq
  %v2815 = vshrl.u32 %v2814, 7
  %v2816 = vsub.s32 0, %v2815
  %v2817 = vrot.slane %v2812, %v2816
  %v2823 = vunpack.c.l.b16 %v2807
  %v2824 = vunpack.c.l.b16 %v2808
  %v2825 = vunpack.c.l.b16 %v2809
  %v2826 = vunpack.c.l.b16 %v2810
  %v2827 = vpack.c.b16 %v2824, %v2823
  %v2828 = vpack.c.b16 %v2826, %v2825
  %v2832 = vsel %vm97, %v2804, 0
  %v2835 = vsel %vm97, %v2805, 0
  %2837 = vmatprep.subr.bf16.mxu0 0
  %2838 = vmatpush1.bf16.msra.mxu0 %v2827
  %2839 = vmatprep.subr.bf16.mxu0 0
  %2840 = vmatpush1.bf16.msra.mxu0 %v2828
  %2841 = vmatprep.subr.bf16.mxu0 0
  %2842 = vmatpush1.bf16.msra.mxu0 0
  %2843 = vmatprep.subr.bf16.mxu0 0
  %2844 = vmatpush1.bf16.msra.mxu0 0
  %2845 = vmatprep.subr.bf16.mxu0 0
  %2846 = vmatpush1.bf16.msra.mxu0 0
  %2847 = vmatprep.subr.bf16.mxu0 0
  %2848 = vmatpush1.bf16.msra.mxu0 0
  %2849 = vmatprep.subr.bf16.mxu0 0
  %2850 = vmatpush1.bf16.msra.mxu0 0
  %2851 = vmatprep.subr.bf16.mxu0 0
  %2852 = vmatpush1.bf16.msra.mxu0 0
  %2853 = vmatprep.subr.bf16.mxu0 0
  %2854 = vmatpush1.bf16.msra.mxu0 0
  %2855 = vmatprep.subr.bf16.mxu0 0
  %2856 = vmatpush1.bf16.msra.mxu0 0
  %2857 = vmatprep.subr.bf16.mxu0 0
  %2858 = vmatpush1.bf16.msra.mxu0 0
  %2859 = vmatprep.subr.bf16.mxu0 0
  %2860 = vmatpush1.bf16.msra.mxu0 0
  %2861 = vmatprep.subr.bf16.mxu0 0
  %2862 = vmatpush1.bf16.msra.mxu0 0
  %2863 = vmatprep.subr.bf16.mxu0 0
  %2864 = vmatpush1.bf16.msra.mxu0 0
  %2865 = vmatprep.subr.bf16.mxu0 0
  %2866 = vmatpush1.bf16.msra.mxu0 0
  %2867 = vmatprep.subr.bf16.mxu0 0
  %2868 = vmatpush1.bf16.msra.mxu0 0
  %2869 = vmatprep.mubr.bf16.mxu0 0
  %2870 = vmatmul.mubr.bf16.gmra.mrb[0].mxu0 %v2832
  %v2871 = vpop.f32.mrb[0].mxu0
  %v2872 = vadd.f32 %v2817, %v2871
  %v2873 = vpop.f32.mrb[0].mxu0
  %v2874 = vpop.f32.mrb[0].mxu0
  %v2875 = vadd.f32 %v2817, %v2874
  %v2876 = vpop.f32.mrb[0].mxu0
  %2877 = vmatprep.mubr.bf16.mxu0 0
  %2878 = vmatmul.mubr.bf16.gmra.mrb[0].mxu0 %v2835
  %v2879 = vpop.f32.mrb[0].mxu0
  %v2880 = vadd.f32 %v2817, %v2879
  %v2881 = vpop.f32.mrb[0].mxu0
  %v2882 = vpop.f32.mrb[0].mxu0
  %v2883 = vadd.f32 %v2817, %v2882
  %v2884 = vpop.f32.mrb[0].mxu0
  %2885 = vdwg.mxu0
  %v2886 = vmul.f32 %v2872, 0.5
  %v2887 = vmul.f32 %v2875, 0.5
  %v2888 = vmul.f32 %v2880, 0.5
  %v2889 = vmul.f32 %v2883, 0.5
  %v2890 = vmul.f32 %v2872, 0.044715
  %v2891 = vmul.f32 %v2875, 0.044715
  %v2892 = vmul.f32 %v2880, 0.044715
  %v2893 = vmul.f32 %v2883, 0.044715
  %v2894 = vmul.f32 %v2890, %v2872
  %v2895 = vmul.f32 %v2891, %v2875
  %v2896 = vmul.f32 %v2892, %v2880
  %v2897 = vmul.f32 %v2893, %v2883
  %v2898 = vmul.f32 %v2894, %v2872
  %v2899 = vmul.f32 %v2895, %v2875
  %v2900 = vmul.f32 %v2896, %v2880
  %v2901 = vmul.f32 %v2897, %v2883
  %v2902 = vadd.f32 %v2872, %v2898
  %v2903 = vadd.f32 %v2875, %v2899
  %v2904 = vadd.f32 %v2880, %v2900
  %v2905 = vadd.f32 %v2883, %v2901
  %v2906 = vmul.f32 %v2902, 0.7978846
  %v2907 = vmul.f32 %v2903, 0.7978846
  %v2908 = vmul.f32 %v2904, 0.7978846
  %v2909 = vmul.f32 %v2905, 0.7978846
  %v2910 = vtanh.pop %v2906
  %v2911 = vtanh.pop %v2907
  %v2912 = vtanh.pop %v2908
  %v2913 = vtanh.pop %v2909
  %v2914 = vadd.f32 %v2910, 1.0
  %v2915 = vadd.f32 %v2911, 1.0
  %v2916 = vadd.f32 %v2912, 1.0
  %v2917 = vadd.f32 %v2913, 1.0
  %v2918 = vmul.f32 %v2886, %v2914
  %v2919 = vmul.f32 %v2887, %v2915
  %v2920 = vmul.f32 %v2888, %v2916
  %v2921 = vmul.f32 %v2889, %v2917
  %v2922 = vpack.c.bf16 %v2919, %v2918
  %v2923 = vpack.c.bf16 %v2921, %v2920
  %s2924 = scalar_lea.vmem %s17, 32
  %v2925 = vld [vmem:[%s2924] sm:$0xf]
  %v2926 = vld [vmem:[%s2924 + $0x4] sm:$0xf]
  %v2927 = vld [vmem:[%s2924 + $0x8] sm:$0xf]
  %v2928 = vld [vmem:[%s2924 + $0xc] sm:$0xf]
  %v2929 = vld [vmem:[%s2924 + $0x10] sm:$0xf]
  %v2930 = vld [vmem:[%s2924 + $0x14] sm:$0xf]
  %v2931 = vld [vmem:[%s2924 + $0x18] sm:$0xf]
  %v2932 = vld [vmem:[%s2924 + $0x1c] sm:$0xf]
  %s2933 = scalar_lea.vmem %s18, 1
  %v2934 = vld [vmem:[%s2933] sm:$0x1]
  %v2936 = vlaneseq
  %v2937 = vshrl.u32 %v2936, 7
  %v2938 = vsub.s32 0, %v2937
  %v2939 = vrot.slane %v2934, %v2938
  %v2949 = vunpack.c.l.b16 %v2925
  %v2950 = vunpack.c.l.b16 %v2926
  %v2951 = vunpack.c.l.b16 %v2927
  %v2952 = vunpack.c.l.b16 %v2928
  %v2953 = vunpack.c.l.b16 %v2929
  %v2954 = vunpack.c.l.b16 %v2930
  %v2955 = vunpack.c.l.b16 %v2931
  %v2956 = vunpack.c.l.b16 %v2932
  %v2957 = vpack.c.b16 %v2950, %v2949
  %v2958 = vpack.c.b16 %v2952, %v2951
  %v2959 = vpack.c.b16 %v2954, %v2953
  %v2960 = vpack.c.b16 %v2956, %v2955
  %v2966 = vsel %vm1502, %v2922, 0
  %v2969 = vsel %vm1502, %v2923, 0
  %2971 = vmatprep.subr.bf16.mxu0 0
  %2972 = vmatpush1.bf16.msra.mxu0 %v2957
  %2973 = vmatprep.subr.bf16.mxu0 0
  %2974 = vmatpush1.bf16.msra.mxu0 %v2958
  %2975 = vmatprep.subr.bf16.mxu0 0
  %2976 = vmatpush1.bf16.msra.mxu0 %v2959
  %2977 = vmatprep.subr.bf16.mxu0 0
  %2978 = vmatpush1.bf16.msra.mxu0 %v2960
  %2979 = vmatprep.subr.bf16.mxu0 0
  %2980 = vmatpush1.bf16.msra.mxu0 0
  %2981 = vmatprep.subr.bf16.mxu0 0
  %2982 = vmatpush1.bf16.msra.mxu0 0
  %2983 = vmatprep.subr.bf16.mxu0 0
  %2984 = vmatpush1.bf16.msra.mxu0 0
  %2985 = vmatprep.subr.bf16.mxu0 0
  %2986 = vmatpush1.bf16.msra.mxu0 0
  %2987 = vmatprep.subr.bf16.mxu0 0
  %2988 = vmatpush1.bf16.msra.mxu0 0
  %2989 = vmatprep.subr.bf16.mxu0 0
  %2990 = vmatpush1.bf16.msra.mxu0 0
  %2991 = vmatprep.subr.bf16.mxu0 0
  %2992 = vmatpush1.bf16.msra.mxu0 0
  %2993 = vmatprep.subr.bf16.mxu0 0
  %2994 = vmatpush1.bf16.msra.mxu0 0
  %2995 = vmatprep.subr.bf16.mxu0 0
  %2996 = vmatpush1.bf16.msra.mxu0 0
  %2997 = vmatprep.subr.bf16.mxu0 0
  %2998 = vmatpush1.bf16.msra.mxu0 0
  %2999 = vmatprep.subr.bf16.mxu0 0
  %3000 = vmatpush1.bf16.msra.mxu0 0
  %3001 = vmatprep.subr.bf16.mxu0 0
  %3002 = vmatpush1.bf16.msra.mxu0 0
  %3003 = vmatprep.mubr.bf16.mxu0 0
  %3004 = vmatmul.mubr.bf16.gmra.mrb[0].mxu0 %v2966
  %v3005 = vpop.f32.mrb[0].mxu0
  %v3006 = vadd.f32 %v2939, %v3005
  %v3007 = vpop.f32.mrb[0].mxu0
  %v3008 = vpop.f32.mrb[0].mxu0
  %v3009 = vadd.f32 %v2939, %v3008
  %v3010 = vpop.f32.mrb[0].mxu0
  %3011 = vmatprep.mubr.bf16.mxu0 0
  %3012 = vmatmul.mubr.bf16.gmra.mrb[0].mxu0 %v2969
  %v3013 = vpop.f32.mrb[0].mxu0
  %v3014 = vadd.f32 %v2939, %v3013
  %v3015 = vpop.f32.mrb[0].mxu0
  %v3016 = vpop.f32.mrb[0].mxu0
  %v3017 = vadd.f32 %v2939, %v3016
  %v3018 = vpop.f32.mrb[0].mxu0
  %3019 = vdwg.mxu0
  %v3020 = vadd.f32 %v2800, %v3006
  %v3021 = vadd.f32 %v2801, %v3009
  %v3022 = vadd.f32 %v2802, %v3014
  %v3023 = vadd.f32 %v2803, %v3017
  %s3024 = scalar_lea.vmem %s19, 1
  %v3025 = vld [vmem:[%s3024] sm:$0x1]
  %s3026 = scalar_lea.vmem %s20, 1
  %v3027 = vld [vmem:[%s3026] sm:$0x1]
  %v3028 = vsel %vm97, %v3020, 0.0
  %3029 = vadd.xlane.f32.xlu0 %v3028
  %v3030 = vpop.xlane.xlu0 %3029
  %v3031 = vsel %vm97, %v3021, 0.0
  %3032 = vadd.xlane.f32.xlu0 %v3031
  %v3033 = vpop.xlane.xlu0 %3032
  %v3034 = vsel %vm97, %v3022, 0.0
  %3035 = vadd.xlane.f32.xlu0 %v3034
  %v3036 = vpop.xlane.xlu0 %3035
  %v3037 = vsel %vm97, %v3023, 0.0
  %3038 = vadd.xlane.f32.xlu0 %v3037
  %v3039 = vpop.xlane.xlu0 %3038
  %v3040 = vmul.f32 %v3030, %v110
  %v3041 = vmul.f32 %v3033, %v110
  %v3042 = vmul.f32 %v3036, %v110
  %v3043 = vmul.f32 %v3039, %v110
  %v3044 = vmul.f32 %v3020, %v3020
  %v3045 = vmul.f32 %v3021, %v3021
  %v3046 = vmul.f32 %v3022, %v3022
  %v3047 = vmul.f32 %v3023, %v3023
  %v3048 = vsel %vm97, %v3044, 0.0
  %3049 = vadd.xlane.f32.xlu0 %v3048
  %v3050 = vpop.xlane.xlu0 %3049
  %v3051 = vsel %vm97, %v3045, 0.0
  %3052 = vadd.xlane.f32.xlu0 %v3051
  %v3053 = vpop.xlane.xlu0 %3052
  %v3054 = vsel %vm97, %v3046, 0.0
  %3055 = vadd.xlane.f32.xlu0 %v3054
  %v3056 = vpop.xlane.xlu0 %3055
  %v3057 = vsel %vm97, %v3047, 0.0
  %3058 = vadd.xlane.f32.xlu0 %v3057
  %v3059 = vpop.xlane.xlu0 %3058
  %v3060 = vmul.f32 %v3050, %v110
  %v3061 = vmul.f32 %v3053, %v110
  %v3062 = vmul.f32 %v3056, %v110
  %v3063 = vmul.f32 %v3059, %v110
  %v3064 = vmul.f32 %v3040, %v3040
  %v3065 = vmul.f32 %v3041, %v3041
  %v3066 = vmul.f32 %v3042, %v3042
  %v3067 = vmul.f32 %v3043, %v3043
  %v3068 = vsub.f32 %v3060, %v3064
  %v3069 = vsub.f32 %v3061, %v3065
  %v3070 = vsub.f32 %v3062, %v3066
  %v3071 = vsub.f32 %v3063, %v3067
  %v3072 = vmax.f32 %v3068, 0.0
  %v3073 = vmax.f32 %v3069, 0.0
  %v3074 = vmax.f32 %v3070, 0.0
  %v3075 = vmax.f32 %v3071, 0.0
  %v3076 = vsub.f32 %v3020, %v3040
  %v3077 = vsub.f32 %v3021, %v3041
  %v3078 = vsub.f32 %v3022, %v3042
  %v3079 = vsub.f32 %v3023, %v3043
  %v3080 = vadd.f32 %v3072, 1e-12
  %v3081 = vadd.f32 %v3073, 1e-12
  %v3082 = vadd.f32 %v3074, 1e-12
  %v3083 = vadd.f32 %v3075, 1e-12
  %v3084 = vrsqrt.pop %v3080
  %v3085 = vrsqrt.pop %v3081
  %v3086 = vrsqrt.pop %v3082
  %v3087 = vrsqrt.pop %v3083
  %v3088 = vmul.f32 %v3076, %v3084
  %v3089 = vmul.f32 %v3077, %v3085
  %v3090 = vmul.f32 %v3078, %v3086
  %v3091 = vmul.f32 %v3079, %v3087
  %v3093 = vlaneseq
  %v3094 = vshrl.u32 %v3093, 7
  %v3095 = vsub.s32 0, %v3094
  %v3096 = vrot.slane %v3025, %v3095
  %v3098 = vmul.f32 %v3088, %v3096
  %v3099 = vmul.f32 %v3089, %v3096
  %v3100 = vmul.f32 %v3090, %v3096
  %v3101 = vmul.f32 %v3091, %v3096
  %v3103 = vlaneseq
  %v3104 = vshrl.u32 %v3103, 7
  %v3105 = vsub.s32 0, %v3104
  %v3106 = vrot.slane %v3027, %v3105
  %v3108 = vadd.f32 %v3098, %v3106
  %v3109 = vadd.f32 %v3099, %v3106
  %v3110 = vadd.f32 %v3100, %v3106
  %v3111 = vadd.f32 %v3101, %v3106
  %3112 = vst.msk [vmem:[#allocation2] sm:$0xff] %vm97, %v3108
  %3113 = vst.msk [vmem:[#allocation2 + $0x8] sm:$0xff] %vm97, %v3109
  %3114 = vst.msk [vmem:[#allocation2 + $0x10] sm:$0xff] %vm97, %v3110
  %3115 = vst.msk [vmem:[#allocation2 + $0x18] sm:$0xff] %vm97, %v3111
  %s3116 = smul.u32 0, 2
  %s3117 = smul.u32 0, 8
  %s3118 = sld [smem:[#allocation5 + %s3117]]
  %s3119 = scalar_lea.vmem [#allocation2], %s3118
  %v3120 = vld [vmem:[%s3119] sm:$0x1]
  %vm3121 = vcmask 253952
  %3122 = vst.msk [vmem:[#allocation3] sm:$0x1] %vm3121, %v3120
  %s3123 = sadd.s32 %s3117, 1
  %s3124 = sld [smem:[#allocation5 + %s3123]]
  %s3125 = scalar_lea.vmem [#allocation2], %s3124
  %v3126 = vld [vmem:[%s3125] sm:$0x1]
  %3127 = vst.msk [vmem:[#allocation3 + $0x1] sm:$0x1] %vm3121, %v3126
  %s3128 = sadd.s32 %s3117, 2
  %s3129 = sld [smem:[#allocation5 + %s3128]]
  %s3130 = scalar_lea.vmem [#allocation2], %s3129
  %v3131 = vld [vmem:[%s3130] sm:$0x1]
  %3132 = vst.msk [vmem:[#allocation3 + $0x2] sm:$0x1] %vm3121, %v3131
  %s3133 = sadd.s32 %s3117, 3
  %s3134 = sld [smem:[#allocation5 + %s3133]]
  %s3135 = scalar_lea.vmem [#allocation2], %s3134
  %v3136 = vld [vmem:[%s3135] sm:$0x1]
  %3137 = vst.msk [vmem:[#allocation3 + $0x3] sm:$0x1] %vm3121, %v3136
  %s3138 = sadd.s32 %s3116, 1
  %s3139 = smul.u32 %s3138, 4
  %s3140 = sld [smem:[#allocation5 + %s3139]]
  %s3141 = sadd.s32 %s3140, 16
  %s3142 = scalar_lea.vmem [#allocation2], %s3141
  %v3143 = vld [vmem:[%s3142] sm:$0x1]
  %3144 = vst.msk [vmem:[#allocation3 + $0x4] sm:$0x1] %vm3121, %v3143
  %s3145 = sadd.s32 %s3139, 1
  %s3146 = sld [smem:[#allocation5 + %s3145]]
  %s3147 = sadd.s32 %s3146, 16
  %s3148 = scalar_lea.vmem [#allocation2], %s3147
  %v3149 = vld [vmem:[%s3148] sm:$0x1]
  %3150 = vst.msk [vmem:[#allocation3 + $0x5] sm:$0x1] %vm3121, %v3149
  %s3151 = sadd.s32 %s3139, 2
  %s3152 = sld [smem:[#allocation5 + %s3151]]
  %s3153 = sadd.s32 %s3152, 16
  %s3154 = scalar_lea.vmem [#allocation2], %s3153
  %v3155 = vld [vmem:[%s3154] sm:$0x1]
  %3156 = vst.msk [vmem:[#allocation3 + $0x6] sm:$0x1] %vm3121, %v3155
  %s3157 = sadd.s32 %s3139, 3
  %s3158 = sld [smem:[#allocation5 + %s3157]]
  %s3159 = sadd.s32 %s3158, 16
  %s3160 = scalar_lea.vmem [#allocation2], %s3159
  %v3161 = vld [vmem:[%s3160] sm:$0x1]
  %3162 = vst.msk [vmem:[#allocation3 + $0x7] sm:$0x1] %vm3121, %v3161
  %v3163 = vld [vmem:[#allocation3] sm:$0xff]
  %v3164 = vpack.c.bf16 %v3163, %v3163
  %v3165 = vld [vmem:[%s21] sm:$0xf]
  %v3166 = vld [vmem:[%s21 + $0x4] sm:$0xf]
  %v3167 = vld [vmem:[%s21 + $0x8] sm:$0xf]
  %v3168 = vld [vmem:[%s21 + $0xc] sm:$0xf]
  %v3169 = vld [vmem:[%s22] sm:$0x1]
  %v3171 = vlaneseq
  %v3172 = vshrl.u32 %v3171, 7
  %v3173 = vsub.s32 0, %v3172
  %v3174 = vrot.slane %v3169, %v3173
  %v3180 = vunpack.c.l.b16 %v3165
  %v3181 = vunpack.c.l.b16 %v3166
  %v3182 = vunpack.c.l.b16 %v3167
  %v3183 = vunpack.c.l.b16 %v3168
  %v3184 = vpack.c.b16 %v3181, %v3180
  %v3185 = vpack.c.b16 %v3183, %v3182
  %v3189 = vsel %vm97, %v3164, 0
  %3191 = vmatprep.subr.bf16.mxu0 0
  %3192 = vmatpush1.bf16.msra.mxu0 %v3184
  %3193 = vmatprep.subr.bf16.mxu0 0
  %3194 = vmatpush1.bf16.msra.mxu0 %v3185
  %3195 = vmatprep.subr.bf16.mxu0 0
  %3196 = vmatpush1.bf16.msra.mxu0 0
  %3197 = vmatprep.subr.bf16.mxu0 0
  %3198 = vmatpush1.bf16.msra.mxu0 0
  %3199 = vmatprep.subr.bf16.mxu0 0
  %3200 = vmatpush1.bf16.msra.mxu0 0
  %3201 = vmatprep.subr.bf16.mxu0 0
  %3202 = vmatpush1.bf16.msra.mxu0 0
  %3203 = vmatprep.subr.bf16.mxu0 0
  %3204 = vmatpush1.bf16.msra.mxu0 0
  %3205 = vmatprep.subr.bf16.mxu0 0
  %3206 = vmatpush1.bf16.msra.mxu0 0
  %3207 = vmatprep.subr.bf16.mxu0 0
  %3208 = vmatpush1.bf16.msra.mxu0 0
  %3209 = vmatprep.subr.bf16.mxu0 0
  %3210 = vmatpush1.bf16.msra.mxu0 0
  %3211 = vmatprep.subr.bf16.mxu0 0
  %3212 = vmatpush1.bf16.msra.mxu0 0
  %3213 = vmatprep.subr.bf16.mxu0 0
  %3214 = vmatpush1.bf16.msra.mxu0 0
  %3215 = vmatprep.subr.bf16.mxu0 0
  %3216 = vmatpush1.bf16.msra.mxu0 0
  %3217 = vmatprep.subr.bf16.mxu0 0
  %3218 = vmatpush1.bf16.msra.mxu0 0
  %3219 = vmatprep.subr.bf16.mxu0 0
  %3220 = vmatpush1.bf16.msra.mxu0 0
  %3221 = vmatprep.subr.bf16.mxu0 0
  %3222 = vmatpush1.bf16.msra.mxu0 0
  %3223 = vmatprep.mubr.bf16.mxu0 0
  %3224 = vmatmul.mubr.bf16.gmra.mrb[0].mxu0 %v3189
  %v3225 = vpop.f32.mrb[0].mxu0
  %v3226 = vadd.f32 %v3174, %v3225
  %v3227 = vpop.f32.mrb[0].mxu0
  %v3228 = vpop.f32.mrb[0].mxu0
  %v3229 = vpop.f32.mrb[0].mxu0
  %3230 = vdwg.mxu0
  %v3231 = vmul.f32 %v3226, 0.5
  %v3232 = vmul.f32 %v3226, 0.044715
  %v3233 = vmul.f32 %v3232, %v3226
  %v3234 = vmul.f32 %v3233, %v3226
  %v3235 = vadd.f32 %v3226, %v3234
  %v3236 = vmul.f32 %v3235, 0.7978846
  %v3237 = vtanh.pop %v3236
  %v3238 = vadd.f32 %v3237, 1.0
  %v3239 = vmul.f32 %v3231, %v3238
  %v3240 = vld [vmem:[%s23] sm:$0x1]
  %v3241 = vld [vmem:[%s24] sm:$0x1]
  %v3242 = vsel %vm97, %v3239, 0.0
  %3243 = vadd.xlane.f32.xlu0 %v3242
  %v3244 = vpop.xlane.xlu0 %3243
  %v3245 = vmul.f32 %v3244, %v110
  %v3246 = vmul.f32 %v3239, %v3239
  %v3247 = vsel %vm97, %v3246, 0.0
  %3248 = vadd.xlane.f32.xlu0 %v3247
  %v3249 = vpop.xlane.xlu0 %3248
  %v3250 = vmul.f32 %v3249, %v110
  %v3251 = vmul.f32 %v3245, %v3245
  %v3252 = vsub.f32 %v3250, %v3251
  %v3253 = vmax.f32 %v3252, 0.0
  %v3254 = vsub.f32 %v3239, %v3245
  %v3255 = vadd.f32 %v3253, 1e-12
  %v3256 = vrsqrt.pop %v3255
  %v3257 = vmul.f32 %v3254, %v3256
  %v3259 = vlaneseq
  %v3260 = vshrl.u32 %v3259, 7
  %v3261 = vsub.s32 0, %v3260
  %v3262 = vrot.slane %v3240, %v3261
  %v3264 = vmul.f32 %v3257, %v3262
  %v3266 = vlaneseq
  %v3267 = vshrl.u32 %v3266, 7
  %v3268 = vsub.s32 0, %v3267
  %v3269 = vrot.slane %v3241, %v3268
  %v3271 = vadd.f32 %v3264, %v3269
  %v3272 = vpack.c.bf16 %v3271, %v3271
  %v3273 = vld [vmem:[%s25] sm:$0xf]
  %v3274 = vld [vmem:[%s25 + $0x4] sm:$0xf]
  %v3275 = vld [vmem:[%s25 + $0x8] sm:$0xf]
  %v3276 = vld [vmem:[%s25 + $0xc] sm:$0xf]
  %v3277 = vld [vmem:[%s26] sm:$0x1]
  %v3279 = vlaneseq
  %v3280 = vshrl.u32 %v3279, 7
  %v3281 = vsub.s32 0, %v3280
  %v3282 = vrot.slane %v3277, %v3281
  %v3288 = vunpack.c.l.b16 %v3273
  %v3289 = vunpack.c.l.b16 %v3274
  %v3290 = vunpack.c.l.b16 %v3275
  %v3291 = vunpack.c.l.b16 %v3276
  %v3292 = vpack.c.b16 %v3289, %v3288
  %v3293 = vpack.c.b16 %v3291, %v3290
  %v3297 = vsel %vm97, %v3272, 0
  %3299 = vmatprep.subr.bf16.mxu0 0
  %3300 = vmatpush1.bf16.msra.mxu0 %v3292
  %3301 = vmatprep.subr.bf16.mxu0 0
  %3302 = vmatpush1.bf16.msra.mxu0 %v3293
  %3303 = vmatprep.subr.bf16.mxu0 0
  %3304 = vmatpush1.bf16.msra.mxu0 0
  %3305 = vmatprep.subr.bf16.mxu0 0
  %3306 = vmatpush1.bf16.msra.mxu0 0
  %3307 = vmatprep.subr.bf16.mxu0 0
  %3308 = vmatpush1.bf16.msra.mxu0 0
  %3309 = vmatprep.subr.bf16.mxu0 0
  %3310 = vmatpush1.bf16.msra.mxu0 0
  %3311 = vmatprep.subr.bf16.mxu0 0
  %3312 = vmatpush1.bf16.msra.mxu0 0
  %3313 = vmatprep.subr.bf16.mxu0 0
  %3314 = vmatpush1.bf16.msra.mxu0 0
  %3315 = vmatprep.subr.bf16.mxu0 0
  %3316 = vmatpush1.bf16.msra.mxu0 0
  %3317 = vmatprep.subr.bf16.mxu0 0
  %3318 = vmatpush1.bf16.msra.mxu0 0
  %3319 = vmatprep.subr.bf16.mxu0 0
  %3320 = vmatpush1.bf16.msra.mxu0 0
  %3321 = vmatprep.subr.bf16.mxu0 0
  %3322 = vmatpush1.bf16.msra.mxu0 0
  %3323 = vmatprep.subr.bf16.mxu0 0
  %3324 = vmatpush1.bf16.msra.mxu0 0
  %3325 = vmatprep.subr.bf16.mxu0 0
  %3326 = vmatpush1.bf16.msra.mxu0 0
  %3327 = vmatprep.subr.bf16.mxu0 0
  %3328 = vmatpush1.bf16.msra.mxu0 0
  %3329 = vmatprep.subr.bf16.mxu0 0
  %3330 = vmatpush1.bf16.msra.mxu0 0
  %3331 = vmatprep.mubr.bf16.mxu0 0
  %3332 = vmatmul.mubr.bf16.gmra.mrb[0].mxu0 %v3297
  %v3333 = vpop.f32.mrb[0].mxu0
  %v3334 = vadd.f32 %v3282, %v3333
  %v3335 = vpop.f32.mrb[0].mxu0
  %v3336 = vpop.f32.mrb[0].mxu0
  %v3337 = vpop.f32.mrb[0].mxu0
  %3338 = vdwg.mxu0
  %3339 = vst [vmem:[%s27] sm:$0xff] %v3334
  // Predicated region
  $region106: #{predict_fn.1} parent=0 // pred_check
    _
  $region107: #{predict_fn.1} parent=0 // pred_check_branch
    %3341 = sbr.rel (0) target = $region109
  $region108: #{predict_fn.1} parent=0 // pred_region
    _
  $region109: #{predict_fn.1} parent=0 // pred_fallthru
    _
  // Predicated region
  $region110: #{predict_fn.1} parent=0 // pred_check
    _
  $region111: #{predict_fn.1} parent=0 // pred_check_branch
    %3343 = sbr.rel (0) target = $region113
  $region112: #{predict_fn.1} parent=0 // pred_region
    _
  $region113: #{predict_fn.1} parent=0 // pred_fallthru
    _

</llo_original>
